<compile_context>
chip_gen: v5e
topology: v5e:2x2
jax: 0.10.0
libtpu: 0.0.40
codegen_flags: <defaults>
</compile_context>

<pallas_src>
import jax
import jax.numpy as jnp
from jax.experimental import pallas as pl
from jax.experimental.pallas import tpu as pltpu


def _make_pinn_kernel(num_inputs, num_weight_layers):
    """Kernel refs: x_i*k, mean_i*k, inv_std_i*k, w0_i*k, b0, a0, (w,b,a)*(L-1), out."""
    k = num_inputs

    def kernel(*refs):
        x_refs = refs[0 * k:1 * k]
        mean_refs = refs[1 * k:2 * k]
        istd_refs = refs[2 * k:3 * k]
        w0_refs = refs[3 * k:4 * k]
        b0_ref, a0_ref = refs[4 * k], refs[4 * k + 1]
        rest = refs[4 * k + 2:-1]
        out_ref = refs[-1]

        # Layer 0, fused with input normalization and the (implicit) concat:
        # each input contributes x_i_norm @ W0[row-block_i], summed on the fly.
        h = None
        for i in range(k):
            xin = (x_refs[i][...] - mean_refs[i][...]) * istd_refs[i][...]
            part = jnp.dot(xin, w0_refs[i][...], preferred_element_type=jnp.float32)
            h = part if h is None else h + part
        h = a0_ref[...] * h + b0_ref[...]
        if num_weight_layers > 1:
            h = h * jax.nn.sigmoid(h)  # SiLU

        # Remaining layers: weights are already column-normalized (hoisted).
        for L in range(1, num_weight_layers):
            wn = rest[3 * (L - 1)][...]
            b = rest[3 * (L - 1) + 1][...]
            a = rest[3 * (L - 1) + 2][...]
            h = jnp.dot(h, wn, preferred_element_type=jnp.float32)
            h = a * h + b
            if L < num_weight_layers - 1:
                h = h * jax.nn.sigmoid(h)

        out_ref[...] = h.astype(out_ref.dtype)

    return kernel


def pinn_forward(inputs, x_mean, x_std, weights, biases, alphas, *, tile_m=512):
    """Whole PinnNet forward in one batch-tiled Pallas call; returns (N, out_dim)."""
    nwl = len(weights)
    n = inputs[0].shape[0]
    in_dims = [xi.shape[1] for xi in inputs]
    in_dim = sum(in_dims)
    out_dim = weights[-1].shape[1]
    assert x_mean.shape[1] == in_dim and weights[0].shape[0] == in_dim

    # ---- Hoisted batch-invariant prep (runs once, outside the grid) ----
    # Column-wise weight normalization, exactly as the reference computes it.
    wn = [w / jnp.linalg.norm(w, axis=0, keepdims=True) for w in weights]
    # Divide once here; the kernel multiplies per tile (VPU mul, not f32 div).
    inv_std = 1.0 / x_std

    # Per-input slices of mean / inv_std / first-layer weight rows so the
    # concat can be fused into the kernel as a split-K first matmul.
    offs, o = [], 0
    for d in in_dims:
        offs.append(o)
        o += d
    mean_parts = [x_mean[:, offs[i]:offs[i] + in_dims[i]] for i in range(len(inputs))]
    istd_parts = [inv_std[:, offs[i]:offs[i] + in_dims[i]] for i in range(len(inputs))]
    w0_parts = [wn[0][offs[i]:offs[i] + in_dims[i], :] for i in range(len(inputs))]

    # Batch tile: 512 rows at 32-lane f32 h is only 16 vregs -> no spill, and
    # large enough to hit ~85% of HBM roofline. Partial last tile is fine:
    # every row is independent and out-of-bounds rows are dropped on store.
    tm = n if n <= tile_m else tile_m
    grid = (pl.cdiv(n, tm),)

    def batch_spec(d):
        return pl.BlockSpec((tm, d), lambda i: (i, 0))

    def const_spec(p):
        # Full-array block + constant index_map => stays VMEM-resident.
        return pl.BlockSpec(p.shape, lambda i: (0, 0))

    args, in_specs = [], []
    for xi in inputs:
        args.append(xi)
        in_specs.append(batch_spec(xi.shape[1]))
    for p in mean_parts + istd_parts + w0_parts:
        args.append(p)
        in_specs.append(const_spec(p))
    for p in (biases[0], alphas[0]):
        args.append(p)
        in_specs.append(const_spec(p))
    for L in range(1, nwl):
        for p in (wn[L], biases[L], alphas[L]):
            args.append(p)
            in_specs.append(const_spec(p))

    out_specs = pl.BlockSpec((tm, out_dim), lambda i: (i, 0))

    kernel = _make_pinn_kernel(len(inputs), nwl)
    # Double-buffered x tiles + params are well under the scoped VMEM limit on
    # v5e/v6e/v7x at these widths (a few hundred KiB).
    return pl.pallas_call(
        kernel,
        out_shape=jax.ShapeDtypeStruct((n, out_dim), jnp.float32),
        grid=grid,
        in_specs=in_specs,
        out_specs=out_specs,
        compiler_params=pltpu.CompilerParams(
            dimension_semantics=("parallel",)),  # both v7x TCs; harmless on v5e/v6e
    )(*args)


def pinn_net_apply(params, *inputs):
    """Glue matching the torch module: run kernel, return tuple of (N,1) columns."""
    y = pinn_forward(
        inputs,
        params["x_mean"],
        params["x_std"],
        params["weights"],
        params["biases"],
        params["alphas"],
    )
    # Module return contract (torch.split(..., 1, dim=1)). The heavy work is
    # in-kernel; this split is a handful of tiny column copies.
    return tuple(jnp.split(y, y.shape[1], axis=1))


def init_pinn_params(key, layers):
    """Deterministic parameter init mirroring PinnNet.__init__ (no-inputs branch)."""
    num_layers = len(layers)
    in0 = layers[0]
    params = {
        "x_mean": jnp.zeros((1, in0), jnp.float32),
        "x_std": jnp.ones((1, in0), jnp.float32),
        "weights": [],
        "biases": [],
        "alphas": [],
    }
    for L in range(num_layers - 1):
        in_dim = layers[1]          # reproduces the original's `layers[1]`
        out_dim = layers[L + 1]
        key, sub = jax.random.split(key)
        w = jax.random.normal(sub, (in_dim, out_dim), jnp.float32)
        params["weights"].append(w)
        params["biases"].append(jnp.zeros((1, out_dim), jnp.float32))
        params["alphas"].append(jnp.ones((1, out_dim), jnp.float32))
    return params


def _reference_forward(params, *inputs):
    """Pure-JAX reference for correctness check."""
    h = jnp.concatenate(inputs, axis=1)
    h = (h - params["x_mean"]) / params["x_std"]
    nwl = len(params["weights"])
    for L in range(nwl):
        w = params["weights"][L]
        wnorm = w / jnp.linalg.norm(w, axis=0, keepdims=True)
        h = params["alphas"][L] * (h @ wnorm) + params["biases"][L]
        if L < nwl - 1:
            h = h * jax.nn.sigmoid(h)
    return tuple(jnp.split(h, h.shape[1], axis=1))


if __name__ == "__main__":
    # layers: [in, hidden, hidden, out]; hidden widths equal so the original
    # `in_dim = layers[1]` init composes correctly.
    layers = [32, 32, 32, 4]
    batch = 1024  # two 512-row grid steps -> exercises the pipelined batch tiling

    key = jax.random.PRNGKey(0)
    key, k1, k2, kp = jax.random.split(key, 4)
    # Two forward inputs concatenated along dim=1, as in `forward(*inputs)`.
    x1 = jax.random.normal(k1, (batch, 16), jnp.float32)
    x2 = jax.random.normal(k2, (batch, 16), jnp.float32)

    params = init_pinn_params(kp, layers)

    outs = pinn_net_apply(params, x1, x2)
    outs = jax.block_until_ready(outs)

    refs = _reference_forward(params, x1, x2)
    for o, r in zip(outs, refs):
        assert o.shape == (batch, 1)
        assert jnp.allclose(o, r, atol=1e-4, rtol=1e-4), "mismatch vs reference"

    print("KERNEL_OK")
</pallas_src>

<mosaic_0001>
module attributes {stable_mosaic.version = 11 : i64} {
  func.func @kernel(%arg0: i32, %arg1: memref<512x16xf32, #tpu.memory_space<vmem>>, %arg2: memref<512x16xf32, #tpu.memory_space<vmem>>, %arg3: memref<1x16xf32, #tpu.memory_space<vmem>>, %arg4: memref<1x16xf32, #tpu.memory_space<vmem>>, %arg5: memref<1x16xf32, #tpu.memory_space<vmem>>, %arg6: memref<1x16xf32, #tpu.memory_space<vmem>>, %arg7: memref<16x32xf32, #tpu.memory_space<vmem>>, %arg8: memref<16x32xf32, #tpu.memory_space<vmem>>, %arg9: memref<1x32xf32, #tpu.memory_space<vmem>>, %arg10: memref<1x32xf32, #tpu.memory_space<vmem>>, %arg11: memref<32x32xf32, #tpu.memory_space<vmem>>, %arg12: memref<1x32xf32, #tpu.memory_space<vmem>>, %arg13: memref<1x32xf32, #tpu.memory_space<vmem>>, %arg14: memref<32x4xf32, #tpu.memory_space<vmem>>, %arg15: memref<1x4xf32, #tpu.memory_space<vmem>>, %arg16: memref<1x4xf32, #tpu.memory_space<vmem>>, %arg17: memref<512x4xf32, #tpu.memory_space<vmem>>) attributes {dimension_semantics = [#tpu.dimension_semantics<parallel>], iteration_bounds = array<i64: 2>, scalar_prefetch = 0 : i64, scratch_operands = 0 : i64, tpu.core_type = #tpu.core_type<tc>, window_params = [{transform_indices = @transform_0, window_bounds = array<i64: 512, 16>}, {transform_indices = @transform_1, window_bounds = array<i64: 512, 16>}, {pipeline_mode = #tpu.pipeline_mode<synchronous>, transform_indices = @transform_2, window_bounds = array<i64: 1, 16>}, {pipeline_mode = #tpu.pipeline_mode<synchronous>, transform_indices = @transform_3, window_bounds = array<i64: 1, 16>}, {pipeline_mode = #tpu.pipeline_mode<synchronous>, transform_indices = @transform_4, window_bounds = array<i64: 1, 16>}, {pipeline_mode = #tpu.pipeline_mode<synchronous>, transform_indices = @transform_5, window_bounds = array<i64: 1, 16>}, {pipeline_mode = #tpu.pipeline_mode<synchronous>, transform_indices = @transform_6, window_bounds = array<i64: 16, 32>}, {pipeline_mode = #tpu.pipeline_mode<synchronous>, transform_indices = @transform_7, window_bounds = array<i64: 16, 32>}, {pipeline_mode = #tpu.pipeline_mode<synchronous>, transform_indices = @transform_8, window_bounds = array<i64: 1, 32>}, {pipeline_mode = #tpu.pipeline_mode<synchronous>, transform_indices = @transform_9, window_bounds = array<i64: 1, 32>}, {pipeline_mode = #tpu.pipeline_mode<synchronous>, transform_indices = @transform_10, window_bounds = array<i64: 32, 32>}, {pipeline_mode = #tpu.pipeline_mode<synchronous>, transform_indices = @transform_11, window_bounds = array<i64: 1, 32>}, {pipeline_mode = #tpu.pipeline_mode<synchronous>, transform_indices = @transform_12, window_bounds = array<i64: 1, 32>}, {pipeline_mode = #tpu.pipeline_mode<synchronous>, transform_indices = @transform_13, window_bounds = array<i64: 32, 4>}, {pipeline_mode = #tpu.pipeline_mode<synchronous>, transform_indices = @transform_14, window_bounds = array<i64: 1, 4>}, {pipeline_mode = #tpu.pipeline_mode<synchronous>, transform_indices = @transform_15, window_bounds = array<i64: 1, 4>}, {transform_indices = @transform_16, window_bounds = array<i64: 512, 4>}]} {
    %c0 = arith.constant 0 : index
    %c0_0 = arith.constant 0 : index
    %0 = vector.load %arg1[%c0, %c0_0] : memref<512x16xf32, #tpu.memory_space<vmem>>, vector<512x16xf32>
    %c0_1 = arith.constant 0 : index
    %c0_2 = arith.constant 0 : index
    %1 = vector.load %arg3[%c0_1, %c0_2] : memref<1x16xf32, #tpu.memory_space<vmem>>, vector<1x16xf32>
    %2 = vector.broadcast %1 : vector<1x16xf32> to vector<512x16xf32>
    %3 = arith.subf %0, %2 : vector<512x16xf32>
    %c0_3 = arith.constant 0 : index
    %c0_4 = arith.constant 0 : index
    %4 = vector.load %arg5[%c0_3, %c0_4] : memref<1x16xf32, #tpu.memory_space<vmem>>, vector<1x16xf32>
    %5 = vector.broadcast %4 : vector<1x16xf32> to vector<512x16xf32>
    %6 = arith.mulf %3, %5 : vector<512x16xf32>
    %c0_5 = arith.constant 0 : index
    %c0_6 = arith.constant 0 : index
    %7 = vector.load %arg7[%c0_5, %c0_6] : memref<16x32xf32, #tpu.memory_space<vmem>>, vector<16x32xf32>
    %cst = arith.constant dense<0.000000e+00> : vector<512x32xf32>
    %8 = tpu.matmul %6, %7, %cst {dimension_numbers = #tpu.dot_dimension_numbers<[1], [0], [0], [1], [0, 0, 1, 1], [], []>} : vector<512x16xf32>, vector<16x32xf32>, vector<512x32xf32> -> vector<512x32xf32>
    %c0_7 = arith.constant 0 : index
    %c0_8 = arith.constant 0 : index
    %9 = vector.load %arg2[%c0_7, %c0_8] : memref<512x16xf32, #tpu.memory_space<vmem>>, vector<512x16xf32>
    %c0_9 = arith.constant 0 : index
    %c0_10 = arith.constant 0 : index
    %10 = vector.load %arg4[%c0_9, %c0_10] : memref<1x16xf32, #tpu.memory_space<vmem>>, vector<1x16xf32>
    %11 = vector.broadcast %10 : vector<1x16xf32> to vector<512x16xf32>
    %12 = arith.subf %9, %11 : vector<512x16xf32>
    %c0_11 = arith.constant 0 : index
    %c0_12 = arith.constant 0 : index
    %13 = vector.load %arg6[%c0_11, %c0_12] : memref<1x16xf32, #tpu.memory_space<vmem>>, vector<1x16xf32>
    %14 = vector.broadcast %13 : vector<1x16xf32> to vector<512x16xf32>
    %15 = arith.mulf %12, %14 : vector<512x16xf32>
    %c0_13 = arith.constant 0 : index
    %c0_14 = arith.constant 0 : index
    %16 = vector.load %arg8[%c0_13, %c0_14] : memref<16x32xf32, #tpu.memory_space<vmem>>, vector<16x32xf32>
    %cst_15 = arith.constant dense<0.000000e+00> : vector<512x32xf32>
    %17 = tpu.matmul %15, %16, %cst_15 {dimension_numbers = #tpu.dot_dimension_numbers<[1], [0], [0], [1], [0, 0, 1, 1], [], []>} : vector<512x16xf32>, vector<16x32xf32>, vector<512x32xf32> -> vector<512x32xf32>
    %18 = arith.addf %8, %17 : vector<512x32xf32>
    %c0_16 = arith.constant 0 : index
    %c0_17 = arith.constant 0 : index
    %19 = vector.load %arg10[%c0_16, %c0_17] : memref<1x32xf32, #tpu.memory_space<vmem>>, vector<1x32xf32>
    %20 = vector.broadcast %19 : vector<1x32xf32> to vector<512x32xf32>
    %21 = arith.mulf %20, %18 : vector<512x32xf32>
    %c0_18 = arith.constant 0 : index
    %c0_19 = arith.constant 0 : index
    %22 = vector.load %arg9[%c0_18, %c0_19] : memref<1x32xf32, #tpu.memory_space<vmem>>, vector<1x32xf32>
    %23 = vector.broadcast %22 : vector<1x32xf32> to vector<512x32xf32>
    %24 = arith.addf %21, %23 : vector<512x32xf32>
    %25 = arith.negf %24 : vector<512x32xf32>
    %26 = math.exp %25 : vector<512x32xf32>
    %cst_20 = arith.constant 1.000000e+00 : f32
    %27 = vector.broadcast %cst_20 : f32 to vector<512x32xf32>
    %28 = arith.addf %27, %26 : vector<512x32xf32>
    %29 = arith.divf %27, %28 : vector<512x32xf32>
    %30 = arith.mulf %24, %29 : vector<512x32xf32>
    %c0_21 = arith.constant 0 : index
    %c0_22 = arith.constant 0 : index
    %31 = vector.load %arg11[%c0_21, %c0_22] : memref<32x32xf32, #tpu.memory_space<vmem>>, vector<32x32xf32>
    %c0_23 = arith.constant 0 : index
    %c0_24 = arith.constant 0 : index
    %32 = vector.load %arg12[%c0_23, %c0_24] : memref<1x32xf32, #tpu.memory_space<vmem>>, vector<1x32xf32>
    %c0_25 = arith.constant 0 : index
    %c0_26 = arith.constant 0 : index
    %33 = vector.load %arg13[%c0_25, %c0_26] : memref<1x32xf32, #tpu.memory_space<vmem>>, vector<1x32xf32>
    %cst_27 = arith.constant dense<0.000000e+00> : vector<512x32xf32>
    %34 = tpu.matmul %30, %31, %cst_27 {dimension_numbers = #tpu.dot_dimension_numbers<[1], [0], [0], [1], [0, 0, 1, 1], [], []>} : vector<512x32xf32>, vector<32x32xf32>, vector<512x32xf32> -> vector<512x32xf32>
    %35 = vector.broadcast %33 : vector<1x32xf32> to vector<512x32xf32>
    %36 = arith.mulf %35, %34 : vector<512x32xf32>
    %37 = vector.broadcast %32 : vector<1x32xf32> to vector<512x32xf32>
    %38 = arith.addf %36, %37 : vector<512x32xf32>
    %39 = arith.negf %38 : vector<512x32xf32>
    %40 = math.exp %39 : vector<512x32xf32>
    %cst_28 = arith.constant 1.000000e+00 : f32
    %41 = vector.broadcast %cst_28 : f32 to vector<512x32xf32>
    %42 = arith.addf %41, %40 : vector<512x32xf32>
    %43 = arith.divf %41, %42 : vector<512x32xf32>
    %44 = arith.mulf %38, %43 : vector<512x32xf32>
    %c0_29 = arith.constant 0 : index
    %c0_30 = arith.constant 0 : index
    %45 = vector.load %arg14[%c0_29, %c0_30] : memref<32x4xf32, #tpu.memory_space<vmem>>, vector<32x4xf32>
    %c0_31 = arith.constant 0 : index
    %c0_32 = arith.constant 0 : index
    %46 = vector.load %arg15[%c0_31, %c0_32] : memref<1x4xf32, #tpu.memory_space<vmem>>, vector<1x4xf32>
    %c0_33 = arith.constant 0 : index
    %c0_34 = arith.constant 0 : index
    %47 = vector.load %arg16[%c0_33, %c0_34] : memref<1x4xf32, #tpu.memory_space<vmem>>, vector<1x4xf32>
    %cst_35 = arith.constant dense<0.000000e+00> : vector<512x4xf32>
    %48 = tpu.matmul %44, %45, %cst_35 {dimension_numbers = #tpu.dot_dimension_numbers<[1], [0], [0], [1], [0, 0, 1, 1], [], []>} : vector<512x32xf32>, vector<32x4xf32>, vector<512x4xf32> -> vector<512x4xf32>
    %49 = vector.broadcast %47 : vector<1x4xf32> to vector<512x4xf32>
    %50 = arith.mulf %49, %48 : vector<512x4xf32>
    %51 = vector.broadcast %46 : vector<1x4xf32> to vector<512x4xf32>
    %52 = arith.addf %50, %51 : vector<512x4xf32>
    %c0_36 = arith.constant 0 : index
    %c0_37 = arith.constant 0 : index
    %53 = vector.load %arg17[%c0_36, %c0_37] : memref<512x4xf32, #tpu.memory_space<vmem>>, vector<512x4xf32>
    tpu.vector_store %arg17[%c0_36, %c0_37], %52 {strides = array<i32>} : memref<512x4xf32, #tpu.memory_space<vmem>>, vector<512x4xf32>,
    return
  }
  func.func @transform_0(%arg0: i32) -> (i32, i32) {
    %c0_i32 = arith.constant 0 : i32
    %c0_i32_0 = arith.constant 0 : i32
    return %arg0, %c0_i32 : i32, i32
  }
  func.func @transform_1(%arg0: i32) -> (i32, i32) {
    %c0_i32 = arith.constant 0 : i32
    %c0_i32_0 = arith.constant 0 : i32
    return %arg0, %c0_i32 : i32, i32
  }
  func.func @transform_2(%arg0: i32) -> (i32, i32) {
    %c0_i32 = arith.constant 0 : i32
    %c0_i32_0 = arith.constant 0 : i32
    %c0_i32_1 = arith.constant 0 : i32
    return %c0_i32, %c0_i32_0 : i32, i32
  }
  func.func @transform_3(%arg0: i32) -> (i32, i32) {
    %c0_i32 = arith.constant 0 : i32
    %c0_i32_0 = arith.constant 0 : i32
    %c0_i32_1 = arith.constant 0 : i32
    return %c0_i32, %c0_i32_0 : i32, i32
  }
  func.func @transform_4(%arg0: i32) -> (i32, i32) {
    %c0_i32 = arith.constant 0 : i32
    %c0_i32_0 = arith.constant 0 : i32
    %c0_i32_1 = arith.constant 0 : i32
    return %c0_i32, %c0_i32_0 : i32, i32
  }
  func.func @transform_5(%arg0: i32) -> (i32, i32) {
    %c0_i32 = arith.constant 0 : i32
    %c0_i32_0 = arith.constant 0 : i32
    %c0_i32_1 = arith.constant 0 : i32
    return %c0_i32, %c0_i32_0 : i32, i32
  }
  func.func @transform_6(%arg0: i32) -> (i32, i32) {
    %c0_i32 = arith.constant 0 : i32
    %c0_i32_0 = arith.constant 0 : i32
    %c0_i32_1 = arith.constant 0 : i32
    return %c0_i32, %c0_i32_0 : i32, i32
  }
  func.func @transform_7(%arg0: i32) -> (i32, i32) {
    %c0_i32 = arith.constant 0 : i32
    %c0_i32_0 = arith.constant 0 : i32
    %c0_i32_1 = arith.constant 0 : i32
    return %c0_i32, %c0_i32_0 : i32, i32
  }
  func.func @transform_8(%arg0: i32) -> (i32, i32) {
    %c0_i32 = arith.constant 0 : i32
    %c0_i32_0 = arith.constant 0 : i32
    %c0_i32_1 = arith.constant 0 : i32
    return %c0_i32, %c0_i32_0 : i32, i32
  }
  func.func @transform_9(%arg0: i32) -> (i32, i32) {
    %c0_i32 = arith.constant 0 : i32
    %c0_i32_0 = arith.constant 0 : i32
    %c0_i32_1 = arith.constant 0 : i32
    return %c0_i32, %c0_i32_0 : i32, i32
  }
  func.func @transform_10(%arg0: i32) -> (i32, i32) {
    %c0_i32 = arith.constant 0 : i32
    %c0_i32_0 = arith.constant 0 : i32
    %c0_i32_1 = arith.constant 0 : i32
    return %c0_i32, %c0_i32_0 : i32, i32
  }
  func.func @transform_11(%arg0: i32) -> (i32, i32) {
    %c0_i32 = arith.constant 0 : i32
    %c0_i32_0 = arith.constant 0 : i32
    %c0_i32_1 = arith.constant 0 : i32
    return %c0_i32, %c0_i32_0 : i32, i32
  }
  func.func @transform_12(%arg0: i32) -> (i32, i32) {
    %c0_i32 = arith.constant 0 : i32
    %c0_i32_0 = arith.constant 0 : i32
    %c0_i32_1 = arith.constant 0 : i32
    return %c0_i32, %c0_i32_0 : i32, i32
  }
  func.func @transform_13(%arg0: i32) -> (i32, i32) {
    %c0_i32 = arith.constant 0 : i32
    %c0_i32_0 = arith.constant 0 : i32
    %c0_i32_1 = arith.constant 0 : i32
    return %c0_i32, %c0_i32_0 : i32, i32
  }
  func.func @transform_14(%arg0: i32) -> (i32, i32) {
    %c0_i32 = arith.constant 0 : i32
    %c0_i32_0 = arith.constant 0 : i32
    %c0_i32_1 = arith.constant 0 : i32
    return %c0_i32, %c0_i32_0 : i32, i32
  }
  func.func @transform_15(%arg0: i32) -> (i32, i32) {
    %c0_i32 = arith.constant 0 : i32
    %c0_i32_0 = arith.constant 0 : i32
    %c0_i32_1 = arith.constant 0 : i32
    return %c0_i32, %c0_i32_0 : i32, i32
  }
  func.func @transform_16(%arg0: i32) -> (i32, i32) {
    %c0_i32 = arith.constant 0 : i32
    %c0_i32_0 = arith.constant 0 : i32
    return %arg0, %c0_i32 : i32, i32
  }
}

</mosaic_0001>

<llo_original>
// kernel: tpu_custom_call.1
$region0: #{tpu_custom_call.1}
  #allocation0 [shape = 'u32[]', space=smem, size = 0x4, offset = 0x4, fixed_abs, tag = 'smem constant byte address 0x4 - core index']
  #allocation1 [shape = 'u32[72,128]{1,0:T(1,128)}', space=vmem, size = 0x9000, scoped, tag = 'internal scratch']
  %s0 = inlined_call_operand.vmem [shape: f32[1024,16], index: 0, kind: input, shape index: {}]
  %s1 = inlined_call_operand.vmem [shape: f32[1024,16], index: 1, kind: input, shape index: {}]
  %s2 = inlined_call_operand.vmem [shape: f32[1,16], index: 2, kind: input, shape index: {}]
  %s3 = inlined_call_operand.vmem [shape: f32[1,16], index: 3, kind: input, shape index: {}]
  %s4 = inlined_call_operand.vmem [shape: f32[1,16], index: 4, kind: input, shape index: {}]
  %s5 = inlined_call_operand.vmem [shape: f32[1,16], index: 5, kind: input, shape index: {}]
  %s6 = inlined_call_operand.vmem [shape: f32[16,32], index: 6, kind: input, shape index: {}]
  %s7 = inlined_call_operand.vmem [shape: f32[16,32], index: 7, kind: input, shape index: {}]
  %s8 = inlined_call_operand.vmem [shape: f32[1,32], index: 8, kind: input, shape index: {}]
  %s9 = inlined_call_operand.vmem [shape: f32[1,32], index: 9, kind: input, shape index: {}]
  %s10 = inlined_call_operand.vmem [shape: f32[32,32], index: 10, kind: input, shape index: {}]
  %s11 = inlined_call_operand.vmem [shape: f32[1,32], index: 11, kind: input, shape index: {}]
  %s12 = inlined_call_operand.vmem [shape: f32[1,32], index: 12, kind: input, shape index: {}]
  %s13 = inlined_call_operand.vmem [shape: f32[32,4], index: 13, kind: input, shape index: {}]
  %s14 = inlined_call_operand.vmem [shape: f32[1,4], index: 14, kind: input, shape index: {}]
  %s15 = inlined_call_operand.vmem [shape: f32[1,4], index: 15, kind: input, shape index: {}]
  %s16 = inlined_call_operand.vmem [shape: f32[1024,4], index: 16, kind: output, shape index: {}]
  %s17 = sld [smem:[#allocation0]]
  $region97: #{tpu_custom_call.1} parent=0
    _
  %s19 = ssub.s32 1, %s17
  %s20 = scalar_select 0, %s19, %s17
  loop: start=0, step=1, limit=4
  $region2: #{tpu_custom_call.1} parent=0 // loop_pre_header
    _
  $region3: #{tpu_custom_call.1} parent=0 // loop_header
    %s22 = sphi 0, %s26
    %p23 = scmp.ge.s32.totalorder %s22, 4
    %s32 = sphi 0, %s34
    %s35 = sphi 0, %s32
    %s36 = sphi 0, %s35
    %s52 = sphi 0, %s36
    %s58 = sphi 0, %s60
    %s61 = sphi 0, %s58
    %s62 = sphi 0, %s61
    %s78 = sphi 0, %s62
    %s82 = sphi 0, %s82
    %s84 = sphi 0, %s82
    %s85 = sphi 0, %s84
    %s99 = sphi 0, %s85
    %s103 = sphi 0, %s103
    %s105 = sphi 0, %s103
    %s106 = sphi 0, %s105
    %s120 = sphi 0, %s106
    %s124 = sphi 0, %s124
    %s126 = sphi 0, %s124
    %s127 = sphi 0, %s126
    %s141 = sphi 0, %s127
    %s145 = sphi 0, %s145
    %s147 = sphi 0, %s145
    %s148 = sphi 0, %s147
    %s162 = sphi 0, %s148
    %s166 = sphi 0, %s166
    %s168 = sphi 0, %s166
    %s169 = sphi 0, %s168
    %s183 = sphi 0, %s169
    %s187 = sphi 0, %s187
    %s189 = sphi 0, %s187
    %s190 = sphi 0, %s189
    %s204 = sphi 0, %s190
    %s208 = sphi 0, %s208
    %s210 = sphi 0, %s208
    %s211 = sphi 0, %s210
    %s225 = sphi 0, %s211
    %s229 = sphi 0, %s229
    %s231 = sphi 0, %s229
    %s232 = sphi 0, %s231
    %s246 = sphi 0, %s232
    %s250 = sphi 0, %s250
    %s252 = sphi 0, %s250
    %s253 = sphi 0, %s252
    %s267 = sphi 0, %s253
    %s271 = sphi 0, %s271
    %s273 = sphi 0, %s271
    %s274 = sphi 0, %s273
    %s288 = sphi 0, %s274
    %s292 = sphi 0, %s292
    %s294 = sphi 0, %s292
    %s295 = sphi 0, %s294
    %s309 = sphi 0, %s295
    %s313 = sphi 0, %s313
    %s315 = sphi 0, %s313
    %s316 = sphi 0, %s315
    %s330 = sphi 0, %s316
    %s334 = sphi 0, %s334
    %s336 = sphi 0, %s334
    %s337 = sphi 0, %s336
    %s351 = sphi 0, %s337
    %s355 = sphi 0, %s355
    %s357 = sphi 0, %s355
    %s358 = sphi 0, %s357
    %s372 = sphi 0, %s358
    %s378 = sphi 0, %s380
    %s381 = sphi 0, %s378
    %s382 = sphi 0, %s381
    %s398 = sphi 0, %s382
  $region4: #{tpu_custom_call.1} parent=0 // loop_header_branch
    %25 = sbr.rel (%p23) target = $region8
  $region5: #{tpu_custom_call.1} parent=0 // loop_body
    %s27 = ssub.s32 %s22, 1
    %s28 = ssub.s32 %s22, 2
    %s29 = sadd.s32 %s22, 1
    %s30 = ssub.s32 %s22, %s29
    %p31 = scmp.eq.s32.totalorder %s30, 0
    %s33 = sadd.s32 %s32, 1
    %s34 = scalar_select %p31, %s32, %s33
    %p37 = pneg %p31
    %p38 = scmp.eq.s32.totalorder %s22, 1
    %p39 = por %p37, %p38
    %p40 = scmp.ne.s32.totalorder %s32, %s35
    %p41 = scmp.eq.s32.totalorder %s22, 0
    %p42 = por %p40, %p41
    %p43 = scmp.ne.s32.totalorder %s32, %s35
    %p44 = scmp.eq.s32.totalorder %s27, 1
    %p45 = por %p43, %p44
    %p46 = scmp.ne.s32.totalorder %s35, %s36
    %p47 = scmp.eq.s32.totalorder %s27, 0
    %p48 = por %p46, %p47
    %p49 = scmp.ne.s32.totalorder %s35, %s36
    %p50 = scmp.eq.s32.totalorder %s28, 1
    %p51 = por %p49, %p50
    %p53 = scmp.ne.s32.totalorder %s36, %s52
    %p54 = scmp.eq.s32.totalorder %s28, 0
    %p55 = por %p53, %p54
    %s56 = ssub.s32 %s22, %s29
    %p57 = scmp.eq.s32.totalorder %s56, 0
    %s59 = sadd.s32 %s58, 1
    %s60 = scalar_select %p57, %s58, %s59
    %p63 = pneg %p57
    %p64 = scmp.eq.s32.totalorder %s22, 1
    %p65 = por %p63, %p64
    %p66 = scmp.ne.s32.totalorder %s58, %s61
    %p67 = scmp.eq.s32.totalorder %s22, 0
    %p68 = por %p66, %p67
    %p69 = scmp.ne.s32.totalorder %s58, %s61
    %p70 = scmp.eq.s32.totalorder %s27, 1
    %p71 = por %p69, %p70
    %p72 = scmp.ne.s32.totalorder %s61, %s62
    %p73 = scmp.eq.s32.totalorder %s27, 0
    %p74 = por %p72, %p73
    %p75 = scmp.ne.s32.totalorder %s61, %s62
    %p76 = scmp.eq.s32.totalorder %s28, 1
    %p77 = por %p75, %p76
    %p79 = scmp.ne.s32.totalorder %s62, %s78
    %p80 = scmp.eq.s32.totalorder %s28, 0
    %p81 = por %p79, %p80
    %s83 = sadd.s32 %s82, 1
    %p86 = scmp.eq.s32.totalorder %s22, 1
    %p87 = scmp.ne.s32.totalorder %s82, %s84
    %p88 = scmp.eq.s32.totalorder %s22, 0
    %p89 = por %p87, %p88
    %p90 = scmp.ne.s32.totalorder %s82, %s84
    %p91 = scmp.eq.s32.totalorder %s27, 1
    %p92 = por %p90, %p91
    %p93 = scmp.ne.s32.totalorder %s84, %s85
    %p94 = scmp.eq.s32.totalorder %s27, 0
    %p95 = por %p93, %p94
    %p96 = scmp.ne.s32.totalorder %s84, %s85
    %p97 = scmp.eq.s32.totalorder %s28, 1
    %p98 = por %p96, %p97
    %p100 = scmp.ne.s32.totalorder %s85, %s99
    %p101 = scmp.eq.s32.totalorder %s28, 0
    %p102 = por %p100, %p101
    %s104 = sadd.s32 %s103, 1
    %p107 = scmp.eq.s32.totalorder %s22, 1
    %p108 = scmp.ne.s32.totalorder %s103, %s105
    %p109 = scmp.eq.s32.totalorder %s22, 0
    %p110 = por %p108, %p109
    %p111 = scmp.ne.s32.totalorder %s103, %s105
    %p112 = scmp.eq.s32.totalorder %s27, 1
    %p113 = por %p111, %p112
    %p114 = scmp.ne.s32.totalorder %s105, %s106
    %p115 = scmp.eq.s32.totalorder %s27, 0
    %p116 = por %p114, %p115
    %p117 = scmp.ne.s32.totalorder %s105, %s106
    %p118 = scmp.eq.s32.totalorder %s28, 1
    %p119 = por %p117, %p118
    %p121 = scmp.ne.s32.totalorder %s106, %s120
    %p122 = scmp.eq.s32.totalorder %s28, 0
    %p123 = por %p121, %p122
    %s125 = sadd.s32 %s124, 1
    %p128 = scmp.eq.s32.totalorder %s22, 1
    %p129 = scmp.ne.s32.totalorder %s124, %s126
    %p130 = scmp.eq.s32.totalorder %s22, 0
    %p131 = por %p129, %p130
    %p132 = scmp.ne.s32.totalorder %s124, %s126
    %p133 = scmp.eq.s32.totalorder %s27, 1
    %p134 = por %p132, %p133
    %p135 = scmp.ne.s32.totalorder %s126, %s127
    %p136 = scmp.eq.s32.totalorder %s27, 0
    %p137 = por %p135, %p136
    %p138 = scmp.ne.s32.totalorder %s126, %s127
    %p139 = scmp.eq.s32.totalorder %s28, 1
    %p140 = por %p138, %p139
    %p142 = scmp.ne.s32.totalorder %s127, %s141
    %p143 = scmp.eq.s32.totalorder %s28, 0
    %p144 = por %p142, %p143
    %s146 = sadd.s32 %s145, 1
    %p149 = scmp.eq.s32.totalorder %s22, 1
    %p150 = scmp.ne.s32.totalorder %s145, %s147
    %p151 = scmp.eq.s32.totalorder %s22, 0
    %p152 = por %p150, %p151
    %p153 = scmp.ne.s32.totalorder %s145, %s147
    %p154 = scmp.eq.s32.totalorder %s27, 1
    %p155 = por %p153, %p154
    %p156 = scmp.ne.s32.totalorder %s147, %s148
    %p157 = scmp.eq.s32.totalorder %s27, 0
    %p158 = por %p156, %p157
    %p159 = scmp.ne.s32.totalorder %s147, %s148
    %p160 = scmp.eq.s32.totalorder %s28, 1
    %p161 = por %p159, %p160
    %p163 = scmp.ne.s32.totalorder %s148, %s162
    %p164 = scmp.eq.s32.totalorder %s28, 0
    %p165 = por %p163, %p164
    %s167 = sadd.s32 %s166, 1
    %p170 = scmp.eq.s32.totalorder %s22, 1
    %p171 = scmp.ne.s32.totalorder %s166, %s168
    %p172 = scmp.eq.s32.totalorder %s22, 0
    %p173 = por %p171, %p172
    %p174 = scmp.ne.s32.totalorder %s166, %s168
    %p175 = scmp.eq.s32.totalorder %s27, 1
    %p176 = por %p174, %p175
    %p177 = scmp.ne.s32.totalorder %s168, %s169
    %p178 = scmp.eq.s32.totalorder %s27, 0
    %p179 = por %p177, %p178
    %p180 = scmp.ne.s32.totalorder %s168, %s169
    %p181 = scmp.eq.s32.totalorder %s28, 1
    %p182 = por %p180, %p181
    %p184 = scmp.ne.s32.totalorder %s169, %s183
    %p185 = scmp.eq.s32.totalorder %s28, 0
    %p186 = por %p184, %p185
    %s188 = sadd.s32 %s187, 1
    %p191 = scmp.eq.s32.totalorder %s22, 1
    %p192 = scmp.ne.s32.totalorder %s187, %s189
    %p193 = scmp.eq.s32.totalorder %s22, 0
    %p194 = por %p192, %p193
    %p195 = scmp.ne.s32.totalorder %s187, %s189
    %p196 = scmp.eq.s32.totalorder %s27, 1
    %p197 = por %p195, %p196
    %p198 = scmp.ne.s32.totalorder %s189, %s190
    %p199 = scmp.eq.s32.totalorder %s27, 0
    %p200 = por %p198, %p199
    %p201 = scmp.ne.s32.totalorder %s189, %s190
    %p202 = scmp.eq.s32.totalorder %s28, 1
    %p203 = por %p201, %p202
    %p205 = scmp.ne.s32.totalorder %s190, %s204
    %p206 = scmp.eq.s32.totalorder %s28, 0
    %p207 = por %p205, %p206
    %s209 = sadd.s32 %s208, 1
    %p212 = scmp.eq.s32.totalorder %s22, 1
    %p213 = scmp.ne.s32.totalorder %s208, %s210
    %p214 = scmp.eq.s32.totalorder %s22, 0
    %p215 = por %p213, %p214
    %p216 = scmp.ne.s32.totalorder %s208, %s210
    %p217 = scmp.eq.s32.totalorder %s27, 1
    %p218 = por %p216, %p217
    %p219 = scmp.ne.s32.totalorder %s210, %s211
    %p220 = scmp.eq.s32.totalorder %s27, 0
    %p221 = por %p219, %p220
    %p222 = scmp.ne.s32.totalorder %s210, %s211
    %p223 = scmp.eq.s32.totalorder %s28, 1
    %p224 = por %p222, %p223
    %p226 = scmp.ne.s32.totalorder %s211, %s225
    %p227 = scmp.eq.s32.totalorder %s28, 0
    %p228 = por %p226, %p227
    %s230 = sadd.s32 %s229, 1
    %p233 = scmp.eq.s32.totalorder %s22, 1
    %p234 = scmp.ne.s32.totalorder %s229, %s231
    %p235 = scmp.eq.s32.totalorder %s22, 0
    %p236 = por %p234, %p235
    %p237 = scmp.ne.s32.totalorder %s229, %s231
    %p238 = scmp.eq.s32.totalorder %s27, 1
    %p239 = por %p237, %p238
    %p240 = scmp.ne.s32.totalorder %s231, %s232
    %p241 = scmp.eq.s32.totalorder %s27, 0
    %p242 = por %p240, %p241
    %p243 = scmp.ne.s32.totalorder %s231, %s232
    %p244 = scmp.eq.s32.totalorder %s28, 1
    %p245 = por %p243, %p244
    %p247 = scmp.ne.s32.totalorder %s232, %s246
    %p248 = scmp.eq.s32.totalorder %s28, 0
    %p249 = por %p247, %p248
    %s251 = sadd.s32 %s250, 1
    %p254 = scmp.eq.s32.totalorder %s22, 1
    %p255 = scmp.ne.s32.totalorder %s250, %s252
    %p256 = scmp.eq.s32.totalorder %s22, 0
    %p257 = por %p255, %p256
    %p258 = scmp.ne.s32.totalorder %s250, %s252
    %p259 = scmp.eq.s32.totalorder %s27, 1
    %p260 = por %p258, %p259
    %p261 = scmp.ne.s32.totalorder %s252, %s253
    %p262 = scmp.eq.s32.totalorder %s27, 0
    %p263 = por %p261, %p262
    %p264 = scmp.ne.s32.totalorder %s252, %s253
    %p265 = scmp.eq.s32.totalorder %s28, 1
    %p266 = por %p264, %p265
    %p268 = scmp.ne.s32.totalorder %s253, %s267
    %p269 = scmp.eq.s32.totalorder %s28, 0
    %p270 = por %p268, %p269
    %s272 = sadd.s32 %s271, 1
    %p275 = scmp.eq.s32.totalorder %s22, 1
    %p276 = scmp.ne.s32.totalorder %s271, %s273
    %p277 = scmp.eq.s32.totalorder %s22, 0
    %p278 = por %p276, %p277
    %p279 = scmp.ne.s32.totalorder %s271, %s273
    %p280 = scmp.eq.s32.totalorder %s27, 1
    %p281 = por %p279, %p280
    %p282 = scmp.ne.s32.totalorder %s273, %s274
    %p283 = scmp.eq.s32.totalorder %s27, 0
    %p284 = por %p282, %p283
    %p285 = scmp.ne.s32.totalorder %s273, %s274
    %p286 = scmp.eq.s32.totalorder %s28, 1
    %p287 = por %p285, %p286
    %p289 = scmp.ne.s32.totalorder %s274, %s288
    %p290 = scmp.eq.s32.totalorder %s28, 0
    %p291 = por %p289, %p290
    %s293 = sadd.s32 %s292, 1
    %p296 = scmp.eq.s32.totalorder %s22, 1
    %p297 = scmp.ne.s32.totalorder %s292, %s294
    %p298 = scmp.eq.s32.totalorder %s22, 0
    %p299 = por %p297, %p298
    %p300 = scmp.ne.s32.totalorder %s292, %s294
    %p301 = scmp.eq.s32.totalorder %s27, 1
    %p302 = por %p300, %p301
    %p303 = scmp.ne.s32.totalorder %s294, %s295
    %p304 = scmp.eq.s32.totalorder %s27, 0
    %p305 = por %p303, %p304
    %p306 = scmp.ne.s32.totalorder %s294, %s295
    %p307 = scmp.eq.s32.totalorder %s28, 1
    %p308 = por %p306, %p307
    %p310 = scmp.ne.s32.totalorder %s295, %s309
    %p311 = scmp.eq.s32.totalorder %s28, 0
    %p312 = por %p310, %p311
    %s314 = sadd.s32 %s313, 1
    %p317 = scmp.eq.s32.totalorder %s22, 1
    %p318 = scmp.ne.s32.totalorder %s313, %s315
    %p319 = scmp.eq.s32.totalorder %s22, 0
    %p320 = por %p318, %p319
    %p321 = scmp.ne.s32.totalorder %s313, %s315
    %p322 = scmp.eq.s32.totalorder %s27, 1
    %p323 = por %p321, %p322
    %p324 = scmp.ne.s32.totalorder %s315, %s316
    %p325 = scmp.eq.s32.totalorder %s27, 0
    %p326 = por %p324, %p325
    %p327 = scmp.ne.s32.totalorder %s315, %s316
    %p328 = scmp.eq.s32.totalorder %s28, 1
    %p329 = por %p327, %p328
    %p331 = scmp.ne.s32.totalorder %s316, %s330
    %p332 = scmp.eq.s32.totalorder %s28, 0
    %p333 = por %p331, %p332
    %s335 = sadd.s32 %s334, 1
    %p338 = scmp.eq.s32.totalorder %s22, 1
    %p339 = scmp.ne.s32.totalorder %s334, %s336
    %p340 = scmp.eq.s32.totalorder %s22, 0
    %p341 = por %p339, %p340
    %p342 = scmp.ne.s32.totalorder %s334, %s336
    %p343 = scmp.eq.s32.totalorder %s27, 1
    %p344 = por %p342, %p343
    %p345 = scmp.ne.s32.totalorder %s336, %s337
    %p346 = scmp.eq.s32.totalorder %s27, 0
    %p347 = por %p345, %p346
    %p348 = scmp.ne.s32.totalorder %s336, %s337
    %p349 = scmp.eq.s32.totalorder %s28, 1
    %p350 = por %p348, %p349
    %p352 = scmp.ne.s32.totalorder %s337, %s351
    %p353 = scmp.eq.s32.totalorder %s28, 0
    %p354 = por %p352, %p353
    %s356 = sadd.s32 %s355, 1
    %p359 = scmp.eq.s32.totalorder %s22, 1
    %p360 = scmp.ne.s32.totalorder %s355, %s357
    %p361 = scmp.eq.s32.totalorder %s22, 0
    %p362 = por %p360, %p361
    %p363 = scmp.ne.s32.totalorder %s355, %s357
    %p364 = scmp.eq.s32.totalorder %s27, 1
    %p365 = por %p363, %p364
    %p366 = scmp.ne.s32.totalorder %s357, %s358
    %p367 = scmp.eq.s32.totalorder %s27, 0
    %p368 = por %p366, %p367
    %p369 = scmp.ne.s32.totalorder %s357, %s358
    %p370 = scmp.eq.s32.totalorder %s28, 1
    %p371 = por %p369, %p370
    %p373 = scmp.ne.s32.totalorder %s358, %s372
    %p374 = scmp.eq.s32.totalorder %s28, 0
    %p375 = por %p373, %p374
    %s376 = ssub.s32 %s22, %s29
    %p377 = scmp.eq.s32.totalorder %s376, 0
    %s379 = sadd.s32 %s378, 1
    %s380 = scalar_select %p377, %s378, %s379
    %p383 = pneg %p377
    %p384 = scmp.eq.s32.totalorder %s22, 1
    %p385 = por %p383, %p384
    %p386 = scmp.ne.s32.totalorder %s378, %s381
    %p387 = scmp.eq.s32.totalorder %s22, 0
    %p388 = por %p386, %p387
    %p389 = scmp.ne.s32.totalorder %s378, %s381
    %p390 = scmp.eq.s32.totalorder %s27, 1
    %p391 = por %p389, %p390
    %p392 = scmp.ne.s32.totalorder %s381, %s382
    %p393 = scmp.eq.s32.totalorder %s27, 0
    %p394 = por %p392, %p393
    %p395 = scmp.ne.s32.totalorder %s381, %s382
    %p396 = scmp.eq.s32.totalorder %s28, 1
    %p397 = por %p395, %p396
    %p399 = scmp.ne.s32.totalorder %s382, %s398
    %p400 = scmp.eq.s32.totalorder %s28, 0
    %p401 = por %p399, %p400
    %p402 = scmp.le.s32.totalorder 1, %s22
    %p403 = scmp.lt.s32.totalorder %s22, 3
    %p404 = pnand %p402, %p403
    %p405 = pneg %p404
    // Predicated region
    $region9: #{tpu_custom_call.1} parent=5 // pred_check
      _
    $region10: #{tpu_custom_call.1} parent=5 // pred_check_branch
      %407 = sbr.rel (%p404) target = $region12
    $region11: #{tpu_custom_call.1} parent=5 // pred_region
      %s408 = ssub.s32 %s22, 1
      // Predicated region
      $region13: #{tpu_custom_call.1} parent=11 // pred_check
        %p409 = pneg %p95
      $region14: #{tpu_custom_call.1} parent=11 // pred_check_branch
        %411 = sbr.rel (%p409) target = $region16
      $region15: #{tpu_custom_call.1} parent=11 // pred_region
        _
      $region16: #{tpu_custom_call.1} parent=11 // pred_fallthru
        _
      // Predicated region
      $region17: #{tpu_custom_call.1} parent=11 // pred_check
        %p412 = pneg %p116
      $region18: #{tpu_custom_call.1} parent=11 // pred_check_branch
        %414 = sbr.rel (%p412) target = $region20
      $region19: #{tpu_custom_call.1} parent=11 // pred_region
        _
      $region20: #{tpu_custom_call.1} parent=11 // pred_fallthru
        _
      // Predicated region
      $region21: #{tpu_custom_call.1} parent=11 // pred_check
        %p415 = pneg %p137
      $region22: #{tpu_custom_call.1} parent=11 // pred_check_branch
        %417 = sbr.rel (%p415) target = $region24
      $region23: #{tpu_custom_call.1} parent=11 // pred_region
        _
      $region24: #{tpu_custom_call.1} parent=11 // pred_fallthru
        _
      // Predicated region
      $region25: #{tpu_custom_call.1} parent=11 // pred_check
        %p418 = pneg %p158
      $region26: #{tpu_custom_call.1} parent=11 // pred_check_branch
        %420 = sbr.rel (%p418) target = $region28
      $region27: #{tpu_custom_call.1} parent=11 // pred_region
        _
      $region28: #{tpu_custom_call.1} parent=11 // pred_fallthru
        _
      // Predicated region
      $region29: #{tpu_custom_call.1} parent=11 // pred_check
        %p421 = pneg %p179
      $region30: #{tpu_custom_call.1} parent=11 // pred_check_branch
        %423 = sbr.rel (%p421) target = $region32
      $region31: #{tpu_custom_call.1} parent=11 // pred_region
        _
      $region32: #{tpu_custom_call.1} parent=11 // pred_fallthru
        _
      // Predicated region
      $region33: #{tpu_custom_call.1} parent=11 // pred_check
        %p424 = pneg %p200
      $region34: #{tpu_custom_call.1} parent=11 // pred_check_branch
        %426 = sbr.rel (%p424) target = $region36
      $region35: #{tpu_custom_call.1} parent=11 // pred_region
        _
      $region36: #{tpu_custom_call.1} parent=11 // pred_fallthru
        _
      // Predicated region
      $region37: #{tpu_custom_call.1} parent=11 // pred_check
        %p427 = pneg %p221
      $region38: #{tpu_custom_call.1} parent=11 // pred_check_branch
        %429 = sbr.rel (%p427) target = $region40
      $region39: #{tpu_custom_call.1} parent=11 // pred_region
        _
      $region40: #{tpu_custom_call.1} parent=11 // pred_fallthru
        _
      // Predicated region
      $region41: #{tpu_custom_call.1} parent=11 // pred_check
        %p430 = pneg %p242
      $region42: #{tpu_custom_call.1} parent=11 // pred_check_branch
        %432 = sbr.rel (%p430) target = $region44
      $region43: #{tpu_custom_call.1} parent=11 // pred_region
        _
      $region44: #{tpu_custom_call.1} parent=11 // pred_fallthru
        _
      // Predicated region
      $region45: #{tpu_custom_call.1} parent=11 // pred_check
        %p433 = pneg %p263
      $region46: #{tpu_custom_call.1} parent=11 // pred_check_branch
        %435 = sbr.rel (%p433) target = $region48
      $region47: #{tpu_custom_call.1} parent=11 // pred_region
        _
      $region48: #{tpu_custom_call.1} parent=11 // pred_fallthru
        _
      // Predicated region
      $region49: #{tpu_custom_call.1} parent=11 // pred_check
        %p436 = pneg %p284
      $region50: #{tpu_custom_call.1} parent=11 // pred_check_branch
        %438 = sbr.rel (%p436) target = $region52
      $region51: #{tpu_custom_call.1} parent=11 // pred_region
        _
      $region52: #{tpu_custom_call.1} parent=11 // pred_fallthru
        _
      // Predicated region
      $region53: #{tpu_custom_call.1} parent=11 // pred_check
        %p439 = pneg %p305
      $region54: #{tpu_custom_call.1} parent=11 // pred_check_branch
        %441 = sbr.rel (%p439) target = $region56
      $region55: #{tpu_custom_call.1} parent=11 // pred_region
        _
      $region56: #{tpu_custom_call.1} parent=11 // pred_fallthru
        _
      // Predicated region
      $region57: #{tpu_custom_call.1} parent=11 // pred_check
        %p442 = pneg %p326
      $region58: #{tpu_custom_call.1} parent=11 // pred_check_branch
        %444 = sbr.rel (%p442) target = $region60
      $region59: #{tpu_custom_call.1} parent=11 // pred_region
        _
      $region60: #{tpu_custom_call.1} parent=11 // pred_fallthru
        _
      // Predicated region
      $region61: #{tpu_custom_call.1} parent=11 // pred_check
        %p445 = pneg %p347
      $region62: #{tpu_custom_call.1} parent=11 // pred_check_branch
        %447 = sbr.rel (%p445) target = $region64
      $region63: #{tpu_custom_call.1} parent=11 // pred_region
        _
      $region64: #{tpu_custom_call.1} parent=11 // pred_fallthru
        _
      // Predicated region
      $region65: #{tpu_custom_call.1} parent=11 // pred_check
        %p448 = pneg %p368
      $region66: #{tpu_custom_call.1} parent=11 // pred_check_branch
        %450 = sbr.rel (%p448) target = $region68
      $region67: #{tpu_custom_call.1} parent=11 // pred_region
        _
      $region68: #{tpu_custom_call.1} parent=11 // pred_fallthru
        _
    $region12: #{tpu_custom_call.1} parent=5 // pred_fallthru
      _
    %p451 = scmp.lt.s32.totalorder %s22, 2
    // Predicated region
    $region69: #{tpu_custom_call.1} parent=5 // pred_check
      %p452 = pneg %p451
    $region70: #{tpu_custom_call.1} parent=5 // pred_check_branch
      %454 = sbr.rel (%p452) target = $region72
    $region71: #{tpu_custom_call.1} parent=5 // pred_region
      // Predicated region
      $region73: #{tpu_custom_call.1} parent=71 // pred_check
        %p455 = pneg %p42
      $region74: #{tpu_custom_call.1} parent=71 // pred_check_branch
        %457 = sbr.rel (%p455) target = $region76
      $region75: #{tpu_custom_call.1} parent=71 // pred_region
        %s458 = smul.u32 64, %s22
        %p459 = scmp.lt.s32.totalorder %s458, 127
        %s460 = scalar_select %p459, %s458, 127
        %s461 = smul.addr %s460, 8
        %s462 = scalar_lea.vmem %s0, %s461
        %s463 = smul.u32 64, %s22
      $region76: #{tpu_custom_call.1} parent=71 // pred_fallthru
        _
      // Predicated region
      $region77: #{tpu_custom_call.1} parent=71 // pred_check
        %p464 = pneg %p68
      $region78: #{tpu_custom_call.1} parent=71 // pred_check_branch
        %466 = sbr.rel (%p464) target = $region80
      $region79: #{tpu_custom_call.1} parent=71 // pred_region
        %s467 = smul.u32 64, %s22
        %p468 = scmp.lt.s32.totalorder %s467, 127
        %s469 = scalar_select %p468, %s467, 127
        %s470 = smul.addr %s469, 8
        %s471 = scalar_lea.vmem %s1, %s470
        %s472 = smul.u32 64, %s22
      $region80: #{tpu_custom_call.1} parent=71 // pred_fallthru
        _
    $region72: #{tpu_custom_call.1} parent=5 // pred_fallthru
      _
    %p473 = scmp.le.s32.totalorder 1, %s22
    %p474 = scmp.lt.s32.totalorder %s22, 3
    %p475 = pnand %p473, %p474
    %p476 = pneg %p475
    // Predicated region
    $region81: #{tpu_custom_call.1} parent=5 // pred_check
      _
    $region82: #{tpu_custom_call.1} parent=5 // pred_check_branch
      %478 = sbr.rel (%p475) target = $region84
    $region83: #{tpu_custom_call.1} parent=5 // pred_region
      %s479 = ssub.s32 %s22, 1
      %s480 = smul.u32 64, %s27
      %p481 = scmp.lt.s32.totalorder %s480, 127
      %s482 = scalar_select %p481, %s480, 127
      %s483 = smul.addr %s482, 8
      %s484 = scalar_lea.vmem %s0, %s483
      %p485 = pneg %p48
      %p486 = pneg %p45
      %s487 = smul.u32 64, %s27
      %p488 = scmp.lt.s32.totalorder %s487, 127
      %s489 = scalar_select %p488, %s487, 127
      %s490 = smul.addr %s489, 8
      %s491 = scalar_lea.vmem %s1, %s490
      %p492 = pneg %p74
      %p493 = pneg %p71
      %p494 = pneg %p95
      %p495 = pneg %p92
      %p496 = pneg %p116
      %p497 = pneg %p113
      %p498 = pneg %p137
      %p499 = pneg %p134
      %p500 = pneg %p158
      %p501 = pneg %p155
      %p502 = pneg %p179
      %p503 = pneg %p176
      %p504 = pneg %p200
      %p505 = pneg %p197
      %p506 = pneg %p221
      %p507 = pneg %p218
      %p508 = pneg %p242
      %p509 = pneg %p239
      %p510 = pneg %p263
      %p511 = pneg %p260
      %p512 = pneg %p284
      %p513 = pneg %p281
      %p514 = pneg %p305
      %p515 = pneg %p302
      %p516 = pneg %p326
      %p517 = pneg %p323
      %p518 = pneg %p347
      %p519 = pneg %p344
      %p520 = pneg %p368
      %p521 = pneg %p365
      %p522 = pneg %p394
      %p523 = pneg %p391
      %s524 = smul.u32 64, %s27
      %p525 = scmp.lt.s32.totalorder %s524, 127
      %s526 = scalar_select %p525, %s524, 127
      %s527 = smul.addr %s526, 8
      %s528 = scalar_lea.vmem %s16, %s527
      %s529 = smul.u32 64, %s27
      %p530 = scmp.lt.s32.totalorder %s529, 127
      %s531 = scalar_select %p530, %s529, 127
      %s532 = smul.addr %s531, 8
      %s533 = scalar_lea.vmem %s0, %s532
      %s534 = smul.u32 64, %s27
      %s535 = smul.u32 64, %s27
      %p536 = scmp.lt.s32.totalorder %s535, 127
      %s537 = scalar_select %p536, %s535, 127
      %s538 = smul.addr %s537, 8
      %s539 = scalar_lea.vmem %s1, %s538
      %s540 = smul.u32 64, %s27
      %s541 = smul.u32 64, %s27
      %p542 = scmp.lt.s32.totalorder %s541, 127
      %s543 = scalar_select %p542, %s541, 127
      %s544 = smul.addr %s543, 8
      %s545 = scalar_lea.vmem %s16, %s544
      %s546 = smul.u32 64, %s27
      %v547 = vld [vmem:[%s533] sm:$0xff]
      %v548 = vld [vmem:[%s533 + $0x8] sm:$0xff]
      %v549 = vld [vmem:[%s533 + $0x10] sm:$0xff]
      %v550 = vld [vmem:[%s533 + $0x18] sm:$0xff]
      %v551 = vld [vmem:[%s533 + $0x20] sm:$0xff]
      %v552 = vld [vmem:[%s533 + $0x28] sm:$0xff]
      %v553 = vld [vmem:[%s533 + $0x30] sm:$0xff]
      %v554 = vld [vmem:[%s533 + $0x38] sm:$0xff]
      %v555 = vld [vmem:[%s533 + $0x40] sm:$0xff]
      %v556 = vld [vmem:[%s533 + $0x48] sm:$0xff]
      %v557 = vld [vmem:[%s533 + $0x50] sm:$0xff]
      %v558 = vld [vmem:[%s533 + $0x58] sm:$0xff]
      %v559 = vld [vmem:[%s533 + $0x60] sm:$0xff]
      %v560 = vld [vmem:[%s533 + $0x68] sm:$0xff]
      %v561 = vld [vmem:[%s533 + $0x70] sm:$0xff]
      %v562 = vld [vmem:[%s533 + $0x78] sm:$0xff]
      %v563 = vld [vmem:[%s533 + $0x80] sm:$0xff]
      %v564 = vld [vmem:[%s533 + $0x88] sm:$0xff]
      %v565 = vld [vmem:[%s533 + $0x90] sm:$0xff]
      %v566 = vld [vmem:[%s533 + $0x98] sm:$0xff]
      %v567 = vld [vmem:[%s533 + $0xa0] sm:$0xff]
      %v568 = vld [vmem:[%s533 + $0xa8] sm:$0xff]
      %v569 = vld [vmem:[%s533 + $0xb0] sm:$0xff]
      %v570 = vld [vmem:[%s533 + $0xb8] sm:$0xff]
      %v571 = vld [vmem:[%s533 + $0xc0] sm:$0xff]
      %v572 = vld [vmem:[%s533 + $0xc8] sm:$0xff]
      %v573 = vld [vmem:[%s533 + $0xd0] sm:$0xff]
      %v574 = vld [vmem:[%s533 + $0xd8] sm:$0xff]
      %v575 = vld [vmem:[%s533 + $0xe0] sm:$0xff]
      %v576 = vld [vmem:[%s533 + $0xe8] sm:$0xff]
      %v577 = vld [vmem:[%s533 + $0xf0] sm:$0xff]
      %v578 = vld [vmem:[%s533 + $0xf8] sm:$0xff]
      %v579 = vld [vmem:[%s533 + $0x100] sm:$0xff]
      %v580 = vld [vmem:[%s533 + $0x108] sm:$0xff]
      %v581 = vld [vmem:[%s533 + $0x110] sm:$0xff]
      %v582 = vld [vmem:[%s533 + $0x118] sm:$0xff]
      %v583 = vld [vmem:[%s533 + $0x120] sm:$0xff]
      %v584 = vld [vmem:[%s533 + $0x128] sm:$0xff]
      %v585 = vld [vmem:[%s533 + $0x130] sm:$0xff]
      %v586 = vld [vmem:[%s533 + $0x138] sm:$0xff]
      %v587 = vld [vmem:[%s533 + $0x140] sm:$0xff]
      %v588 = vld [vmem:[%s533 + $0x148] sm:$0xff]
      %v589 = vld [vmem:[%s533 + $0x150] sm:$0xff]
      %v590 = vld [vmem:[%s533 + $0x158] sm:$0xff]
      %v591 = vld [vmem:[%s533 + $0x160] sm:$0xff]
      %v592 = vld [vmem:[%s533 + $0x168] sm:$0xff]
      %v593 = vld [vmem:[%s533 + $0x170] sm:$0xff]
      %v594 = vld [vmem:[%s533 + $0x178] sm:$0xff]
      %v595 = vld [vmem:[%s533 + $0x180] sm:$0xff]
      %v596 = vld [vmem:[%s533 + $0x188] sm:$0xff]
      %v597 = vld [vmem:[%s533 + $0x190] sm:$0xff]
      %v598 = vld [vmem:[%s533 + $0x198] sm:$0xff]
      %v599 = vld [vmem:[%s533 + $0x1a0] sm:$0xff]
      %v600 = vld [vmem:[%s533 + $0x1a8] sm:$0xff]
      %v601 = vld [vmem:[%s533 + $0x1b0] sm:$0xff]
      %v602 = vld [vmem:[%s533 + $0x1b8] sm:$0xff]
      %v603 = vld [vmem:[%s533 + $0x1c0] sm:$0xff]
      %v604 = vld [vmem:[%s533 + $0x1c8] sm:$0xff]
      %v605 = vld [vmem:[%s533 + $0x1d0] sm:$0xff]
      %v606 = vld [vmem:[%s533 + $0x1d8] sm:$0xff]
      %v607 = vld [vmem:[%s533 + $0x1e0] sm:$0xff]
      %v608 = vld [vmem:[%s533 + $0x1e8] sm:$0xff]
      %v609 = vld [vmem:[%s533 + $0x1f0] sm:$0xff]
      %v610 = vld [vmem:[%s533 + $0x1f8] sm:$0xff]
      %v611 = vld [vmem:[%s2] sm:$0x1]
      %v613 = vperm.slane %v611, 0
      %v615 = vsub.f32 %v547, %v613
      %v616 = vsub.f32 %v548, %v613
      %v617 = vsub.f32 %v549, %v613
      %v618 = vsub.f32 %v550, %v613
      %v619 = vsub.f32 %v551, %v613
      %v620 = vsub.f32 %v552, %v613
      %v621 = vsub.f32 %v553, %v613
      %v622 = vsub.f32 %v554, %v613
      %v623 = vsub.f32 %v555, %v613
      %v624 = vsub.f32 %v556, %v613
      %v625 = vsub.f32 %v557, %v613
      %v626 = vsub.f32 %v558, %v613
      %v627 = vsub.f32 %v559, %v613
      %v628 = vsub.f32 %v560, %v613
      %v629 = vsub.f32 %v561, %v613
      %v630 = vsub.f32 %v562, %v613
      %v631 = vsub.f32 %v563, %v613
      %v632 = vsub.f32 %v564, %v613
      %v633 = vsub.f32 %v565, %v613
      %v634 = vsub.f32 %v566, %v613
      %v635 = vsub.f32 %v567, %v613
      %v636 = vsub.f32 %v568, %v613
      %v637 = vsub.f32 %v569, %v613
      %v638 = vsub.f32 %v570, %v613
      %v639 = vsub.f32 %v571, %v613
      %v640 = vsub.f32 %v572, %v613
      %v641 = vsub.f32 %v573, %v613
      %v642 = vsub.f32 %v574, %v613
      %v643 = vsub.f32 %v575, %v613
      %v644 = vsub.f32 %v576, %v613
      %v645 = vsub.f32 %v577, %v613
      %v646 = vsub.f32 %v578, %v613
      %v647 = vsub.f32 %v579, %v613
      %v648 = vsub.f32 %v580, %v613
      %v649 = vsub.f32 %v581, %v613
      %v650 = vsub.f32 %v582, %v613
      %v651 = vsub.f32 %v583, %v613
      %v652 = vsub.f32 %v584, %v613
      %v653 = vsub.f32 %v585, %v613
      %v654 = vsub.f32 %v586, %v613
      %v655 = vsub.f32 %v587, %v613
      %v656 = vsub.f32 %v588, %v613
      %v657 = vsub.f32 %v589, %v613
      %v658 = vsub.f32 %v590, %v613
      %v659 = vsub.f32 %v591, %v613
      %v660 = vsub.f32 %v592, %v613
      %v661 = vsub.f32 %v593, %v613
      %v662 = vsub.f32 %v594, %v613
      %v663 = vsub.f32 %v595, %v613
      %v664 = vsub.f32 %v596, %v613
      %v665 = vsub.f32 %v597, %v613
      %v666 = vsub.f32 %v598, %v613
      %v667 = vsub.f32 %v599, %v613
      %v668 = vsub.f32 %v600, %v613
      %v669 = vsub.f32 %v601, %v613
      %v670 = vsub.f32 %v602, %v613
      %v671 = vsub.f32 %v603, %v613
      %v672 = vsub.f32 %v604, %v613
      %v673 = vsub.f32 %v605, %v613
      %v674 = vsub.f32 %v606, %v613
      %v675 = vsub.f32 %v607, %v613
      %v676 = vsub.f32 %v608, %v613
      %v677 = vsub.f32 %v609, %v613
      %v678 = vsub.f32 %v610, %v613
      %v679 = vld [vmem:[%s4] sm:$0x1]
      %v681 = vperm.slane %v679, 0
      %v683 = vmul.f32 %v615, %v681
      %v684 = vmul.f32 %v616, %v681
      %v685 = vmul.f32 %v617, %v681
      %v686 = vmul.f32 %v618, %v681
      %v687 = vmul.f32 %v619, %v681
      %v688 = vmul.f32 %v620, %v681
      %v689 = vmul.f32 %v621, %v681
      %v690 = vmul.f32 %v622, %v681
      %v691 = vmul.f32 %v623, %v681
      %v692 = vmul.f32 %v624, %v681
      %v693 = vmul.f32 %v625, %v681
      %v694 = vmul.f32 %v626, %v681
      %v695 = vmul.f32 %v627, %v681
      %v696 = vmul.f32 %v628, %v681
      %v697 = vmul.f32 %v629, %v681
      %v698 = vmul.f32 %v630, %v681
      %v699 = vmul.f32 %v631, %v681
      %v700 = vmul.f32 %v632, %v681
      %v701 = vmul.f32 %v633, %v681
      %v702 = vmul.f32 %v634, %v681
      %v703 = vmul.f32 %v635, %v681
      %v704 = vmul.f32 %v636, %v681
      %v705 = vmul.f32 %v637, %v681
      %v706 = vmul.f32 %v638, %v681
      %v707 = vmul.f32 %v639, %v681
      %v708 = vmul.f32 %v640, %v681
      %v709 = vmul.f32 %v641, %v681
      %v710 = vmul.f32 %v642, %v681
      %v711 = vmul.f32 %v643, %v681
      %v712 = vmul.f32 %v644, %v681
      %v713 = vmul.f32 %v645, %v681
      %v714 = vmul.f32 %v646, %v681
      %v715 = vmul.f32 %v647, %v681
      %v716 = vmul.f32 %v648, %v681
      %v717 = vmul.f32 %v649, %v681
      %v718 = vmul.f32 %v650, %v681
      %v719 = vmul.f32 %v651, %v681
      %v720 = vmul.f32 %v652, %v681
      %v721 = vmul.f32 %v653, %v681
      %v722 = vmul.f32 %v654, %v681
      %v723 = vmul.f32 %v655, %v681
      %v724 = vmul.f32 %v656, %v681
      %v725 = vmul.f32 %v657, %v681
      %v726 = vmul.f32 %v658, %v681
      %v727 = vmul.f32 %v659, %v681
      %v728 = vmul.f32 %v660, %v681
      %v729 = vmul.f32 %v661, %v681
      %v730 = vmul.f32 %v662, %v681
      %v731 = vmul.f32 %v663, %v681
      %v732 = vmul.f32 %v664, %v681
      %v733 = vmul.f32 %v665, %v681
      %v734 = vmul.f32 %v666, %v681
      %v735 = vmul.f32 %v667, %v681
      %v736 = vmul.f32 %v668, %v681
      %v737 = vmul.f32 %v669, %v681
      %v738 = vmul.f32 %v670, %v681
      %v739 = vmul.f32 %v671, %v681
      %v740 = vmul.f32 %v672, %v681
      %v741 = vmul.f32 %v673, %v681
      %v742 = vmul.f32 %v674, %v681
      %v743 = vmul.f32 %v675, %v681
      %v744 = vmul.f32 %v676, %v681
      %v745 = vmul.f32 %v677, %v681
      %v746 = vmul.f32 %v678, %v681
      %v747 = vld [vmem:[%s6] sm:$0xff]
      %v748 = vld [vmem:[%s6 + $0x8] sm:$0xff]
      %v749 = vld [vmem:[%s539] sm:$0xff]
      %v750 = vld [vmem:[%s539 + $0x8] sm:$0xff]
      %v751 = vld [vmem:[%s539 + $0x10] sm:$0xff]
      %v752 = vld [vmem:[%s539 + $0x18] sm:$0xff]
      %v753 = vld [vmem:[%s539 + $0x20] sm:$0xff]
      %v754 = vld [vmem:[%s539 + $0x28] sm:$0xff]
      %v755 = vld [vmem:[%s539 + $0x30] sm:$0xff]
      %v756 = vld [vmem:[%s539 + $0x38] sm:$0xff]
      %v757 = vld [vmem:[%s539 + $0x40] sm:$0xff]
      %v758 = vld [vmem:[%s539 + $0x48] sm:$0xff]
      %v759 = vld [vmem:[%s539 + $0x50] sm:$0xff]
      %v760 = vld [vmem:[%s539 + $0x58] sm:$0xff]
      %v761 = vld [vmem:[%s539 + $0x60] sm:$0xff]
      %v762 = vld [vmem:[%s539 + $0x68] sm:$0xff]
      %v763 = vld [vmem:[%s539 + $0x70] sm:$0xff]
      %v764 = vld [vmem:[%s539 + $0x78] sm:$0xff]
      %v765 = vld [vmem:[%s539 + $0x80] sm:$0xff]
      %v766 = vld [vmem:[%s539 + $0x88] sm:$0xff]
      %v767 = vld [vmem:[%s539 + $0x90] sm:$0xff]
      %v768 = vld [vmem:[%s539 + $0x98] sm:$0xff]
      %v769 = vld [vmem:[%s539 + $0xa0] sm:$0xff]
      %v770 = vld [vmem:[%s539 + $0xa8] sm:$0xff]
      %v771 = vld [vmem:[%s539 + $0xb0] sm:$0xff]
      %v772 = vld [vmem:[%s539 + $0xb8] sm:$0xff]
      %v773 = vld [vmem:[%s539 + $0xc0] sm:$0xff]
      %v774 = vld [vmem:[%s539 + $0xc8] sm:$0xff]
      %v775 = vld [vmem:[%s539 + $0xd0] sm:$0xff]
      %v776 = vld [vmem:[%s539 + $0xd8] sm:$0xff]
      %v777 = vld [vmem:[%s539 + $0xe0] sm:$0xff]
      %v778 = vld [vmem:[%s539 + $0xe8] sm:$0xff]
      %v779 = vld [vmem:[%s539 + $0xf0] sm:$0xff]
      %v780 = vld [vmem:[%s539 + $0xf8] sm:$0xff]
      %v781 = vld [vmem:[%s539 + $0x100] sm:$0xff]
      %v782 = vld [vmem:[%s539 + $0x108] sm:$0xff]
      %v783 = vld [vmem:[%s539 + $0x110] sm:$0xff]
      %v784 = vld [vmem:[%s539 + $0x118] sm:$0xff]
      %v785 = vld [vmem:[%s539 + $0x120] sm:$0xff]
      %v786 = vld [vmem:[%s539 + $0x128] sm:$0xff]
      %v787 = vld [vmem:[%s539 + $0x130] sm:$0xff]
      %v788 = vld [vmem:[%s539 + $0x138] sm:$0xff]
      %v789 = vld [vmem:[%s539 + $0x140] sm:$0xff]
      %v790 = vld [vmem:[%s539 + $0x148] sm:$0xff]
      %v791 = vld [vmem:[%s539 + $0x150] sm:$0xff]
      %v792 = vld [vmem:[%s539 + $0x158] sm:$0xff]
      %v793 = vld [vmem:[%s539 + $0x160] sm:$0xff]
      %v794 = vld [vmem:[%s539 + $0x168] sm:$0xff]
      %v795 = vld [vmem:[%s539 + $0x170] sm:$0xff]
      %v796 = vld [vmem:[%s539 + $0x178] sm:$0xff]
      %v797 = vld [vmem:[%s539 + $0x180] sm:$0xff]
      %v798 = vld [vmem:[%s539 + $0x188] sm:$0xff]
      %v799 = vld [vmem:[%s539 + $0x190] sm:$0xff]
      %v800 = vld [vmem:[%s539 + $0x198] sm:$0xff]
      %v801 = vld [vmem:[%s539 + $0x1a0] sm:$0xff]
      %v802 = vld [vmem:[%s539 + $0x1a8] sm:$0xff]
      %v803 = vld [vmem:[%s539 + $0x1b0] sm:$0xff]
      %v804 = vld [vmem:[%s539 + $0x1b8] sm:$0xff]
      %v805 = vld [vmem:[%s539 + $0x1c0] sm:$0xff]
      %v806 = vld [vmem:[%s539 + $0x1c8] sm:$0xff]
      %v807 = vld [vmem:[%s539 + $0x1d0] sm:$0xff]
      %v808 = vld [vmem:[%s539 + $0x1d8] sm:$0xff]
      %v809 = vld [vmem:[%s539 + $0x1e0] sm:$0xff]
      %v810 = vld [vmem:[%s539 + $0x1e8] sm:$0xff]
      %v811 = vld [vmem:[%s539 + $0x1f0] sm:$0xff]
      %v812 = vld [vmem:[%s539 + $0x1f8] sm:$0xff]
      %v813 = vld [vmem:[%s3] sm:$0x1]
      %v815 = vperm.slane %v813, 0
      %v817 = vsub.f32 %v749, %v815
      %v818 = vsub.f32 %v750, %v815
      %v819 = vsub.f32 %v751, %v815
      %v820 = vsub.f32 %v752, %v815
      %v821 = vsub.f32 %v753, %v815
      %v822 = vsub.f32 %v754, %v815
      %v823 = vsub.f32 %v755, %v815
      %v824 = vsub.f32 %v756, %v815
      %v825 = vsub.f32 %v757, %v815
      %v826 = vsub.f32 %v758, %v815
      %v827 = vsub.f32 %v759, %v815
      %v828 = vsub.f32 %v760, %v815
      %v829 = vsub.f32 %v761, %v815
      %v830 = vsub.f32 %v762, %v815
      %v831 = vsub.f32 %v763, %v815
      %v832 = vsub.f32 %v764, %v815
      %v833 = vsub.f32 %v765, %v815
      %v834 = vsub.f32 %v766, %v815
      %v835 = vsub.f32 %v767, %v815
      %v836 = vsub.f32 %v768, %v815
      %v837 = vsub.f32 %v769, %v815
      %v838 = vsub.f32 %v770, %v815
      %v839 = vsub.f32 %v771, %v815
      %v840 = vsub.f32 %v772, %v815
      %v841 = vsub.f32 %v773, %v815
      %v842 = vsub.f32 %v774, %v815
      %v843 = vsub.f32 %v775, %v815
      %v844 = vsub.f32 %v776, %v815
      %v845 = vsub.f32 %v777, %v815
      %v846 = vsub.f32 %v778, %v815
      %v847 = vsub.f32 %v779, %v815
      %v848 = vsub.f32 %v780, %v815
      %v849 = vsub.f32 %v781, %v815
      %v850 = vsub.f32 %v782, %v815
      %v851 = vsub.f32 %v783, %v815
      %v852 = vsub.f32 %v784, %v815
      %v853 = vsub.f32 %v785, %v815
      %v854 = vsub.f32 %v786, %v815
      %v855 = vsub.f32 %v787, %v815
      %v856 = vsub.f32 %v788, %v815
      %v857 = vsub.f32 %v789, %v815
      %v858 = vsub.f32 %v790, %v815
      %v859 = vsub.f32 %v791, %v815
      %v860 = vsub.f32 %v792, %v815
      %v861 = vsub.f32 %v793, %v815
      %v862 = vsub.f32 %v794, %v815
      %v863 = vsub.f32 %v795, %v815
      %v864 = vsub.f32 %v796, %v815
      %v865 = vsub.f32 %v797, %v815
      %v866 = vsub.f32 %v798, %v815
      %v867 = vsub.f32 %v799, %v815
      %v868 = vsub.f32 %v800, %v815
      %v869 = vsub.f32 %v801, %v815
      %v870 = vsub.f32 %v802, %v815
      %v871 = vsub.f32 %v803, %v815
      %v872 = vsub.f32 %v804, %v815
      %v873 = vsub.f32 %v805, %v815
      %v874 = vsub.f32 %v806, %v815
      %v875 = vsub.f32 %v807, %v815
      %v876 = vsub.f32 %v808, %v815
      %v877 = vsub.f32 %v809, %v815
      %v878 = vsub.f32 %v810, %v815
      %v879 = vsub.f32 %v811, %v815
      %v880 = vsub.f32 %v812, %v815
      %v881 = vld [vmem:[%s5] sm:$0x1]
      %v883 = vperm.slane %v881, 0
      %v885 = vmul.f32 %v817, %v883
      %v886 = vmul.f32 %v818, %v883
      %v887 = vmul.f32 %v819, %v883
      %v888 = vmul.f32 %v820, %v883
      %v889 = vmul.f32 %v821, %v883
      %v890 = vmul.f32 %v822, %v883
      %v891 = vmul.f32 %v823, %v883
      %v892 = vmul.f32 %v824, %v883
      %v893 = vmul.f32 %v825, %v883
      %v894 = vmul.f32 %v826, %v883
      %v895 = vmul.f32 %v827, %v883
      %v896 = vmul.f32 %v828, %v883
      %v897 = vmul.f32 %v829, %v883
      %v898 = vmul.f32 %v830, %v883
      %v899 = vmul.f32 %v831, %v883
      %v900 = vmul.f32 %v832, %v883
      %v901 = vmul.f32 %v833, %v883
      %v902 = vmul.f32 %v834, %v883
      %v903 = vmul.f32 %v835, %v883
      %v904 = vmul.f32 %v836, %v883
      %v905 = vmul.f32 %v837, %v883
      %v906 = vmul.f32 %v838, %v883
      %v907 = vmul.f32 %v839, %v883
      %v908 = vmul.f32 %v840, %v883
      %v909 = vmul.f32 %v841, %v883
      %v910 = vmul.f32 %v842, %v883
      %v911 = vmul.f32 %v843, %v883
      %v912 = vmul.f32 %v844, %v883
      %v913 = vmul.f32 %v845, %v883
      %v914 = vmul.f32 %v846, %v883
      %v915 = vmul.f32 %v847, %v883
      %v916 = vmul.f32 %v848, %v883
      %v917 = vmul.f32 %v849, %v883
      %v918 = vmul.f32 %v850, %v883
      %v919 = vmul.f32 %v851, %v883
      %v920 = vmul.f32 %v852, %v883
      %v921 = vmul.f32 %v853, %v883
      %v922 = vmul.f32 %v854, %v883
      %v923 = vmul.f32 %v855, %v883
      %v924 = vmul.f32 %v856, %v883
      %v925 = vmul.f32 %v857, %v883
      %v926 = vmul.f32 %v858, %v883
      %v927 = vmul.f32 %v859, %v883
      %v928 = vmul.f32 %v860, %v883
      %v929 = vmul.f32 %v861, %v883
      %v930 = vmul.f32 %v862, %v883
      %v931 = vmul.f32 %v863, %v883
      %v932 = vmul.f32 %v864, %v883
      %v933 = vmul.f32 %v865, %v883
      %v934 = vmul.f32 %v866, %v883
      %v935 = vmul.f32 %v867, %v883
      %v936 = vmul.f32 %v868, %v883
      %v937 = vmul.f32 %v869, %v883
      %v938 = vmul.f32 %v870, %v883
      %v939 = vmul.f32 %v871, %v883
      %v940 = vmul.f32 %v872, %v883
      %v941 = vmul.f32 %v873, %v883
      %v942 = vmul.f32 %v874, %v883
      %v943 = vmul.f32 %v875, %v883
      %v944 = vmul.f32 %v876, %v883
      %v945 = vmul.f32 %v877, %v883
      %v946 = vmul.f32 %v878, %v883
      %v947 = vmul.f32 %v879, %v883
      %v948 = vmul.f32 %v880, %v883
      %v949 = vld [vmem:[%s7] sm:$0xff]
      %v950 = vld [vmem:[%s7 + $0x8] sm:$0xff]
      %vm951 = vcmask 130048
      %v953 = vsel %vm951, %v885, 0
      %v956 = vsel %vm951, %v886, 0
      %v959 = vsel %vm951, %v887, 0
      %v962 = vsel %vm951, %v888, 0
      %v965 = vsel %vm951, %v889, 0
      %v968 = vsel %vm951, %v890, 0
      %v971 = vsel %vm951, %v891, 0
      %v974 = vsel %vm951, %v892, 0
      %v977 = vsel %vm951, %v893, 0
      %v980 = vsel %vm951, %v894, 0
      %v983 = vsel %vm951, %v895, 0
      %v986 = vsel %vm951, %v896, 0
      %v989 = vsel %vm951, %v897, 0
      %v992 = vsel %vm951, %v898, 0
      %v995 = vsel %vm951, %v899, 0
      %v998 = vsel %vm951, %v900, 0
      %v1001 = vsel %vm951, %v901, 0
      %v1004 = vsel %vm951, %v902, 0
      %v1007 = vsel %vm951, %v903, 0
      %v1010 = vsel %vm951, %v904, 0
      %v1013 = vsel %vm951, %v905, 0
      %v1016 = vsel %vm951, %v906, 0
      %v1019 = vsel %vm951, %v907, 0
      %v1022 = vsel %vm951, %v908, 0
      %v1025 = vsel %vm951, %v909, 0
      %v1028 = vsel %vm951, %v910, 0
      %v1031 = vsel %vm951, %v911, 0
      %v1034 = vsel %vm951, %v912, 0
      %v1037 = vsel %vm951, %v913, 0
      %v1040 = vsel %vm951, %v914, 0
      %v1043 = vsel %vm951, %v915, 0
      %v1046 = vsel %vm951, %v916, 0
      %v1049 = vsel %vm951, %v917, 0
      %v1052 = vsel %vm951, %v918, 0
      %v1055 = vsel %vm951, %v919, 0
      %v1058 = vsel %vm951, %v920, 0
      %v1061 = vsel %vm951, %v921, 0
      %v1064 = vsel %vm951, %v922, 0
      %v1067 = vsel %vm951, %v923, 0
      %v1070 = vsel %vm951, %v924, 0
      %v1073 = vsel %vm951, %v925, 0
      %v1076 = vsel %vm951, %v926, 0
      %v1079 = vsel %vm951, %v927, 0
      %v1082 = vsel %vm951, %v928, 0
      %v1085 = vsel %vm951, %v929, 0
      %v1088 = vsel %vm951, %v930, 0
      %v1091 = vsel %vm951, %v931, 0
      %v1094 = vsel %vm951, %v932, 0
      %v1097 = vsel %vm951, %v933, 0
      %v1100 = vsel %vm951, %v934, 0
      %v1103 = vsel %vm951, %v935, 0
      %v1106 = vsel %vm951, %v936, 0
      %v1109 = vsel %vm951, %v937, 0
      %v1112 = vsel %vm951, %v938, 0
      %v1115 = vsel %vm951, %v939, 0
      %v1118 = vsel %vm951, %v940, 0
      %v1121 = vsel %vm951, %v941, 0
      %v1124 = vsel %vm951, %v942, 0
      %v1127 = vsel %vm951, %v943, 0
      %v1130 = vsel %vm951, %v944, 0
      %v1133 = vsel %vm951, %v945, 0
      %v1136 = vsel %vm951, %v946, 0
      %v1139 = vsel %vm951, %v947, 0
      %v1142 = vsel %vm951, %v948, 0
      %1144 = vmatpush.msra.mxu0 0.0
      %1145 = vmatpush.msra.mxu0 0.0
      %1146 = vmatpush.msra.mxu0 0.0
      %1147 = vmatpush.msra.mxu0 0.0
      %1148 = vmatpush.msra.mxu0 0.0
      %1149 = vmatpush.msra.mxu0 0.0
      %1150 = vmatpush.msra.mxu0 0.0
      %1151 = vmatpush.msra.mxu0 0.0
      %1152 = vmatpush.msra.mxu0 0.0
      %1153 = vmatpush.msra.mxu0 0.0
      %1154 = vmatpush.msra.mxu0 0.0
      %1155 = vmatpush.msra.mxu0 0.0
      %1156 = vmatpush.msra.mxu0 0.0
      %1157 = vmatpush.msra.mxu0 0.0
      %1158 = vmatpush.msra.mxu0 %v950
      %1159 = vmatpush.msra.mxu0 %v949
      %1160 = vmatmul.f32.gmra.mxu0 %v953
      %v1161 = vpop.f32.mrf.mxu0
      %v1162 = vadd.f32 0.0, %v1161
      %1163 = vmatmul.f32.gmra.mxu0 %v956
      %v1164 = vpop.f32.mrf.mxu0
      %v1165 = vadd.f32 0.0, %v1164
      %1166 = vmatmul.f32.gmra.mxu0 %v959
      %v1167 = vpop.f32.mrf.mxu0
      %v1168 = vadd.f32 0.0, %v1167
      %1169 = vmatmul.f32.gmra.mxu0 %v962
      %v1170 = vpop.f32.mrf.mxu0
      %v1171 = vadd.f32 0.0, %v1170
      %1172 = vmatmul.f32.gmra.mxu0 %v965
      %v1173 = vpop.f32.mrf.mxu0
      %v1174 = vadd.f32 0.0, %v1173
      %1175 = vmatmul.f32.gmra.mxu0 %v968
      %v1176 = vpop.f32.mrf.mxu0
      %v1177 = vadd.f32 0.0, %v1176
      %1178 = vmatmul.f32.gmra.mxu0 %v971
      %v1179 = vpop.f32.mrf.mxu0
      %v1180 = vadd.f32 0.0, %v1179
      %1181 = vmatmul.f32.gmra.mxu0 %v974
      %v1182 = vpop.f32.mrf.mxu0
      %v1183 = vadd.f32 0.0, %v1182
      %1184 = vmatmul.f32.gmra.mxu0 %v977
      %v1185 = vpop.f32.mrf.mxu0
      %v1186 = vadd.f32 0.0, %v1185
      %1187 = vmatmul.f32.gmra.mxu0 %v980
      %v1188 = vpop.f32.mrf.mxu0
      %v1189 = vadd.f32 0.0, %v1188
      %1190 = vmatmul.f32.gmra.mxu0 %v983
      %v1191 = vpop.f32.mrf.mxu0
      %v1192 = vadd.f32 0.0, %v1191
      %1193 = vmatmul.f32.gmra.mxu0 %v986
      %v1194 = vpop.f32.mrf.mxu0
      %v1195 = vadd.f32 0.0, %v1194
      %1196 = vmatmul.f32.gmra.mxu0 %v989
      %v1197 = vpop.f32.mrf.mxu0
      %v1198 = vadd.f32 0.0, %v1197
      %1199 = vmatmul.f32.gmra.mxu0 %v992
      %v1200 = vpop.f32.mrf.mxu0
      %v1201 = vadd.f32 0.0, %v1200
      %1202 = vmatmul.f32.gmra.mxu0 %v995
      %v1203 = vpop.f32.mrf.mxu0
      %v1204 = vadd.f32 0.0, %v1203
      %1205 = vmatmul.f32.gmra.mxu0 %v998
      %v1206 = vpop.f32.mrf.mxu0
      %v1207 = vadd.f32 0.0, %v1206
      %1208 = vmatmul.f32.gmra.mxu0 %v1001
      %v1209 = vpop.f32.mrf.mxu0
      %v1210 = vadd.f32 0.0, %v1209
      %1211 = vmatmul.f32.gmra.mxu0 %v1004
      %v1212 = vpop.f32.mrf.mxu0
      %v1213 = vadd.f32 0.0, %v1212
      %1214 = vmatmul.f32.gmra.mxu0 %v1007
      %v1215 = vpop.f32.mrf.mxu0
      %v1216 = vadd.f32 0.0, %v1215
      %1217 = vmatmul.f32.gmra.mxu0 %v1010
      %v1218 = vpop.f32.mrf.mxu0
      %v1219 = vadd.f32 0.0, %v1218
      %1220 = vmatmul.f32.gmra.mxu0 %v1013
      %v1221 = vpop.f32.mrf.mxu0
      %v1222 = vadd.f32 0.0, %v1221
      %1223 = vmatmul.f32.gmra.mxu0 %v1016
      %v1224 = vpop.f32.mrf.mxu0
      %v1225 = vadd.f32 0.0, %v1224
      %1226 = vmatmul.f32.gmra.mxu0 %v1019
      %v1227 = vpop.f32.mrf.mxu0
      %v1228 = vadd.f32 0.0, %v1227
      %1229 = vmatmul.f32.gmra.mxu0 %v1022
      %v1230 = vpop.f32.mrf.mxu0
      %v1231 = vadd.f32 0.0, %v1230
      %1232 = vmatmul.f32.gmra.mxu0 %v1025
      %v1233 = vpop.f32.mrf.mxu0
      %v1234 = vadd.f32 0.0, %v1233
      %1235 = vmatmul.f32.gmra.mxu0 %v1028
      %v1236 = vpop.f32.mrf.mxu0
      %v1237 = vadd.f32 0.0, %v1236
      %1238 = vmatmul.f32.gmra.mxu0 %v1031
      %v1239 = vpop.f32.mrf.mxu0
      %v1240 = vadd.f32 0.0, %v1239
      %1241 = vmatmul.f32.gmra.mxu0 %v1034
      %v1242 = vpop.f32.mrf.mxu0
      %v1243 = vadd.f32 0.0, %v1242
      %1244 = vmatmul.f32.gmra.mxu0 %v1037
      %v1245 = vpop.f32.mrf.mxu0
      %v1246 = vadd.f32 0.0, %v1245
      %1247 = vmatmul.f32.gmra.mxu0 %v1040
      %v1248 = vpop.f32.mrf.mxu0
      %v1249 = vadd.f32 0.0, %v1248
      %1250 = vmatmul.f32.gmra.mxu0 %v1043
      %v1251 = vpop.f32.mrf.mxu0
      %v1252 = vadd.f32 0.0, %v1251
      %1253 = vmatmul.f32.gmra.mxu0 %v1046
      %v1254 = vpop.f32.mrf.mxu0
      %v1255 = vadd.f32 0.0, %v1254
      %1256 = vmatmul.f32.gmra.mxu0 %v1049
      %v1257 = vpop.f32.mrf.mxu0
      %v1258 = vadd.f32 0.0, %v1257
      %1259 = vmatmul.f32.gmra.mxu0 %v1052
      %v1260 = vpop.f32.mrf.mxu0
      %v1261 = vadd.f32 0.0, %v1260
      %1262 = vmatmul.f32.gmra.mxu0 %v1055
      %v1263 = vpop.f32.mrf.mxu0
      %v1264 = vadd.f32 0.0, %v1263
      %1265 = vmatmul.f32.gmra.mxu0 %v1058
      %v1266 = vpop.f32.mrf.mxu0
      %v1267 = vadd.f32 0.0, %v1266
      %1268 = vmatmul.f32.gmra.mxu0 %v1061
      %v1269 = vpop.f32.mrf.mxu0
      %v1270 = vadd.f32 0.0, %v1269
      %1271 = vmatmul.f32.gmra.mxu0 %v1064
      %v1272 = vpop.f32.mrf.mxu0
      %v1273 = vadd.f32 0.0, %v1272
      %1274 = vmatmul.f32.gmra.mxu0 %v1067
      %v1275 = vpop.f32.mrf.mxu0
      %v1276 = vadd.f32 0.0, %v1275
      %1277 = vmatmul.f32.gmra.mxu0 %v1070
      %v1278 = vpop.f32.mrf.mxu0
      %v1279 = vadd.f32 0.0, %v1278
      %1280 = vmatmul.f32.gmra.mxu0 %v1073
      %v1281 = vpop.f32.mrf.mxu0
      %v1282 = vadd.f32 0.0, %v1281
      %1283 = vmatmul.f32.gmra.mxu0 %v1076
      %v1284 = vpop.f32.mrf.mxu0
      %v1285 = vadd.f32 0.0, %v1284
      %1286 = vmatmul.f32.gmra.mxu0 %v1079
      %v1287 = vpop.f32.mrf.mxu0
      %v1288 = vadd.f32 0.0, %v1287
      %1289 = vmatmul.f32.gmra.mxu0 %v1082
      %v1290 = vpop.f32.mrf.mxu0
      %v1291 = vadd.f32 0.0, %v1290
      %1292 = vmatmul.f32.gmra.mxu0 %v1085
      %v1293 = vpop.f32.mrf.mxu0
      %v1294 = vadd.f32 0.0, %v1293
      %1295 = vmatmul.f32.gmra.mxu0 %v1088
      %v1296 = vpop.f32.mrf.mxu0
      %v1297 = vadd.f32 0.0, %v1296
      %1298 = vmatmul.f32.gmra.mxu0 %v1091
      %v1299 = vpop.f32.mrf.mxu0
      %v1300 = vadd.f32 0.0, %v1299
      %1301 = vmatmul.f32.gmra.mxu0 %v1094
      %v1302 = vpop.f32.mrf.mxu0
      %v1303 = vadd.f32 0.0, %v1302
      %1304 = vmatmul.f32.gmra.mxu0 %v1097
      %v1305 = vpop.f32.mrf.mxu0
      %v1306 = vadd.f32 0.0, %v1305
      %1307 = vmatmul.f32.gmra.mxu0 %v1100
      %v1308 = vpop.f32.mrf.mxu0
      %v1309 = vadd.f32 0.0, %v1308
      %1310 = vmatmul.f32.gmra.mxu0 %v1103
      %v1311 = vpop.f32.mrf.mxu0
      %v1312 = vadd.f32 0.0, %v1311
      %1313 = vmatmul.f32.gmra.mxu0 %v1106
      %v1314 = vpop.f32.mrf.mxu0
      %v1315 = vadd.f32 0.0, %v1314
      %1316 = vmatmul.f32.gmra.mxu0 %v1109
      %v1317 = vpop.f32.mrf.mxu0
      %v1318 = vadd.f32 0.0, %v1317
      %1319 = vmatmul.f32.gmra.mxu0 %v1112
      %v1320 = vpop.f32.mrf.mxu0
      %v1321 = vadd.f32 0.0, %v1320
      %1322 = vmatmul.f32.gmra.mxu0 %v1115
      %v1323 = vpop.f32.mrf.mxu0
      %v1324 = vadd.f32 0.0, %v1323
      %1325 = vmatmul.f32.gmra.mxu0 %v1118
      %v1326 = vpop.f32.mrf.mxu0
      %v1327 = vadd.f32 0.0, %v1326
      %1328 = vmatmul.f32.gmra.mxu0 %v1121
      %v1329 = vpop.f32.mrf.mxu0
      %v1330 = vadd.f32 0.0, %v1329
      %1331 = vmatmul.f32.gmra.mxu0 %v1124
      %v1332 = vpop.f32.mrf.mxu0
      %v1333 = vadd.f32 0.0, %v1332
      %1334 = vmatmul.f32.gmra.mxu0 %v1127
      %v1335 = vpop.f32.mrf.mxu0
      %v1336 = vadd.f32 0.0, %v1335
      %1337 = vmatmul.f32.gmra.mxu0 %v1130
      %v1338 = vpop.f32.mrf.mxu0
      %v1339 = vadd.f32 0.0, %v1338
      %1340 = vmatmul.f32.gmra.mxu0 %v1133
      %v1341 = vpop.f32.mrf.mxu0
      %v1342 = vadd.f32 0.0, %v1341
      %1343 = vmatmul.f32.gmra.mxu0 %v1136
      %v1344 = vpop.f32.mrf.mxu0
      %v1345 = vadd.f32 0.0, %v1344
      %1346 = vmatmul.f32.gmra.mxu0 %v1139
      %v1347 = vpop.f32.mrf.mxu0
      %v1348 = vadd.f32 0.0, %v1347
      %1349 = vmatmul.f32.gmra.mxu0 %v1142
      %v1350 = vpop.f32.mrf.mxu0
      %v1351 = vadd.f32 0.0, %v1350
      %1352 = vdwg.mxu0
      %v1354 = vsel %vm951, %v683, 0
      %v1357 = vsel %vm951, %v684, 0
      %v1360 = vsel %vm951, %v685, 0
      %v1363 = vsel %vm951, %v686, 0
      %v1366 = vsel %vm951, %v687, 0
      %v1369 = vsel %vm951, %v688, 0
      %v1372 = vsel %vm951, %v689, 0
      %v1375 = vsel %vm951, %v690, 0
      %v1378 = vsel %vm951, %v691, 0
      %v1381 = vsel %vm951, %v692, 0
      %v1384 = vsel %vm951, %v693, 0
      %v1387 = vsel %vm951, %v694, 0
      %v1390 = vsel %vm951, %v695, 0
      %v1393 = vsel %vm951, %v696, 0
      %v1396 = vsel %vm951, %v697, 0
      %v1399 = vsel %vm951, %v698, 0
      %v1402 = vsel %vm951, %v699, 0
      %v1405 = vsel %vm951, %v700, 0
      %v1408 = vsel %vm951, %v701, 0
      %v1411 = vsel %vm951, %v702, 0
      %v1414 = vsel %vm951, %v703, 0
      %v1417 = vsel %vm951, %v704, 0
      %v1420 = vsel %vm951, %v705, 0
      %v1423 = vsel %vm951, %v706, 0
      %v1426 = vsel %vm951, %v707, 0
      %v1429 = vsel %vm951, %v708, 0
      %v1432 = vsel %vm951, %v709, 0
      %v1435 = vsel %vm951, %v710, 0
      %v1438 = vsel %vm951, %v711, 0
      %v1441 = vsel %vm951, %v712, 0
      %v1444 = vsel %vm951, %v713, 0
      %v1447 = vsel %vm951, %v714, 0
      %v1450 = vsel %vm951, %v715, 0
      %v1453 = vsel %vm951, %v716, 0
      %v1456 = vsel %vm951, %v717, 0
      %v1459 = vsel %vm951, %v718, 0
      %v1462 = vsel %vm951, %v719, 0
      %v1465 = vsel %vm951, %v720, 0
      %v1468 = vsel %vm951, %v721, 0
      %v1471 = vsel %vm951, %v722, 0
      %v1474 = vsel %vm951, %v723, 0
      %v1477 = vsel %vm951, %v724, 0
      %v1480 = vsel %vm951, %v725, 0
      %v1483 = vsel %vm951, %v726, 0
      %v1486 = vsel %vm951, %v727, 0
      %v1489 = vsel %vm951, %v728, 0
      %v1492 = vsel %vm951, %v729, 0
      %v1495 = vsel %vm951, %v730, 0
      %v1498 = vsel %vm951, %v731, 0
      %v1501 = vsel %vm951, %v732, 0
      %v1504 = vsel %vm951, %v733, 0
      %v1507 = vsel %vm951, %v734, 0
      %v1510 = vsel %vm951, %v735, 0
      %v1513 = vsel %vm951, %v736, 0
      %v1516 = vsel %vm951, %v737, 0
      %v1519 = vsel %vm951, %v738, 0
      %v1522 = vsel %vm951, %v739, 0
      %v1525 = vsel %vm951, %v740, 0
      %v1528 = vsel %vm951, %v741, 0
      %v1531 = vsel %vm951, %v742, 0
      %v1534 = vsel %vm951, %v743, 0
      %v1537 = vsel %vm951, %v744, 0
      %v1540 = vsel %vm951, %v745, 0
      %v1543 = vsel %vm951, %v746, 0
      %1545 = vmatpush.msra.mxu0 0.0
      %1546 = vmatpush.msra.mxu0 0.0
      %1547 = vmatpush.msra.mxu0 0.0
      %1548 = vmatpush.msra.mxu0 0.0
      %1549 = vmatpush.msra.mxu0 0.0
      %1550 = vmatpush.msra.mxu0 0.0
      %1551 = vmatpush.msra.mxu0 0.0
      %1552 = vmatpush.msra.mxu0 0.0
      %1553 = vmatpush.msra.mxu0 0.0
      %1554 = vmatpush.msra.mxu0 0.0
      %1555 = vmatpush.msra.mxu0 0.0
      %1556 = vmatpush.msra.mxu0 0.0
      %1557 = vmatpush.msra.mxu0 0.0
      %1558 = vmatpush.msra.mxu0 0.0
      %1559 = vmatpush.msra.mxu0 %v748
      %1560 = vmatpush.msra.mxu0 %v747
      %1561 = vmatmul.f32.gmra.mxu0 %v1354
      %v1562 = vpop.f32.mrf.mxu0
      %v1563 = vadd.f32 %v1162, %v1562
      %1564 = vmatmul.f32.gmra.mxu0 %v1357
      %v1565 = vpop.f32.mrf.mxu0
      %v1566 = vadd.f32 %v1165, %v1565
      %1567 = vmatmul.f32.gmra.mxu0 %v1360
      %v1568 = vpop.f32.mrf.mxu0
      %v1569 = vadd.f32 %v1168, %v1568
      %1570 = vmatmul.f32.gmra.mxu0 %v1363
      %v1571 = vpop.f32.mrf.mxu0
      %v1572 = vadd.f32 %v1171, %v1571
      %1573 = vmatmul.f32.gmra.mxu0 %v1366
      %v1574 = vpop.f32.mrf.mxu0
      %v1575 = vadd.f32 %v1174, %v1574
      %1576 = vmatmul.f32.gmra.mxu0 %v1369
      %v1577 = vpop.f32.mrf.mxu0
      %v1578 = vadd.f32 %v1177, %v1577
      %1579 = vmatmul.f32.gmra.mxu0 %v1372
      %v1580 = vpop.f32.mrf.mxu0
      %v1581 = vadd.f32 %v1180, %v1580
      %1582 = vmatmul.f32.gmra.mxu0 %v1375
      %v1583 = vpop.f32.mrf.mxu0
      %v1584 = vadd.f32 %v1183, %v1583
      %1585 = vmatmul.f32.gmra.mxu0 %v1378
      %v1586 = vpop.f32.mrf.mxu0
      %v1587 = vadd.f32 %v1186, %v1586
      %1588 = vmatmul.f32.gmra.mxu0 %v1381
      %v1589 = vpop.f32.mrf.mxu0
      %v1590 = vadd.f32 %v1189, %v1589
      %1591 = vmatmul.f32.gmra.mxu0 %v1384
      %v1592 = vpop.f32.mrf.mxu0
      %v1593 = vadd.f32 %v1192, %v1592
      %1594 = vmatmul.f32.gmra.mxu0 %v1387
      %v1595 = vpop.f32.mrf.mxu0
      %v1596 = vadd.f32 %v1195, %v1595
      %1597 = vmatmul.f32.gmra.mxu0 %v1390
      %v1598 = vpop.f32.mrf.mxu0
      %v1599 = vadd.f32 %v1198, %v1598
      %1600 = vmatmul.f32.gmra.mxu0 %v1393
      %v1601 = vpop.f32.mrf.mxu0
      %v1602 = vadd.f32 %v1201, %v1601
      %1603 = vmatmul.f32.gmra.mxu0 %v1396
      %v1604 = vpop.f32.mrf.mxu0
      %v1605 = vadd.f32 %v1204, %v1604
      %1606 = vmatmul.f32.gmra.mxu0 %v1399
      %v1607 = vpop.f32.mrf.mxu0
      %v1608 = vadd.f32 %v1207, %v1607
      %1609 = vmatmul.f32.gmra.mxu0 %v1402
      %v1610 = vpop.f32.mrf.mxu0
      %v1611 = vadd.f32 %v1210, %v1610
      %1612 = vmatmul.f32.gmra.mxu0 %v1405
      %v1613 = vpop.f32.mrf.mxu0
      %v1614 = vadd.f32 %v1213, %v1613
      %1615 = vmatmul.f32.gmra.mxu0 %v1408
      %v1616 = vpop.f32.mrf.mxu0
      %v1617 = vadd.f32 %v1216, %v1616
      %1618 = vmatmul.f32.gmra.mxu0 %v1411
      %v1619 = vpop.f32.mrf.mxu0
      %v1620 = vadd.f32 %v1219, %v1619
      %1621 = vmatmul.f32.gmra.mxu0 %v1414
      %v1622 = vpop.f32.mrf.mxu0
      %v1623 = vadd.f32 %v1222, %v1622
      %1624 = vmatmul.f32.gmra.mxu0 %v1417
      %v1625 = vpop.f32.mrf.mxu0
      %v1626 = vadd.f32 %v1225, %v1625
      %1627 = vmatmul.f32.gmra.mxu0 %v1420
      %v1628 = vpop.f32.mrf.mxu0
      %v1629 = vadd.f32 %v1228, %v1628
      %1630 = vmatmul.f32.gmra.mxu0 %v1423
      %v1631 = vpop.f32.mrf.mxu0
      %v1632 = vadd.f32 %v1231, %v1631
      %1633 = vmatmul.f32.gmra.mxu0 %v1426
      %v1634 = vpop.f32.mrf.mxu0
      %v1635 = vadd.f32 %v1234, %v1634
      %1636 = vmatmul.f32.gmra.mxu0 %v1429
      %v1637 = vpop.f32.mrf.mxu0
      %v1638 = vadd.f32 %v1237, %v1637
      %1639 = vmatmul.f32.gmra.mxu0 %v1432
      %v1640 = vpop.f32.mrf.mxu0
      %v1641 = vadd.f32 %v1240, %v1640
      %1642 = vmatmul.f32.gmra.mxu0 %v1435
      %v1643 = vpop.f32.mrf.mxu0
      %v1644 = vadd.f32 %v1243, %v1643
      %1645 = vmatmul.f32.gmra.mxu0 %v1438
      %v1646 = vpop.f32.mrf.mxu0
      %v1647 = vadd.f32 %v1246, %v1646
      %1648 = vmatmul.f32.gmra.mxu0 %v1441
      %v1649 = vpop.f32.mrf.mxu0
      %v1650 = vadd.f32 %v1249, %v1649
      %1651 = vmatmul.f32.gmra.mxu0 %v1444
      %v1652 = vpop.f32.mrf.mxu0
      %v1653 = vadd.f32 %v1252, %v1652
      %1654 = vmatmul.f32.gmra.mxu0 %v1447
      %v1655 = vpop.f32.mrf.mxu0
      %v1656 = vadd.f32 %v1255, %v1655
      %1657 = vmatmul.f32.gmra.mxu0 %v1450
      %v1658 = vpop.f32.mrf.mxu0
      %v1659 = vadd.f32 %v1258, %v1658
      %1660 = vmatmul.f32.gmra.mxu0 %v1453
      %v1661 = vpop.f32.mrf.mxu0
      %v1662 = vadd.f32 %v1261, %v1661
      %1663 = vmatmul.f32.gmra.mxu0 %v1456
      %v1664 = vpop.f32.mrf.mxu0
      %v1665 = vadd.f32 %v1264, %v1664
      %1666 = vmatmul.f32.gmra.mxu0 %v1459
      %v1667 = vpop.f32.mrf.mxu0
      %v1668 = vadd.f32 %v1267, %v1667
      %1669 = vmatmul.f32.gmra.mxu0 %v1462
      %v1670 = vpop.f32.mrf.mxu0
      %v1671 = vadd.f32 %v1270, %v1670
      %1672 = vmatmul.f32.gmra.mxu0 %v1465
      %v1673 = vpop.f32.mrf.mxu0
      %v1674 = vadd.f32 %v1273, %v1673
      %1675 = vmatmul.f32.gmra.mxu0 %v1468
      %v1676 = vpop.f32.mrf.mxu0
      %v1677 = vadd.f32 %v1276, %v1676
      %1678 = vmatmul.f32.gmra.mxu0 %v1471
      %v1679 = vpop.f32.mrf.mxu0
      %v1680 = vadd.f32 %v1279, %v1679
      %1681 = vmatmul.f32.gmra.mxu0 %v1474
      %v1682 = vpop.f32.mrf.mxu0
      %v1683 = vadd.f32 %v1282, %v1682
      %1684 = vmatmul.f32.gmra.mxu0 %v1477
      %v1685 = vpop.f32.mrf.mxu0
      %v1686 = vadd.f32 %v1285, %v1685
      %1687 = vmatmul.f32.gmra.mxu0 %v1480
      %v1688 = vpop.f32.mrf.mxu0
      %v1689 = vadd.f32 %v1288, %v1688
      %1690 = vmatmul.f32.gmra.mxu0 %v1483
      %v1691 = vpop.f32.mrf.mxu0
      %v1692 = vadd.f32 %v1291, %v1691
      %1693 = vmatmul.f32.gmra.mxu0 %v1486
      %v1694 = vpop.f32.mrf.mxu0
      %v1695 = vadd.f32 %v1294, %v1694
      %1696 = vmatmul.f32.gmra.mxu0 %v1489
      %v1697 = vpop.f32.mrf.mxu0
      %v1698 = vadd.f32 %v1297, %v1697
      %1699 = vmatmul.f32.gmra.mxu0 %v1492
      %v1700 = vpop.f32.mrf.mxu0
      %v1701 = vadd.f32 %v1300, %v1700
      %1702 = vmatmul.f32.gmra.mxu0 %v1495
      %v1703 = vpop.f32.mrf.mxu0
      %v1704 = vadd.f32 %v1303, %v1703
      %1705 = vmatmul.f32.gmra.mxu0 %v1498
      %v1706 = vpop.f32.mrf.mxu0
      %v1707 = vadd.f32 %v1306, %v1706
      %1708 = vmatmul.f32.gmra.mxu0 %v1501
      %v1709 = vpop.f32.mrf.mxu0
      %v1710 = vadd.f32 %v1309, %v1709
      %1711 = vmatmul.f32.gmra.mxu0 %v1504
      %v1712 = vpop.f32.mrf.mxu0
      %v1713 = vadd.f32 %v1312, %v1712
      %1714 = vmatmul.f32.gmra.mxu0 %v1507
      %v1715 = vpop.f32.mrf.mxu0
      %v1716 = vadd.f32 %v1315, %v1715
      %1717 = vmatmul.f32.gmra.mxu0 %v1510
      %v1718 = vpop.f32.mrf.mxu0
      %v1719 = vadd.f32 %v1318, %v1718
      %1720 = vmatmul.f32.gmra.mxu0 %v1513
      %v1721 = vpop.f32.mrf.mxu0
      %v1722 = vadd.f32 %v1321, %v1721
      %1723 = vmatmul.f32.gmra.mxu0 %v1516
      %v1724 = vpop.f32.mrf.mxu0
      %v1725 = vadd.f32 %v1324, %v1724
      %1726 = vmatmul.f32.gmra.mxu0 %v1519
      %v1727 = vpop.f32.mrf.mxu0
      %v1728 = vadd.f32 %v1327, %v1727
      %1729 = vmatmul.f32.gmra.mxu0 %v1522
      %v1730 = vpop.f32.mrf.mxu0
      %v1731 = vadd.f32 %v1330, %v1730
      %1732 = vmatmul.f32.gmra.mxu0 %v1525
      %v1733 = vpop.f32.mrf.mxu0
      %v1734 = vadd.f32 %v1333, %v1733
      %1735 = vmatmul.f32.gmra.mxu0 %v1528
      %v1736 = vpop.f32.mrf.mxu0
      %v1737 = vadd.f32 %v1336, %v1736
      %1738 = vmatmul.f32.gmra.mxu0 %v1531
      %v1739 = vpop.f32.mrf.mxu0
      %v1740 = vadd.f32 %v1339, %v1739
      %1741 = vmatmul.f32.gmra.mxu0 %v1534
      %v1742 = vpop.f32.mrf.mxu0
      %v1743 = vadd.f32 %v1342, %v1742
      %1744 = vmatmul.f32.gmra.mxu0 %v1537
      %v1745 = vpop.f32.mrf.mxu0
      %v1746 = vadd.f32 %v1345, %v1745
      %1747 = vmatmul.f32.gmra.mxu0 %v1540
      %v1748 = vpop.f32.mrf.mxu0
      %v1749 = vadd.f32 %v1348, %v1748
      %1750 = vmatmul.f32.gmra.mxu0 %v1543
      %v1751 = vpop.f32.mrf.mxu0
      %v1752 = vadd.f32 %v1351, %v1751
      %1753 = vdwg.mxu0
      %v1754 = vld [vmem:[%s9] sm:$0x1]
      %v1756 = vperm.slane %v1754, 0
      %v1758 = vmul.f32 %v1756, %v1563
      %v1759 = vmul.f32 %v1756, %v1566
      %v1760 = vmul.f32 %v1756, %v1569
      %v1761 = vmul.f32 %v1756, %v1572
      %v1762 = vmul.f32 %v1756, %v1575
      %v1763 = vmul.f32 %v1756, %v1578
      %v1764 = vmul.f32 %v1756, %v1581
      %v1765 = vmul.f32 %v1756, %v1584
      %v1766 = vmul.f32 %v1756, %v1587
      %v1767 = vmul.f32 %v1756, %v1590
      %v1768 = vmul.f32 %v1756, %v1593
      %v1769 = vmul.f32 %v1756, %v1596
      %v1770 = vmul.f32 %v1756, %v1599
      %v1771 = vmul.f32 %v1756, %v1602
      %v1772 = vmul.f32 %v1756, %v1605
      %v1773 = vmul.f32 %v1756, %v1608
      %v1774 = vmul.f32 %v1756, %v1611
      %v1775 = vmul.f32 %v1756, %v1614
      %v1776 = vmul.f32 %v1756, %v1617
      %v1777 = vmul.f32 %v1756, %v1620
      %v1778 = vmul.f32 %v1756, %v1623
      %v1779 = vmul.f32 %v1756, %v1626
      %v1780 = vmul.f32 %v1756, %v1629
      %v1781 = vmul.f32 %v1756, %v1632
      %v1782 = vmul.f32 %v1756, %v1635
      %v1783 = vmul.f32 %v1756, %v1638
      %v1784 = vmul.f32 %v1756, %v1641
      %v1785 = vmul.f32 %v1756, %v1644
      %v1786 = vmul.f32 %v1756, %v1647
      %v1787 = vmul.f32 %v1756, %v1650
      %v1788 = vmul.f32 %v1756, %v1653
      %v1789 = vmul.f32 %v1756, %v1656
      %v1790 = vmul.f32 %v1756, %v1659
      %v1791 = vmul.f32 %v1756, %v1662
      %v1792 = vmul.f32 %v1756, %v1665
      %v1793 = vmul.f32 %v1756, %v1668
      %v1794 = vmul.f32 %v1756, %v1671
      %v1795 = vmul.f32 %v1756, %v1674
      %v1796 = vmul.f32 %v1756, %v1677
      %v1797 = vmul.f32 %v1756, %v1680
      %v1798 = vmul.f32 %v1756, %v1683
      %v1799 = vmul.f32 %v1756, %v1686
      %v1800 = vmul.f32 %v1756, %v1689
      %v1801 = vmul.f32 %v1756, %v1692
      %v1802 = vmul.f32 %v1756, %v1695
      %v1803 = vmul.f32 %v1756, %v1698
      %v1804 = vmul.f32 %v1756, %v1701
      %v1805 = vmul.f32 %v1756, %v1704
      %v1806 = vmul.f32 %v1756, %v1707
      %v1807 = vmul.f32 %v1756, %v1710
      %v1808 = vmul.f32 %v1756, %v1713
      %v1809 = vmul.f32 %v1756, %v1716
      %v1810 = vmul.f32 %v1756, %v1719
      %v1811 = vmul.f32 %v1756, %v1722
      %v1812 = vmul.f32 %v1756, %v1725
      %v1813 = vmul.f32 %v1756, %v1728
      %v1814 = vmul.f32 %v1756, %v1731
      %v1815 = vmul.f32 %v1756, %v1734
      %v1816 = vmul.f32 %v1756, %v1737
      %v1817 = vmul.f32 %v1756, %v1740
      %v1818 = vmul.f32 %v1756, %v1743
      %v1819 = vmul.f32 %v1756, %v1746
      %v1820 = vmul.f32 %v1756, %v1749
      %v1821 = vmul.f32 %v1756, %v1752
      %v1822 = vld [vmem:[%s8] sm:$0x1]
      %v1824 = vperm.slane %v1822, 0
      %v1826 = vadd.f32 %v1758, %v1824
      %v1827 = vadd.f32 %v1759, %v1824
      %v1828 = vadd.f32 %v1760, %v1824
      %v1829 = vadd.f32 %v1761, %v1824
      %v1830 = vadd.f32 %v1762, %v1824
      %v1831 = vadd.f32 %v1763, %v1824
      %v1832 = vadd.f32 %v1764, %v1824
      %v1833 = vadd.f32 %v1765, %v1824
      %v1834 = vadd.f32 %v1766, %v1824
      %v1835 = vadd.f32 %v1767, %v1824
      %v1836 = vadd.f32 %v1768, %v1824
      %v1837 = vadd.f32 %v1769, %v1824
      %v1838 = vadd.f32 %v1770, %v1824
      %v1839 = vadd.f32 %v1771, %v1824
      %v1840 = vadd.f32 %v1772, %v1824
      %v1841 = vadd.f32 %v1773, %v1824
      %v1842 = vadd.f32 %v1774, %v1824
      %v1843 = vadd.f32 %v1775, %v1824
      %v1844 = vadd.f32 %v1776, %v1824
      %v1845 = vadd.f32 %v1777, %v1824
      %v1846 = vadd.f32 %v1778, %v1824
      %v1847 = vadd.f32 %v1779, %v1824
      %v1848 = vadd.f32 %v1780, %v1824
      %v1849 = vadd.f32 %v1781, %v1824
      %v1850 = vadd.f32 %v1782, %v1824
      %v1851 = vadd.f32 %v1783, %v1824
      %v1852 = vadd.f32 %v1784, %v1824
      %v1853 = vadd.f32 %v1785, %v1824
      %v1854 = vadd.f32 %v1786, %v1824
      %v1855 = vadd.f32 %v1787, %v1824
      %v1856 = vadd.f32 %v1788, %v1824
      %v1857 = vadd.f32 %v1789, %v1824
      %v1858 = vadd.f32 %v1790, %v1824
      %v1859 = vadd.f32 %v1791, %v1824
      %v1860 = vadd.f32 %v1792, %v1824
      %v1861 = vadd.f32 %v1793, %v1824
      %v1862 = vadd.f32 %v1794, %v1824
      %v1863 = vadd.f32 %v1795, %v1824
      %v1864 = vadd.f32 %v1796, %v1824
      %v1865 = vadd.f32 %v1797, %v1824
      %v1866 = vadd.f32 %v1798, %v1824
      %v1867 = vadd.f32 %v1799, %v1824
      %v1868 = vadd.f32 %v1800, %v1824
      %v1869 = vadd.f32 %v1801, %v1824
      %v1870 = vadd.f32 %v1802, %v1824
      %v1871 = vadd.f32 %v1803, %v1824
      %v1872 = vadd.f32 %v1804, %v1824
      %v1873 = vadd.f32 %v1805, %v1824
      %v1874 = vadd.f32 %v1806, %v1824
      %v1875 = vadd.f32 %v1807, %v1824
      %v1876 = vadd.f32 %v1808, %v1824
      %v1877 = vadd.f32 %v1809, %v1824
      %v1878 = vadd.f32 %v1810, %v1824
      %v1879 = vadd.f32 %v1811, %v1824
      %v1880 = vadd.f32 %v1812, %v1824
      %v1881 = vadd.f32 %v1813, %v1824
      %v1882 = vadd.f32 %v1814, %v1824
      %v1883 = vadd.f32 %v1815, %v1824
      %v1884 = vadd.f32 %v1816, %v1824
      %v1885 = vadd.f32 %v1817, %v1824
      %v1886 = vadd.f32 %v1818, %v1824
      %v1887 = vadd.f32 %v1819, %v1824
      %v1888 = vadd.f32 %v1820, %v1824
      %v1889 = vadd.f32 %v1821, %v1824
      %v1890 = vxor.u32 %v1826, 2147483648
      %v1891 = vxor.u32 %v1827, 2147483648
      %v1892 = vxor.u32 %v1828, 2147483648
      %v1893 = vxor.u32 %v1829, 2147483648
      %v1894 = vxor.u32 %v1830, 2147483648
      %v1895 = vxor.u32 %v1831, 2147483648
      %v1896 = vxor.u32 %v1832, 2147483648
      %v1897 = vxor.u32 %v1833, 2147483648
      %v1898 = vxor.u32 %v1834, 2147483648
      %v1899 = vxor.u32 %v1835, 2147483648
      %v1900 = vxor.u32 %v1836, 2147483648
      %v1901 = vxor.u32 %v1837, 2147483648
      %v1902 = vxor.u32 %v1838, 2147483648
      %v1903 = vxor.u32 %v1839, 2147483648
      %v1904 = vxor.u32 %v1840, 2147483648
      %v1905 = vxor.u32 %v1841, 2147483648
      %v1906 = vxor.u32 %v1842, 2147483648
      %v1907 = vxor.u32 %v1843, 2147483648
      %v1908 = vxor.u32 %v1844, 2147483648
      %v1909 = vxor.u32 %v1845, 2147483648
      %v1910 = vxor.u32 %v1846, 2147483648
      %v1911 = vxor.u32 %v1847, 2147483648
      %v1912 = vxor.u32 %v1848, 2147483648
      %v1913 = vxor.u32 %v1849, 2147483648
      %v1914 = vxor.u32 %v1850, 2147483648
      %v1915 = vxor.u32 %v1851, 2147483648
      %v1916 = vxor.u32 %v1852, 2147483648
      %v1917 = vxor.u32 %v1853, 2147483648
      %v1918 = vxor.u32 %v1854, 2147483648
      %v1919 = vxor.u32 %v1855, 2147483648
      %v1920 = vxor.u32 %v1856, 2147483648
      %v1921 = vxor.u32 %v1857, 2147483648
      %v1922 = vxor.u32 %v1858, 2147483648
      %v1923 = vxor.u32 %v1859, 2147483648
      %v1924 = vxor.u32 %v1860, 2147483648
      %v1925 = vxor.u32 %v1861, 2147483648
      %v1926 = vxor.u32 %v1862, 2147483648
      %v1927 = vxor.u32 %v1863, 2147483648
      %v1928 = vxor.u32 %v1864, 2147483648
      %v1929 = vxor.u32 %v1865, 2147483648
      %v1930 = vxor.u32 %v1866, 2147483648
      %v1931 = vxor.u32 %v1867, 2147483648
      %v1932 = vxor.u32 %v1868, 2147483648
      %v1933 = vxor.u32 %v1869, 2147483648
      %v1934 = vxor.u32 %v1870, 2147483648
      %v1935 = vxor.u32 %v1871, 2147483648
      %v1936 = vxor.u32 %v1872, 2147483648
      %v1937 = vxor.u32 %v1873, 2147483648
      %v1938 = vxor.u32 %v1874, 2147483648
      %v1939 = vxor.u32 %v1875, 2147483648
      %v1940 = vxor.u32 %v1876, 2147483648
      %v1941 = vxor.u32 %v1877, 2147483648
      %v1942 = vxor.u32 %v1878, 2147483648
      %v1943 = vxor.u32 %v1879, 2147483648
      %v1944 = vxor.u32 %v1880, 2147483648
      %v1945 = vxor.u32 %v1881, 2147483648
      %v1946 = vxor.u32 %v1882, 2147483648
      %v1947 = vxor.u32 %v1883, 2147483648
      %v1948 = vxor.u32 %v1884, 2147483648
      %v1949 = vxor.u32 %v1885, 2147483648
      %v1950 = vxor.u32 %v1886, 2147483648
      %v1951 = vxor.u32 %v1887, 2147483648
      %v1952 = vxor.u32 %v1888, 2147483648
      %v1953 = vxor.u32 %v1889, 2147483648
      %v1954 = vmul.f32 %v1890, 1.442695
      %v1955 = vpow.pop %v1954
      %v1956 = vmul.f32 %v1891, 1.442695
      %v1957 = vpow.pop %v1956
      %v1958 = vmul.f32 %v1892, 1.442695
      %v1959 = vpow.pop %v1958
      %v1960 = vmul.f32 %v1893, 1.442695
      %v1961 = vpow.pop %v1960
      %v1962 = vmul.f32 %v1894, 1.442695
      %v1963 = vpow.pop %v1962
      %v1964 = vmul.f32 %v1895, 1.442695
      %v1965 = vpow.pop %v1964
      %v1966 = vmul.f32 %v1896, 1.442695
      %v1967 = vpow.pop %v1966
      %v1968 = vmul.f32 %v1897, 1.442695
      %v1969 = vpow.pop %v1968
      %v1970 = vmul.f32 %v1898, 1.442695
      %v1971 = vpow.pop %v1970
      %v1972 = vmul.f32 %v1899, 1.442695
      %v1973 = vpow.pop %v1972
      %v1974 = vmul.f32 %v1900, 1.442695
      %v1975 = vpow.pop %v1974
      %v1976 = vmul.f32 %v1901, 1.442695
      %v1977 = vpow.pop %v1976
      %v1978 = vmul.f32 %v1902, 1.442695
      %v1979 = vpow.pop %v1978
      %v1980 = vmul.f32 %v1903, 1.442695
      %v1981 = vpow.pop %v1980
      %v1982 = vmul.f32 %v1904, 1.442695
      %v1983 = vpow.pop %v1982
      %v1984 = vmul.f32 %v1905, 1.442695
      %v1985 = vpow.pop %v1984
      %v1986 = vmul.f32 %v1906, 1.442695
      %v1987 = vpow.pop %v1986
      %v1988 = vmul.f32 %v1907, 1.442695
      %v1989 = vpow.pop %v1988
      %v1990 = vmul.f32 %v1908, 1.442695
      %v1991 = vpow.pop %v1990
      %v1992 = vmul.f32 %v1909, 1.442695
      %v1993 = vpow.pop %v1992
      %v1994 = vmul.f32 %v1910, 1.442695
      %v1995 = vpow.pop %v1994
      %v1996 = vmul.f32 %v1911, 1.442695
      %v1997 = vpow.pop %v1996
      %v1998 = vmul.f32 %v1912, 1.442695
      %v1999 = vpow.pop %v1998
      %v2000 = vmul.f32 %v1913, 1.442695
      %v2001 = vpow.pop %v2000
      %v2002 = vmul.f32 %v1914, 1.442695
      %v2003 = vpow.pop %v2002
      %v2004 = vmul.f32 %v1915, 1.442695
      %v2005 = vpow.pop %v2004
      %v2006 = vmul.f32 %v1916, 1.442695
      %v2007 = vpow.pop %v2006
      %v2008 = vmul.f32 %v1917, 1.442695
      %v2009 = vpow.pop %v2008
      %v2010 = vmul.f32 %v1918, 1.442695
      %v2011 = vpow.pop %v2010
      %v2012 = vmul.f32 %v1919, 1.442695
      %v2013 = vpow.pop %v2012
      %v2014 = vmul.f32 %v1920, 1.442695
      %v2015 = vpow.pop %v2014
      %v2016 = vmul.f32 %v1921, 1.442695
      %v2017 = vpow.pop %v2016
      %v2018 = vmul.f32 %v1922, 1.442695
      %v2019 = vpow.pop %v2018
      %v2020 = vmul.f32 %v1923, 1.442695
      %v2021 = vpow.pop %v2020
      %v2022 = vmul.f32 %v1924, 1.442695
      %v2023 = vpow.pop %v2022
      %v2024 = vmul.f32 %v1925, 1.442695
      %v2025 = vpow.pop %v2024
      %v2026 = vmul.f32 %v1926, 1.442695
      %v2027 = vpow.pop %v2026
      %v2028 = vmul.f32 %v1927, 1.442695
      %v2029 = vpow.pop %v2028
      %v2030 = vmul.f32 %v1928, 1.442695
      %v2031 = vpow.pop %v2030
      %v2032 = vmul.f32 %v1929, 1.442695
      %v2033 = vpow.pop %v2032
      %v2034 = vmul.f32 %v1930, 1.442695
      %v2035 = vpow.pop %v2034
      %v2036 = vmul.f32 %v1931, 1.442695
      %v2037 = vpow.pop %v2036
      %v2038 = vmul.f32 %v1932, 1.442695
      %v2039 = vpow.pop %v2038
      %v2040 = vmul.f32 %v1933, 1.442695
      %v2041 = vpow.pop %v2040
      %v2042 = vmul.f32 %v1934, 1.442695
      %v2043 = vpow.pop %v2042
      %v2044 = vmul.f32 %v1935, 1.442695
      %v2045 = vpow.pop %v2044
      %v2046 = vmul.f32 %v1936, 1.442695
      %v2047 = vpow.pop %v2046
      %v2048 = vmul.f32 %v1937, 1.442695
      %v2049 = vpow.pop %v2048
      %v2050 = vmul.f32 %v1938, 1.442695
      %v2051 = vpow.pop %v2050
      %v2052 = vmul.f32 %v1939, 1.442695
      %v2053 = vpow.pop %v2052
      %v2054 = vmul.f32 %v1940, 1.442695
      %v2055 = vpow.pop %v2054
      %v2056 = vmul.f32 %v1941, 1.442695
      %v2057 = vpow.pop %v2056
      %v2058 = vmul.f32 %v1942, 1.442695
      %v2059 = vpow.pop %v2058
      %v2060 = vmul.f32 %v1943, 1.442695
      %v2061 = vpow.pop %v2060
      %v2062 = vmul.f32 %v1944, 1.442695
      %v2063 = vpow.pop %v2062
      %v2064 = vmul.f32 %v1945, 1.442695
      %v2065 = vpow.pop %v2064
      %v2066 = vmul.f32 %v1946, 1.442695
      %v2067 = vpow.pop %v2066
      %v2068 = vmul.f32 %v1947, 1.442695
      %v2069 = vpow.pop %v2068
      %v2070 = vmul.f32 %v1948, 1.442695
      %v2071 = vpow.pop %v2070
      %v2072 = vmul.f32 %v1949, 1.442695
      %v2073 = vpow.pop %v2072
      %v2074 = vmul.f32 %v1950, 1.442695
      %v2075 = vpow.pop %v2074
      %v2076 = vmul.f32 %v1951, 1.442695
      %v2077 = vpow.pop %v2076
      %v2078 = vmul.f32 %v1952, 1.442695
      %v2079 = vpow.pop %v2078
      %v2080 = vmul.f32 %v1953, 1.442695
      %v2081 = vpow.pop %v2080
      %v2082 = vadd.f32 %v1955, 1.0
      %v2083 = vadd.f32 %v1957, 1.0
      %v2084 = vadd.f32 %v1959, 1.0
      %v2085 = vadd.f32 %v1961, 1.0
      %v2086 = vadd.f32 %v1963, 1.0
      %v2087 = vadd.f32 %v1965, 1.0
      %v2088 = vadd.f32 %v1967, 1.0
      %v2089 = vadd.f32 %v1969, 1.0
      %v2090 = vadd.f32 %v1971, 1.0
      %v2091 = vadd.f32 %v1973, 1.0
      %v2092 = vadd.f32 %v1975, 1.0
      %v2093 = vadd.f32 %v1977, 1.0
      %v2094 = vadd.f32 %v1979, 1.0
      %v2095 = vadd.f32 %v1981, 1.0
      %v2096 = vadd.f32 %v1983, 1.0
      %v2097 = vadd.f32 %v1985, 1.0
      %v2098 = vadd.f32 %v1987, 1.0
      %v2099 = vadd.f32 %v1989, 1.0
      %v2100 = vadd.f32 %v1991, 1.0
      %v2101 = vadd.f32 %v1993, 1.0
      %v2102 = vadd.f32 %v1995, 1.0
      %v2103 = vadd.f32 %v1997, 1.0
      %v2104 = vadd.f32 %v1999, 1.0
      %v2105 = vadd.f32 %v2001, 1.0
      %v2106 = vadd.f32 %v2003, 1.0
      %v2107 = vadd.f32 %v2005, 1.0
      %v2108 = vadd.f32 %v2007, 1.0
      %v2109 = vadd.f32 %v2009, 1.0
      %v2110 = vadd.f32 %v2011, 1.0
      %v2111 = vadd.f32 %v2013, 1.0
      %v2112 = vadd.f32 %v2015, 1.0
      %v2113 = vadd.f32 %v2017, 1.0
      %v2114 = vadd.f32 %v2019, 1.0
      %v2115 = vadd.f32 %v2021, 1.0
      %v2116 = vadd.f32 %v2023, 1.0
      %v2117 = vadd.f32 %v2025, 1.0
      %v2118 = vadd.f32 %v2027, 1.0
      %v2119 = vadd.f32 %v2029, 1.0
      %v2120 = vadd.f32 %v2031, 1.0
      %v2121 = vadd.f32 %v2033, 1.0
      %v2122 = vadd.f32 %v2035, 1.0
      %v2123 = vadd.f32 %v2037, 1.0
      %v2124 = vadd.f32 %v2039, 1.0
      %v2125 = vadd.f32 %v2041, 1.0
      %v2126 = vadd.f32 %v2043, 1.0
      %v2127 = vadd.f32 %v2045, 1.0
      %v2128 = vadd.f32 %v2047, 1.0
      %v2129 = vadd.f32 %v2049, 1.0
      %v2130 = vadd.f32 %v2051, 1.0
      %v2131 = vadd.f32 %v2053, 1.0
      %v2132 = vadd.f32 %v2055, 1.0
      %v2133 = vadd.f32 %v2057, 1.0
      %v2134 = vadd.f32 %v2059, 1.0
      %v2135 = vadd.f32 %v2061, 1.0
      %v2136 = vadd.f32 %v2063, 1.0
      %v2137 = vadd.f32 %v2065, 1.0
      %v2138 = vadd.f32 %v2067, 1.0
      %v2139 = vadd.f32 %v2069, 1.0
      %v2140 = vadd.f32 %v2071, 1.0
      %v2141 = vadd.f32 %v2073, 1.0
      %v2142 = vadd.f32 %v2075, 1.0
      %v2143 = vadd.f32 %v2077, 1.0
      %v2144 = vadd.f32 %v2079, 1.0
      %v2145 = vadd.f32 %v2081, 1.0
      %v2146 = vrcp.pop %v2082
      %v2147 = vmul.f32 %v2082, %v2146
      %v2148 = vsub.f32 1.0, %v2147
      %v2149 = vmul.f32 %v2146, %v2148
      %v2150 = vadd.f32 %v2146, %v2149
      %vm2151 = vweird.f32 %v2082
      %vm2152 = vweird.f32 %v2146
      %vm2153 = vmor %vm2151, %vm2152
      %v2154 = vsel %vm2153, %v2146, %v2150
      %v2155 = vand.u32 2147483647, %v2082
      %vm2156 = vcmp.eq.f32.partialorder %v2155, 8.507059e+37
      %v2157 = vand.u32 %v2082, 2147483648
      %v2158 = vor.u32 1.1754944e-38, %v2157
      %v2159 = vsel %vm2156, %v2158, %v2154
      %v2160 = vmul.f32 1.0, %v2159
      %v2161 = vrcp.pop %v2083
      %v2162 = vmul.f32 %v2083, %v2161
      %v2163 = vsub.f32 1.0, %v2162
      %v2164 = vmul.f32 %v2161, %v2163
      %v2165 = vadd.f32 %v2161, %v2164
      %vm2166 = vweird.f32 %v2083
      %vm2167 = vweird.f32 %v2161
      %vm2168 = vmor %vm2166, %vm2167
      %v2169 = vsel %vm2168, %v2161, %v2165
      %v2170 = vand.u32 2147483647, %v2083
      %vm2171 = vcmp.eq.f32.partialorder %v2170, 8.507059e+37
      %v2172 = vand.u32 %v2083, 2147483648
      %v2173 = vor.u32 1.1754944e-38, %v2172
      %v2174 = vsel %vm2171, %v2173, %v2169
      %v2175 = vmul.f32 1.0, %v2174
      %v2176 = vrcp.pop %v2084
      %v2177 = vmul.f32 %v2084, %v2176
      %v2178 = vsub.f32 1.0, %v2177
      %v2179 = vmul.f32 %v2176, %v2178
      %v2180 = vadd.f32 %v2176, %v2179
      %vm2181 = vweird.f32 %v2084
      %vm2182 = vweird.f32 %v2176
      %vm2183 = vmor %vm2181, %vm2182
      %v2184 = vsel %vm2183, %v2176, %v2180
      %v2185 = vand.u32 2147483647, %v2084
      %vm2186 = vcmp.eq.f32.partialorder %v2185, 8.507059e+37
      %v2187 = vand.u32 %v2084, 2147483648
      %v2188 = vor.u32 1.1754944e-38, %v2187
      %v2189 = vsel %vm2186, %v2188, %v2184
      %v2190 = vmul.f32 1.0, %v2189
      %v2191 = vrcp.pop %v2085
      %v2192 = vmul.f32 %v2085, %v2191
      %v2193 = vsub.f32 1.0, %v2192
      %v2194 = vmul.f32 %v2191, %v2193
      %v2195 = vadd.f32 %v2191, %v2194
      %vm2196 = vweird.f32 %v2085
      %vm2197 = vweird.f32 %v2191
      %vm2198 = vmor %vm2196, %vm2197
      %v2199 = vsel %vm2198, %v2191, %v2195
      %v2200 = vand.u32 2147483647, %v2085
      %vm2201 = vcmp.eq.f32.partialorder %v2200, 8.507059e+37
      %v2202 = vand.u32 %v2085, 2147483648
      %v2203 = vor.u32 1.1754944e-38, %v2202
      %v2204 = vsel %vm2201, %v2203, %v2199
      %v2205 = vmul.f32 1.0, %v2204
      %v2206 = vrcp.pop %v2086
      %v2207 = vmul.f32 %v2086, %v2206
      %v2208 = vsub.f32 1.0, %v2207
      %v2209 = vmul.f32 %v2206, %v2208
      %v2210 = vadd.f32 %v2206, %v2209
      %vm2211 = vweird.f32 %v2086
      %vm2212 = vweird.f32 %v2206
      %vm2213 = vmor %vm2211, %vm2212
      %v2214 = vsel %vm2213, %v2206, %v2210
      %v2215 = vand.u32 2147483647, %v2086
      %vm2216 = vcmp.eq.f32.partialorder %v2215, 8.507059e+37
      %v2217 = vand.u32 %v2086, 2147483648
      %v2218 = vor.u32 1.1754944e-38, %v2217
      %v2219 = vsel %vm2216, %v2218, %v2214
      %v2220 = vmul.f32 1.0, %v2219
      %v2221 = vrcp.pop %v2087
      %v2222 = vmul.f32 %v2087, %v2221
      %v2223 = vsub.f32 1.0, %v2222
      %v2224 = vmul.f32 %v2221, %v2223
      %v2225 = vadd.f32 %v2221, %v2224
      %vm2226 = vweird.f32 %v2087
      %vm2227 = vweird.f32 %v2221
      %vm2228 = vmor %vm2226, %vm2227
      %v2229 = vsel %vm2228, %v2221, %v2225
      %v2230 = vand.u32 2147483647, %v2087
      %vm2231 = vcmp.eq.f32.partialorder %v2230, 8.507059e+37
      %v2232 = vand.u32 %v2087, 2147483648
      %v2233 = vor.u32 1.1754944e-38, %v2232
      %v2234 = vsel %vm2231, %v2233, %v2229
      %v2235 = vmul.f32 1.0, %v2234
      %v2236 = vrcp.pop %v2088
      %v2237 = vmul.f32 %v2088, %v2236
      %v2238 = vsub.f32 1.0, %v2237
      %v2239 = vmul.f32 %v2236, %v2238
      %v2240 = vadd.f32 %v2236, %v2239
      %vm2241 = vweird.f32 %v2088
      %vm2242 = vweird.f32 %v2236
      %vm2243 = vmor %vm2241, %vm2242
      %v2244 = vsel %vm2243, %v2236, %v2240
      %v2245 = vand.u32 2147483647, %v2088
      %vm2246 = vcmp.eq.f32.partialorder %v2245, 8.507059e+37
      %v2247 = vand.u32 %v2088, 2147483648
      %v2248 = vor.u32 1.1754944e-38, %v2247
      %v2249 = vsel %vm2246, %v2248, %v2244
      %v2250 = vmul.f32 1.0, %v2249
      %v2251 = vrcp.pop %v2089
      %v2252 = vmul.f32 %v2089, %v2251
      %v2253 = vsub.f32 1.0, %v2252
      %v2254 = vmul.f32 %v2251, %v2253
      %v2255 = vadd.f32 %v2251, %v2254
      %vm2256 = vweird.f32 %v2089
      %vm2257 = vweird.f32 %v2251
      %vm2258 = vmor %vm2256, %vm2257
      %v2259 = vsel %vm2258, %v2251, %v2255
      %v2260 = vand.u32 2147483647, %v2089
      %vm2261 = vcmp.eq.f32.partialorder %v2260, 8.507059e+37
      %v2262 = vand.u32 %v2089, 2147483648
      %v2263 = vor.u32 1.1754944e-38, %v2262
      %v2264 = vsel %vm2261, %v2263, %v2259
      %v2265 = vmul.f32 1.0, %v2264
      %v2266 = vrcp.pop %v2090
      %v2267 = vmul.f32 %v2090, %v2266
      %v2268 = vsub.f32 1.0, %v2267
      %v2269 = vmul.f32 %v2266, %v2268
      %v2270 = vadd.f32 %v2266, %v2269
      %vm2271 = vweird.f32 %v2090
      %vm2272 = vweird.f32 %v2266
      %vm2273 = vmor %vm2271, %vm2272
      %v2274 = vsel %vm2273, %v2266, %v2270
      %v2275 = vand.u32 2147483647, %v2090
      %vm2276 = vcmp.eq.f32.partialorder %v2275, 8.507059e+37
      %v2277 = vand.u32 %v2090, 2147483648
      %v2278 = vor.u32 1.1754944e-38, %v2277
      %v2279 = vsel %vm2276, %v2278, %v2274
      %v2280 = vmul.f32 1.0, %v2279
      %v2281 = vrcp.pop %v2091
      %v2282 = vmul.f32 %v2091, %v2281
      %v2283 = vsub.f32 1.0, %v2282
      %v2284 = vmul.f32 %v2281, %v2283
      %v2285 = vadd.f32 %v2281, %v2284
      %vm2286 = vweird.f32 %v2091
      %vm2287 = vweird.f32 %v2281
      %vm2288 = vmor %vm2286, %vm2287
      %v2289 = vsel %vm2288, %v2281, %v2285
      %v2290 = vand.u32 2147483647, %v2091
      %vm2291 = vcmp.eq.f32.partialorder %v2290, 8.507059e+37
      %v2292 = vand.u32 %v2091, 2147483648
      %v2293 = vor.u32 1.1754944e-38, %v2292
      %v2294 = vsel %vm2291, %v2293, %v2289
      %v2295 = vmul.f32 1.0, %v2294
      %v2296 = vrcp.pop %v2092
      %v2297 = vmul.f32 %v2092, %v2296
      %v2298 = vsub.f32 1.0, %v2297
      %v2299 = vmul.f32 %v2296, %v2298
      %v2300 = vadd.f32 %v2296, %v2299
      %vm2301 = vweird.f32 %v2092
      %vm2302 = vweird.f32 %v2296
      %vm2303 = vmor %vm2301, %vm2302
      %v2304 = vsel %vm2303, %v2296, %v2300
      %v2305 = vand.u32 2147483647, %v2092
      %vm2306 = vcmp.eq.f32.partialorder %v2305, 8.507059e+37
      %v2307 = vand.u32 %v2092, 2147483648
      %v2308 = vor.u32 1.1754944e-38, %v2307
      %v2309 = vsel %vm2306, %v2308, %v2304
      %v2310 = vmul.f32 1.0, %v2309
      %v2311 = vrcp.pop %v2093
      %v2312 = vmul.f32 %v2093, %v2311
      %v2313 = vsub.f32 1.0, %v2312
      %v2314 = vmul.f32 %v2311, %v2313
      %v2315 = vadd.f32 %v2311, %v2314
      %vm2316 = vweird.f32 %v2093
      %vm2317 = vweird.f32 %v2311
      %vm2318 = vmor %vm2316, %vm2317
      %v2319 = vsel %vm2318, %v2311, %v2315
      %v2320 = vand.u32 2147483647, %v2093
      %vm2321 = vcmp.eq.f32.partialorder %v2320, 8.507059e+37
      %v2322 = vand.u32 %v2093, 2147483648
      %v2323 = vor.u32 1.1754944e-38, %v2322
      %v2324 = vsel %vm2321, %v2323, %v2319
      %v2325 = vmul.f32 1.0, %v2324
      %v2326 = vrcp.pop %v2094
      %v2327 = vmul.f32 %v2094, %v2326
      %v2328 = vsub.f32 1.0, %v2327
      %v2329 = vmul.f32 %v2326, %v2328
      %v2330 = vadd.f32 %v2326, %v2329
      %vm2331 = vweird.f32 %v2094
      %vm2332 = vweird.f32 %v2326
      %vm2333 = vmor %vm2331, %vm2332
      %v2334 = vsel %vm2333, %v2326, %v2330
      %v2335 = vand.u32 2147483647, %v2094
      %vm2336 = vcmp.eq.f32.partialorder %v2335, 8.507059e+37
      %v2337 = vand.u32 %v2094, 2147483648
      %v2338 = vor.u32 1.1754944e-38, %v2337
      %v2339 = vsel %vm2336, %v2338, %v2334
      %v2340 = vmul.f32 1.0, %v2339
      %v2341 = vrcp.pop %v2095
      %v2342 = vmul.f32 %v2095, %v2341
      %v2343 = vsub.f32 1.0, %v2342
      %v2344 = vmul.f32 %v2341, %v2343
      %v2345 = vadd.f32 %v2341, %v2344
      %vm2346 = vweird.f32 %v2095
      %vm2347 = vweird.f32 %v2341
      %vm2348 = vmor %vm2346, %vm2347
      %v2349 = vsel %vm2348, %v2341, %v2345
      %v2350 = vand.u32 2147483647, %v2095
      %vm2351 = vcmp.eq.f32.partialorder %v2350, 8.507059e+37
      %v2352 = vand.u32 %v2095, 2147483648
      %v2353 = vor.u32 1.1754944e-38, %v2352
      %v2354 = vsel %vm2351, %v2353, %v2349
      %v2355 = vmul.f32 1.0, %v2354
      %v2356 = vrcp.pop %v2096
      %v2357 = vmul.f32 %v2096, %v2356
      %v2358 = vsub.f32 1.0, %v2357
      %v2359 = vmul.f32 %v2356, %v2358
      %v2360 = vadd.f32 %v2356, %v2359
      %vm2361 = vweird.f32 %v2096
      %vm2362 = vweird.f32 %v2356
      %vm2363 = vmor %vm2361, %vm2362
      %v2364 = vsel %vm2363, %v2356, %v2360
      %v2365 = vand.u32 2147483647, %v2096
      %vm2366 = vcmp.eq.f32.partialorder %v2365, 8.507059e+37
      %v2367 = vand.u32 %v2096, 2147483648
      %v2368 = vor.u32 1.1754944e-38, %v2367
      %v2369 = vsel %vm2366, %v2368, %v2364
      %v2370 = vmul.f32 1.0, %v2369
      %v2371 = vrcp.pop %v2097
      %v2372 = vmul.f32 %v2097, %v2371
      %v2373 = vsub.f32 1.0, %v2372
      %v2374 = vmul.f32 %v2371, %v2373
      %v2375 = vadd.f32 %v2371, %v2374
      %vm2376 = vweird.f32 %v2097
      %vm2377 = vweird.f32 %v2371
      %vm2378 = vmor %vm2376, %vm2377
      %v2379 = vsel %vm2378, %v2371, %v2375
      %v2380 = vand.u32 2147483647, %v2097
      %vm2381 = vcmp.eq.f32.partialorder %v2380, 8.507059e+37
      %v2382 = vand.u32 %v2097, 2147483648
      %v2383 = vor.u32 1.1754944e-38, %v2382
      %v2384 = vsel %vm2381, %v2383, %v2379
      %v2385 = vmul.f32 1.0, %v2384
      %v2386 = vrcp.pop %v2098
      %v2387 = vmul.f32 %v2098, %v2386
      %v2388 = vsub.f32 1.0, %v2387
      %v2389 = vmul.f32 %v2386, %v2388
      %v2390 = vadd.f32 %v2386, %v2389
      %vm2391 = vweird.f32 %v2098
      %vm2392 = vweird.f32 %v2386
      %vm2393 = vmor %vm2391, %vm2392
      %v2394 = vsel %vm2393, %v2386, %v2390
      %v2395 = vand.u32 2147483647, %v2098
      %vm2396 = vcmp.eq.f32.partialorder %v2395, 8.507059e+37
      %v2397 = vand.u32 %v2098, 2147483648
      %v2398 = vor.u32 1.1754944e-38, %v2397
      %v2399 = vsel %vm2396, %v2398, %v2394
      %v2400 = vmul.f32 1.0, %v2399
      %v2401 = vrcp.pop %v2099
      %v2402 = vmul.f32 %v2099, %v2401
      %v2403 = vsub.f32 1.0, %v2402
      %v2404 = vmul.f32 %v2401, %v2403
      %v2405 = vadd.f32 %v2401, %v2404
      %vm2406 = vweird.f32 %v2099
      %vm2407 = vweird.f32 %v2401
      %vm2408 = vmor %vm2406, %vm2407
      %v2409 = vsel %vm2408, %v2401, %v2405
      %v2410 = vand.u32 2147483647, %v2099
      %vm2411 = vcmp.eq.f32.partialorder %v2410, 8.507059e+37
      %v2412 = vand.u32 %v2099, 2147483648
      %v2413 = vor.u32 1.1754944e-38, %v2412
      %v2414 = vsel %vm2411, %v2413, %v2409
      %v2415 = vmul.f32 1.0, %v2414
      %v2416 = vrcp.pop %v2100
      %v2417 = vmul.f32 %v2100, %v2416
      %v2418 = vsub.f32 1.0, %v2417
      %v2419 = vmul.f32 %v2416, %v2418
      %v2420 = vadd.f32 %v2416, %v2419
      %vm2421 = vweird.f32 %v2100
      %vm2422 = vweird.f32 %v2416
      %vm2423 = vmor %vm2421, %vm2422
      %v2424 = vsel %vm2423, %v2416, %v2420
      %v2425 = vand.u32 2147483647, %v2100
      %vm2426 = vcmp.eq.f32.partialorder %v2425, 8.507059e+37
      %v2427 = vand.u32 %v2100, 2147483648
      %v2428 = vor.u32 1.1754944e-38, %v2427
      %v2429 = vsel %vm2426, %v2428, %v2424
      %v2430 = vmul.f32 1.0, %v2429
      %v2431 = vrcp.pop %v2101
      %v2432 = vmul.f32 %v2101, %v2431
      %v2433 = vsub.f32 1.0, %v2432
      %v2434 = vmul.f32 %v2431, %v2433
      %v2435 = vadd.f32 %v2431, %v2434
      %vm2436 = vweird.f32 %v2101
      %vm2437 = vweird.f32 %v2431
      %vm2438 = vmor %vm2436, %vm2437
      %v2439 = vsel %vm2438, %v2431, %v2435
      %v2440 = vand.u32 2147483647, %v2101
      %vm2441 = vcmp.eq.f32.partialorder %v2440, 8.507059e+37
      %v2442 = vand.u32 %v2101, 2147483648
      %v2443 = vor.u32 1.1754944e-38, %v2442
      %v2444 = vsel %vm2441, %v2443, %v2439
      %v2445 = vmul.f32 1.0, %v2444
      %v2446 = vrcp.pop %v2102
      %v2447 = vmul.f32 %v2102, %v2446
      %v2448 = vsub.f32 1.0, %v2447
      %v2449 = vmul.f32 %v2446, %v2448
      %v2450 = vadd.f32 %v2446, %v2449
      %vm2451 = vweird.f32 %v2102
      %vm2452 = vweird.f32 %v2446
      %vm2453 = vmor %vm2451, %vm2452
      %v2454 = vsel %vm2453, %v2446, %v2450
      %v2455 = vand.u32 2147483647, %v2102
      %vm2456 = vcmp.eq.f32.partialorder %v2455, 8.507059e+37
      %v2457 = vand.u32 %v2102, 2147483648
      %v2458 = vor.u32 1.1754944e-38, %v2457
      %v2459 = vsel %vm2456, %v2458, %v2454
      %v2460 = vmul.f32 1.0, %v2459
      %v2461 = vrcp.pop %v2103
      %v2462 = vmul.f32 %v2103, %v2461
      %v2463 = vsub.f32 1.0, %v2462
      %v2464 = vmul.f32 %v2461, %v2463
      %v2465 = vadd.f32 %v2461, %v2464
      %vm2466 = vweird.f32 %v2103
      %vm2467 = vweird.f32 %v2461
      %vm2468 = vmor %vm2466, %vm2467
      %v2469 = vsel %vm2468, %v2461, %v2465
      %v2470 = vand.u32 2147483647, %v2103
      %vm2471 = vcmp.eq.f32.partialorder %v2470, 8.507059e+37
      %v2472 = vand.u32 %v2103, 2147483648
      %v2473 = vor.u32 1.1754944e-38, %v2472
      %v2474 = vsel %vm2471, %v2473, %v2469
      %v2475 = vmul.f32 1.0, %v2474
      %v2476 = vrcp.pop %v2104
      %v2477 = vmul.f32 %v2104, %v2476
      %v2478 = vsub.f32 1.0, %v2477
      %v2479 = vmul.f32 %v2476, %v2478
      %v2480 = vadd.f32 %v2476, %v2479
      %vm2481 = vweird.f32 %v2104
      %vm2482 = vweird.f32 %v2476
      %vm2483 = vmor %vm2481, %vm2482
      %v2484 = vsel %vm2483, %v2476, %v2480
      %v2485 = vand.u32 2147483647, %v2104
      %vm2486 = vcmp.eq.f32.partialorder %v2485, 8.507059e+37
      %v2487 = vand.u32 %v2104, 2147483648
      %v2488 = vor.u32 1.1754944e-38, %v2487
      %v2489 = vsel %vm2486, %v2488, %v2484
      %v2490 = vmul.f32 1.0, %v2489
      %v2491 = vrcp.pop %v2105
      %v2492 = vmul.f32 %v2105, %v2491
      %v2493 = vsub.f32 1.0, %v2492
      %v2494 = vmul.f32 %v2491, %v2493
      %v2495 = vadd.f32 %v2491, %v2494
      %vm2496 = vweird.f32 %v2105
      %vm2497 = vweird.f32 %v2491
      %vm2498 = vmor %vm2496, %vm2497
      %v2499 = vsel %vm2498, %v2491, %v2495
      %v2500 = vand.u32 2147483647, %v2105
      %vm2501 = vcmp.eq.f32.partialorder %v2500, 8.507059e+37
      %v2502 = vand.u32 %v2105, 2147483648
      %v2503 = vor.u32 1.1754944e-38, %v2502
      %v2504 = vsel %vm2501, %v2503, %v2499
      %v2505 = vmul.f32 1.0, %v2504
      %v2506 = vrcp.pop %v2106
      %v2507 = vmul.f32 %v2106, %v2506
      %v2508 = vsub.f32 1.0, %v2507
      %v2509 = vmul.f32 %v2506, %v2508
      %v2510 = vadd.f32 %v2506, %v2509
      %vm2511 = vweird.f32 %v2106
      %vm2512 = vweird.f32 %v2506
      %vm2513 = vmor %vm2511, %vm2512
      %v2514 = vsel %vm2513, %v2506, %v2510
      %v2515 = vand.u32 2147483647, %v2106
      %vm2516 = vcmp.eq.f32.partialorder %v2515, 8.507059e+37
      %v2517 = vand.u32 %v2106, 2147483648
      %v2518 = vor.u32 1.1754944e-38, %v2517
      %v2519 = vsel %vm2516, %v2518, %v2514
      %v2520 = vmul.f32 1.0, %v2519
      %v2521 = vrcp.pop %v2107
      %v2522 = vmul.f32 %v2107, %v2521
      %v2523 = vsub.f32 1.0, %v2522
      %v2524 = vmul.f32 %v2521, %v2523
      %v2525 = vadd.f32 %v2521, %v2524
      %vm2526 = vweird.f32 %v2107
      %vm2527 = vweird.f32 %v2521
      %vm2528 = vmor %vm2526, %vm2527
      %v2529 = vsel %vm2528, %v2521, %v2525
      %v2530 = vand.u32 2147483647, %v2107
      %vm2531 = vcmp.eq.f32.partialorder %v2530, 8.507059e+37
      %v2532 = vand.u32 %v2107, 2147483648
      %v2533 = vor.u32 1.1754944e-38, %v2532
      %v2534 = vsel %vm2531, %v2533, %v2529
      %v2535 = vmul.f32 1.0, %v2534
      %v2536 = vrcp.pop %v2108
      %v2537 = vmul.f32 %v2108, %v2536
      %v2538 = vsub.f32 1.0, %v2537
      %v2539 = vmul.f32 %v2536, %v2538
      %v2540 = vadd.f32 %v2536, %v2539
      %vm2541 = vweird.f32 %v2108
      %vm2542 = vweird.f32 %v2536
      %vm2543 = vmor %vm2541, %vm2542
      %v2544 = vsel %vm2543, %v2536, %v2540
      %v2545 = vand.u32 2147483647, %v2108
      %vm2546 = vcmp.eq.f32.partialorder %v2545, 8.507059e+37
      %v2547 = vand.u32 %v2108, 2147483648
      %v2548 = vor.u32 1.1754944e-38, %v2547
      %v2549 = vsel %vm2546, %v2548, %v2544
      %v2550 = vmul.f32 1.0, %v2549
      %v2551 = vrcp.pop %v2109
      %v2552 = vmul.f32 %v2109, %v2551
      %v2553 = vsub.f32 1.0, %v2552
      %v2554 = vmul.f32 %v2551, %v2553
      %v2555 = vadd.f32 %v2551, %v2554
      %vm2556 = vweird.f32 %v2109
      %vm2557 = vweird.f32 %v2551
      %vm2558 = vmor %vm2556, %vm2557
      %v2559 = vsel %vm2558, %v2551, %v2555
      %v2560 = vand.u32 2147483647, %v2109
      %vm2561 = vcmp.eq.f32.partialorder %v2560, 8.507059e+37
      %v2562 = vand.u32 %v2109, 2147483648
      %v2563 = vor.u32 1.1754944e-38, %v2562
      %v2564 = vsel %vm2561, %v2563, %v2559
      %v2565 = vmul.f32 1.0, %v2564
      %v2566 = vrcp.pop %v2110
      %v2567 = vmul.f32 %v2110, %v2566
      %v2568 = vsub.f32 1.0, %v2567
      %v2569 = vmul.f32 %v2566, %v2568
      %v2570 = vadd.f32 %v2566, %v2569
      %vm2571 = vweird.f32 %v2110
      %vm2572 = vweird.f32 %v2566
      %vm2573 = vmor %vm2571, %vm2572
      %v2574 = vsel %vm2573, %v2566, %v2570
      %v2575 = vand.u32 2147483647, %v2110
      %vm2576 = vcmp.eq.f32.partialorder %v2575, 8.507059e+37
      %v2577 = vand.u32 %v2110, 2147483648
      %v2578 = vor.u32 1.1754944e-38, %v2577
      %v2579 = vsel %vm2576, %v2578, %v2574
      %v2580 = vmul.f32 1.0, %v2579
      %v2581 = vrcp.pop %v2111
      %v2582 = vmul.f32 %v2111, %v2581
      %v2583 = vsub.f32 1.0, %v2582
      %v2584 = vmul.f32 %v2581, %v2583
      %v2585 = vadd.f32 %v2581, %v2584
      %vm2586 = vweird.f32 %v2111
      %vm2587 = vweird.f32 %v2581
      %vm2588 = vmor %vm2586, %vm2587
      %v2589 = vsel %vm2588, %v2581, %v2585
      %v2590 = vand.u32 2147483647, %v2111
      %vm2591 = vcmp.eq.f32.partialorder %v2590, 8.507059e+37
      %v2592 = vand.u32 %v2111, 2147483648
      %v2593 = vor.u32 1.1754944e-38, %v2592
      %v2594 = vsel %vm2591, %v2593, %v2589
      %v2595 = vmul.f32 1.0, %v2594
      %v2596 = vrcp.pop %v2112
      %v2597 = vmul.f32 %v2112, %v2596
      %v2598 = vsub.f32 1.0, %v2597
      %v2599 = vmul.f32 %v2596, %v2598
      %v2600 = vadd.f32 %v2596, %v2599
      %vm2601 = vweird.f32 %v2112
      %vm2602 = vweird.f32 %v2596
      %vm2603 = vmor %vm2601, %vm2602
      %v2604 = vsel %vm2603, %v2596, %v2600
      %v2605 = vand.u32 2147483647, %v2112
      %vm2606 = vcmp.eq.f32.partialorder %v2605, 8.507059e+37
      %v2607 = vand.u32 %v2112, 2147483648
      %v2608 = vor.u32 1.1754944e-38, %v2607
      %v2609 = vsel %vm2606, %v2608, %v2604
      %v2610 = vmul.f32 1.0, %v2609
      %v2611 = vrcp.pop %v2113
      %v2612 = vmul.f32 %v2113, %v2611
      %v2613 = vsub.f32 1.0, %v2612
      %v2614 = vmul.f32 %v2611, %v2613
      %v2615 = vadd.f32 %v2611, %v2614
      %vm2616 = vweird.f32 %v2113
      %vm2617 = vweird.f32 %v2611
      %vm2618 = vmor %vm2616, %vm2617
      %v2619 = vsel %vm2618, %v2611, %v2615
      %v2620 = vand.u32 2147483647, %v2113
      %vm2621 = vcmp.eq.f32.partialorder %v2620, 8.507059e+37
      %v2622 = vand.u32 %v2113, 2147483648
      %v2623 = vor.u32 1.1754944e-38, %v2622
      %v2624 = vsel %vm2621, %v2623, %v2619
      %v2625 = vmul.f32 1.0, %v2624
      %v2626 = vrcp.pop %v2114
      %v2627 = vmul.f32 %v2114, %v2626
      %v2628 = vsub.f32 1.0, %v2627
      %v2629 = vmul.f32 %v2626, %v2628
      %v2630 = vadd.f32 %v2626, %v2629
      %vm2631 = vweird.f32 %v2114
      %vm2632 = vweird.f32 %v2626
      %vm2633 = vmor %vm2631, %vm2632
      %v2634 = vsel %vm2633, %v2626, %v2630
      %v2635 = vand.u32 2147483647, %v2114
      %vm2636 = vcmp.eq.f32.partialorder %v2635, 8.507059e+37
      %v2637 = vand.u32 %v2114, 2147483648
      %v2638 = vor.u32 1.1754944e-38, %v2637
      %v2639 = vsel %vm2636, %v2638, %v2634
      %v2640 = vmul.f32 1.0, %v2639
      %v2641 = vrcp.pop %v2115
      %v2642 = vmul.f32 %v2115, %v2641
      %v2643 = vsub.f32 1.0, %v2642
      %v2644 = vmul.f32 %v2641, %v2643
      %v2645 = vadd.f32 %v2641, %v2644
      %vm2646 = vweird.f32 %v2115
      %vm2647 = vweird.f32 %v2641
      %vm2648 = vmor %vm2646, %vm2647
      %v2649 = vsel %vm2648, %v2641, %v2645
      %v2650 = vand.u32 2147483647, %v2115
      %vm2651 = vcmp.eq.f32.partialorder %v2650, 8.507059e+37
      %v2652 = vand.u32 %v2115, 2147483648
      %v2653 = vor.u32 1.1754944e-38, %v2652
      %v2654 = vsel %vm2651, %v2653, %v2649
      %v2655 = vmul.f32 1.0, %v2654
      %v2656 = vrcp.pop %v2116
      %v2657 = vmul.f32 %v2116, %v2656
      %v2658 = vsub.f32 1.0, %v2657
      %v2659 = vmul.f32 %v2656, %v2658
      %v2660 = vadd.f32 %v2656, %v2659
      %vm2661 = vweird.f32 %v2116
      %vm2662 = vweird.f32 %v2656
      %vm2663 = vmor %vm2661, %vm2662
      %v2664 = vsel %vm2663, %v2656, %v2660
      %v2665 = vand.u32 2147483647, %v2116
      %vm2666 = vcmp.eq.f32.partialorder %v2665, 8.507059e+37
      %v2667 = vand.u32 %v2116, 2147483648
      %v2668 = vor.u32 1.1754944e-38, %v2667
      %v2669 = vsel %vm2666, %v2668, %v2664
      %v2670 = vmul.f32 1.0, %v2669
      %v2671 = vrcp.pop %v2117
      %v2672 = vmul.f32 %v2117, %v2671
      %v2673 = vsub.f32 1.0, %v2672
      %v2674 = vmul.f32 %v2671, %v2673
      %v2675 = vadd.f32 %v2671, %v2674
      %vm2676 = vweird.f32 %v2117
      %vm2677 = vweird.f32 %v2671
      %vm2678 = vmor %vm2676, %vm2677
      %v2679 = vsel %vm2678, %v2671, %v2675
      %v2680 = vand.u32 2147483647, %v2117
      %vm2681 = vcmp.eq.f32.partialorder %v2680, 8.507059e+37
      %v2682 = vand.u32 %v2117, 2147483648
      %v2683 = vor.u32 1.1754944e-38, %v2682
      %v2684 = vsel %vm2681, %v2683, %v2679
      %v2685 = vmul.f32 1.0, %v2684
      %v2686 = vrcp.pop %v2118
      %v2687 = vmul.f32 %v2118, %v2686
      %v2688 = vsub.f32 1.0, %v2687
      %v2689 = vmul.f32 %v2686, %v2688
      %v2690 = vadd.f32 %v2686, %v2689
      %vm2691 = vweird.f32 %v2118
      %vm2692 = vweird.f32 %v2686
      %vm2693 = vmor %vm2691, %vm2692
      %v2694 = vsel %vm2693, %v2686, %v2690
      %v2695 = vand.u32 2147483647, %v2118
      %vm2696 = vcmp.eq.f32.partialorder %v2695, 8.507059e+37
      %v2697 = vand.u32 %v2118, 2147483648
      %v2698 = vor.u32 1.1754944e-38, %v2697
      %v2699 = vsel %vm2696, %v2698, %v2694
      %v2700 = vmul.f32 1.0, %v2699
      %v2701 = vrcp.pop %v2119
      %v2702 = vmul.f32 %v2119, %v2701
      %v2703 = vsub.f32 1.0, %v2702
      %v2704 = vmul.f32 %v2701, %v2703
      %v2705 = vadd.f32 %v2701, %v2704
      %vm2706 = vweird.f32 %v2119
      %vm2707 = vweird.f32 %v2701
      %vm2708 = vmor %vm2706, %vm2707
      %v2709 = vsel %vm2708, %v2701, %v2705
      %v2710 = vand.u32 2147483647, %v2119
      %vm2711 = vcmp.eq.f32.partialorder %v2710, 8.507059e+37
      %v2712 = vand.u32 %v2119, 2147483648
      %v2713 = vor.u32 1.1754944e-38, %v2712
      %v2714 = vsel %vm2711, %v2713, %v2709
      %v2715 = vmul.f32 1.0, %v2714
      %v2716 = vrcp.pop %v2120
      %v2717 = vmul.f32 %v2120, %v2716
      %v2718 = vsub.f32 1.0, %v2717
      %v2719 = vmul.f32 %v2716, %v2718
      %v2720 = vadd.f32 %v2716, %v2719
      %vm2721 = vweird.f32 %v2120
      %vm2722 = vweird.f32 %v2716
      %vm2723 = vmor %vm2721, %vm2722
      %v2724 = vsel %vm2723, %v2716, %v2720
      %v2725 = vand.u32 2147483647, %v2120
      %vm2726 = vcmp.eq.f32.partialorder %v2725, 8.507059e+37
      %v2727 = vand.u32 %v2120, 2147483648
      %v2728 = vor.u32 1.1754944e-38, %v2727
      %v2729 = vsel %vm2726, %v2728, %v2724
      %v2730 = vmul.f32 1.0, %v2729
      %v2731 = vrcp.pop %v2121
      %v2732 = vmul.f32 %v2121, %v2731
      %v2733 = vsub.f32 1.0, %v2732
      %v2734 = vmul.f32 %v2731, %v2733
      %v2735 = vadd.f32 %v2731, %v2734
      %vm2736 = vweird.f32 %v2121
      %vm2737 = vweird.f32 %v2731
      %vm2738 = vmor %vm2736, %vm2737
      %v2739 = vsel %vm2738, %v2731, %v2735
      %v2740 = vand.u32 2147483647, %v2121
      %vm2741 = vcmp.eq.f32.partialorder %v2740, 8.507059e+37
      %v2742 = vand.u32 %v2121, 2147483648
      %v2743 = vor.u32 1.1754944e-38, %v2742
      %v2744 = vsel %vm2741, %v2743, %v2739
      %v2745 = vmul.f32 1.0, %v2744
      %v2746 = vrcp.pop %v2122
      %v2747 = vmul.f32 %v2122, %v2746
      %v2748 = vsub.f32 1.0, %v2747
      %v2749 = vmul.f32 %v2746, %v2748
      %v2750 = vadd.f32 %v2746, %v2749
      %vm2751 = vweird.f32 %v2122
      %vm2752 = vweird.f32 %v2746
      %vm2753 = vmor %vm2751, %vm2752
      %v2754 = vsel %vm2753, %v2746, %v2750
      %v2755 = vand.u32 2147483647, %v2122
      %vm2756 = vcmp.eq.f32.partialorder %v2755, 8.507059e+37
      %v2757 = vand.u32 %v2122, 2147483648
      %v2758 = vor.u32 1.1754944e-38, %v2757
      %v2759 = vsel %vm2756, %v2758, %v2754
      %v2760 = vmul.f32 1.0, %v2759
      %v2761 = vrcp.pop %v2123
      %v2762 = vmul.f32 %v2123, %v2761
      %v2763 = vsub.f32 1.0, %v2762
      %v2764 = vmul.f32 %v2761, %v2763
      %v2765 = vadd.f32 %v2761, %v2764
      %vm2766 = vweird.f32 %v2123
      %vm2767 = vweird.f32 %v2761
      %vm2768 = vmor %vm2766, %vm2767
      %v2769 = vsel %vm2768, %v2761, %v2765
      %v2770 = vand.u32 2147483647, %v2123
      %vm2771 = vcmp.eq.f32.partialorder %v2770, 8.507059e+37
      %v2772 = vand.u32 %v2123, 2147483648
      %v2773 = vor.u32 1.1754944e-38, %v2772
      %v2774 = vsel %vm2771, %v2773, %v2769
      %v2775 = vmul.f32 1.0, %v2774
      %v2776 = vrcp.pop %v2124
      %v2777 = vmul.f32 %v2124, %v2776
      %v2778 = vsub.f32 1.0, %v2777
      %v2779 = vmul.f32 %v2776, %v2778
      %v2780 = vadd.f32 %v2776, %v2779
      %vm2781 = vweird.f32 %v2124
      %vm2782 = vweird.f32 %v2776
      %vm2783 = vmor %vm2781, %vm2782
      %v2784 = vsel %vm2783, %v2776, %v2780
      %v2785 = vand.u32 2147483647, %v2124
      %vm2786 = vcmp.eq.f32.partialorder %v2785, 8.507059e+37
      %v2787 = vand.u32 %v2124, 2147483648
      %v2788 = vor.u32 1.1754944e-38, %v2787
      %v2789 = vsel %vm2786, %v2788, %v2784
      %v2790 = vmul.f32 1.0, %v2789
      %v2791 = vrcp.pop %v2125
      %v2792 = vmul.f32 %v2125, %v2791
      %v2793 = vsub.f32 1.0, %v2792
      %v2794 = vmul.f32 %v2791, %v2793
      %v2795 = vadd.f32 %v2791, %v2794
      %vm2796 = vweird.f32 %v2125
      %vm2797 = vweird.f32 %v2791
      %vm2798 = vmor %vm2796, %vm2797
      %v2799 = vsel %vm2798, %v2791, %v2795
      %v2800 = vand.u32 2147483647, %v2125
      %vm2801 = vcmp.eq.f32.partialorder %v2800, 8.507059e+37
      %v2802 = vand.u32 %v2125, 2147483648
      %v2803 = vor.u32 1.1754944e-38, %v2802
      %v2804 = vsel %vm2801, %v2803, %v2799
      %v2805 = vmul.f32 1.0, %v2804
      %v2806 = vrcp.pop %v2126
      %v2807 = vmul.f32 %v2126, %v2806
      %v2808 = vsub.f32 1.0, %v2807
      %v2809 = vmul.f32 %v2806, %v2808
      %v2810 = vadd.f32 %v2806, %v2809
      %vm2811 = vweird.f32 %v2126
      %vm2812 = vweird.f32 %v2806
      %vm2813 = vmor %vm2811, %vm2812
      %v2814 = vsel %vm2813, %v2806, %v2810
      %v2815 = vand.u32 2147483647, %v2126
      %vm2816 = vcmp.eq.f32.partialorder %v2815, 8.507059e+37
      %v2817 = vand.u32 %v2126, 2147483648
      %v2818 = vor.u32 1.1754944e-38, %v2817
      %v2819 = vsel %vm2816, %v2818, %v2814
      %v2820 = vmul.f32 1.0, %v2819
      %v2821 = vrcp.pop %v2127
      %v2822 = vmul.f32 %v2127, %v2821
      %v2823 = vsub.f32 1.0, %v2822
      %v2824 = vmul.f32 %v2821, %v2823
      %v2825 = vadd.f32 %v2821, %v2824
      %vm2826 = vweird.f32 %v2127
      %vm2827 = vweird.f32 %v2821
      %vm2828 = vmor %vm2826, %vm2827
      %v2829 = vsel %vm2828, %v2821, %v2825
      %v2830 = vand.u32 2147483647, %v2127
      %vm2831 = vcmp.eq.f32.partialorder %v2830, 8.507059e+37
      %v2832 = vand.u32 %v2127, 2147483648
      %v2833 = vor.u32 1.1754944e-38, %v2832
      %v2834 = vsel %vm2831, %v2833, %v2829
      %v2835 = vmul.f32 1.0, %v2834
      %v2836 = vrcp.pop %v2128
      %v2837 = vmul.f32 %v2128, %v2836
      %v2838 = vsub.f32 1.0, %v2837
      %v2839 = vmul.f32 %v2836, %v2838
      %v2840 = vadd.f32 %v2836, %v2839
      %vm2841 = vweird.f32 %v2128
      %vm2842 = vweird.f32 %v2836
      %vm2843 = vmor %vm2841, %vm2842
      %v2844 = vsel %vm2843, %v2836, %v2840
      %v2845 = vand.u32 2147483647, %v2128
      %vm2846 = vcmp.eq.f32.partialorder %v2845, 8.507059e+37
      %v2847 = vand.u32 %v2128, 2147483648
      %v2848 = vor.u32 1.1754944e-38, %v2847
      %v2849 = vsel %vm2846, %v2848, %v2844
      %v2850 = vmul.f32 1.0, %v2849
      %v2851 = vrcp.pop %v2129
      %v2852 = vmul.f32 %v2129, %v2851
      %v2853 = vsub.f32 1.0, %v2852
      %v2854 = vmul.f32 %v2851, %v2853
      %v2855 = vadd.f32 %v2851, %v2854
      %vm2856 = vweird.f32 %v2129
      %vm2857 = vweird.f32 %v2851
      %vm2858 = vmor %vm2856, %vm2857
      %v2859 = vsel %vm2858, %v2851, %v2855
      %v2860 = vand.u32 2147483647, %v2129
      %vm2861 = vcmp.eq.f32.partialorder %v2860, 8.507059e+37
      %v2862 = vand.u32 %v2129, 2147483648
      %v2863 = vor.u32 1.1754944e-38, %v2862
      %v2864 = vsel %vm2861, %v2863, %v2859
      %v2865 = vmul.f32 1.0, %v2864
      %v2866 = vrcp.pop %v2130
      %v2867 = vmul.f32 %v2130, %v2866
      %v2868 = vsub.f32 1.0, %v2867
      %v2869 = vmul.f32 %v2866, %v2868
      %v2870 = vadd.f32 %v2866, %v2869
      %vm2871 = vweird.f32 %v2130
      %vm2872 = vweird.f32 %v2866
      %vm2873 = vmor %vm2871, %vm2872
      %v2874 = vsel %vm2873, %v2866, %v2870
      %v2875 = vand.u32 2147483647, %v2130
      %vm2876 = vcmp.eq.f32.partialorder %v2875, 8.507059e+37
      %v2877 = vand.u32 %v2130, 2147483648
      %v2878 = vor.u32 1.1754944e-38, %v2877
      %v2879 = vsel %vm2876, %v2878, %v2874
      %v2880 = vmul.f32 1.0, %v2879
      %v2881 = vrcp.pop %v2131
      %v2882 = vmul.f32 %v2131, %v2881
      %v2883 = vsub.f32 1.0, %v2882
      %v2884 = vmul.f32 %v2881, %v2883
      %v2885 = vadd.f32 %v2881, %v2884
      %vm2886 = vweird.f32 %v2131
      %vm2887 = vweird.f32 %v2881
      %vm2888 = vmor %vm2886, %vm2887
      %v2889 = vsel %vm2888, %v2881, %v2885
      %v2890 = vand.u32 2147483647, %v2131
      %vm2891 = vcmp.eq.f32.partialorder %v2890, 8.507059e+37
      %v2892 = vand.u32 %v2131, 2147483648
      %v2893 = vor.u32 1.1754944e-38, %v2892
      %v2894 = vsel %vm2891, %v2893, %v2889
      %v2895 = vmul.f32 1.0, %v2894
      %v2896 = vrcp.pop %v2132
      %v2897 = vmul.f32 %v2132, %v2896
      %v2898 = vsub.f32 1.0, %v2897
      %v2899 = vmul.f32 %v2896, %v2898
      %v2900 = vadd.f32 %v2896, %v2899
      %vm2901 = vweird.f32 %v2132
      %vm2902 = vweird.f32 %v2896
      %vm2903 = vmor %vm2901, %vm2902
      %v2904 = vsel %vm2903, %v2896, %v2900
      %v2905 = vand.u32 2147483647, %v2132
      %vm2906 = vcmp.eq.f32.partialorder %v2905, 8.507059e+37
      %v2907 = vand.u32 %v2132, 2147483648
      %v2908 = vor.u32 1.1754944e-38, %v2907
      %v2909 = vsel %vm2906, %v2908, %v2904
      %v2910 = vmul.f32 1.0, %v2909
      %v2911 = vrcp.pop %v2133
      %v2912 = vmul.f32 %v2133, %v2911
      %v2913 = vsub.f32 1.0, %v2912
      %v2914 = vmul.f32 %v2911, %v2913
      %v2915 = vadd.f32 %v2911, %v2914
      %vm2916 = vweird.f32 %v2133
      %vm2917 = vweird.f32 %v2911
      %vm2918 = vmor %vm2916, %vm2917
      %v2919 = vsel %vm2918, %v2911, %v2915
      %v2920 = vand.u32 2147483647, %v2133
      %vm2921 = vcmp.eq.f32.partialorder %v2920, 8.507059e+37
      %v2922 = vand.u32 %v2133, 2147483648
      %v2923 = vor.u32 1.1754944e-38, %v2922
      %v2924 = vsel %vm2921, %v2923, %v2919
      %v2925 = vmul.f32 1.0, %v2924
      %v2926 = vrcp.pop %v2134
      %v2927 = vmul.f32 %v2134, %v2926
      %v2928 = vsub.f32 1.0, %v2927
      %v2929 = vmul.f32 %v2926, %v2928
      %v2930 = vadd.f32 %v2926, %v2929
      %vm2931 = vweird.f32 %v2134
      %vm2932 = vweird.f32 %v2926
      %vm2933 = vmor %vm2931, %vm2932
      %v2934 = vsel %vm2933, %v2926, %v2930
      %v2935 = vand.u32 2147483647, %v2134
      %vm2936 = vcmp.eq.f32.partialorder %v2935, 8.507059e+37
      %v2937 = vand.u32 %v2134, 2147483648
      %v2938 = vor.u32 1.1754944e-38, %v2937
      %v2939 = vsel %vm2936, %v2938, %v2934
      %v2940 = vmul.f32 1.0, %v2939
      %v2941 = vrcp.pop %v2135
      %v2942 = vmul.f32 %v2135, %v2941
      %v2943 = vsub.f32 1.0, %v2942
      %v2944 = vmul.f32 %v2941, %v2943
      %v2945 = vadd.f32 %v2941, %v2944
      %vm2946 = vweird.f32 %v2135
      %vm2947 = vweird.f32 %v2941
      %vm2948 = vmor %vm2946, %vm2947
      %v2949 = vsel %vm2948, %v2941, %v2945
      %v2950 = vand.u32 2147483647, %v2135
      %vm2951 = vcmp.eq.f32.partialorder %v2950, 8.507059e+37
      %v2952 = vand.u32 %v2135, 2147483648
      %v2953 = vor.u32 1.1754944e-38, %v2952
      %v2954 = vsel %vm2951, %v2953, %v2949
      %v2955 = vmul.f32 1.0, %v2954
      %v2956 = vrcp.pop %v2136
      %v2957 = vmul.f32 %v2136, %v2956
      %v2958 = vsub.f32 1.0, %v2957
      %v2959 = vmul.f32 %v2956, %v2958
      %v2960 = vadd.f32 %v2956, %v2959
      %vm2961 = vweird.f32 %v2136
      %vm2962 = vweird.f32 %v2956
      %vm2963 = vmor %vm2961, %vm2962
      %v2964 = vsel %vm2963, %v2956, %v2960
      %v2965 = vand.u32 2147483647, %v2136
      %vm2966 = vcmp.eq.f32.partialorder %v2965, 8.507059e+37
      %v2967 = vand.u32 %v2136, 2147483648
      %v2968 = vor.u32 1.1754944e-38, %v2967
      %v2969 = vsel %vm2966, %v2968, %v2964
      %v2970 = vmul.f32 1.0, %v2969
      %v2971 = vrcp.pop %v2137
      %v2972 = vmul.f32 %v2137, %v2971
      %v2973 = vsub.f32 1.0, %v2972
      %v2974 = vmul.f32 %v2971, %v2973
      %v2975 = vadd.f32 %v2971, %v2974
      %vm2976 = vweird.f32 %v2137
      %vm2977 = vweird.f32 %v2971
      %vm2978 = vmor %vm2976, %vm2977
      %v2979 = vsel %vm2978, %v2971, %v2975
      %v2980 = vand.u32 2147483647, %v2137
      %vm2981 = vcmp.eq.f32.partialorder %v2980, 8.507059e+37
      %v2982 = vand.u32 %v2137, 2147483648
      %v2983 = vor.u32 1.1754944e-38, %v2982
      %v2984 = vsel %vm2981, %v2983, %v2979
      %v2985 = vmul.f32 1.0, %v2984
      %v2986 = vrcp.pop %v2138
      %v2987 = vmul.f32 %v2138, %v2986
      %v2988 = vsub.f32 1.0, %v2987
      %v2989 = vmul.f32 %v2986, %v2988
      %v2990 = vadd.f32 %v2986, %v2989
      %vm2991 = vweird.f32 %v2138
      %vm2992 = vweird.f32 %v2986
      %vm2993 = vmor %vm2991, %vm2992
      %v2994 = vsel %vm2993, %v2986, %v2990
      %v2995 = vand.u32 2147483647, %v2138
      %vm2996 = vcmp.eq.f32.partialorder %v2995, 8.507059e+37
      %v2997 = vand.u32 %v2138, 2147483648
      %v2998 = vor.u32 1.1754944e-38, %v2997
      %v2999 = vsel %vm2996, %v2998, %v2994
      %v3000 = vmul.f32 1.0, %v2999
      %v3001 = vrcp.pop %v2139
      %v3002 = vmul.f32 %v2139, %v3001
      %v3003 = vsub.f32 1.0, %v3002
      %v3004 = vmul.f32 %v3001, %v3003
      %v3005 = vadd.f32 %v3001, %v3004
      %vm3006 = vweird.f32 %v2139
      %vm3007 = vweird.f32 %v3001
      %vm3008 = vmor %vm3006, %vm3007
      %v3009 = vsel %vm3008, %v3001, %v3005
      %v3010 = vand.u32 2147483647, %v2139
      %vm3011 = vcmp.eq.f32.partialorder %v3010, 8.507059e+37
      %v3012 = vand.u32 %v2139, 2147483648
      %v3013 = vor.u32 1.1754944e-38, %v3012
      %v3014 = vsel %vm3011, %v3013, %v3009
      %v3015 = vmul.f32 1.0, %v3014
      %v3016 = vrcp.pop %v2140
      %v3017 = vmul.f32 %v2140, %v3016
      %v3018 = vsub.f32 1.0, %v3017
      %v3019 = vmul.f32 %v3016, %v3018
      %v3020 = vadd.f32 %v3016, %v3019
      %vm3021 = vweird.f32 %v2140
      %vm3022 = vweird.f32 %v3016
      %vm3023 = vmor %vm3021, %vm3022
      %v3024 = vsel %vm3023, %v3016, %v3020
      %v3025 = vand.u32 2147483647, %v2140
      %vm3026 = vcmp.eq.f32.partialorder %v3025, 8.507059e+37
      %v3027 = vand.u32 %v2140, 2147483648
      %v3028 = vor.u32 1.1754944e-38, %v3027
      %v3029 = vsel %vm3026, %v3028, %v3024
      %v3030 = vmul.f32 1.0, %v3029
      %v3031 = vrcp.pop %v2141
      %v3032 = vmul.f32 %v2141, %v3031
      %v3033 = vsub.f32 1.0, %v3032
      %v3034 = vmul.f32 %v3031, %v3033
      %v3035 = vadd.f32 %v3031, %v3034
      %vm3036 = vweird.f32 %v2141
      %vm3037 = vweird.f32 %v3031
      %vm3038 = vmor %vm3036, %vm3037
      %v3039 = vsel %vm3038, %v3031, %v3035
      %v3040 = vand.u32 2147483647, %v2141
      %vm3041 = vcmp.eq.f32.partialorder %v3040, 8.507059e+37
      %v3042 = vand.u32 %v2141, 2147483648
      %v3043 = vor.u32 1.1754944e-38, %v3042
      %v3044 = vsel %vm3041, %v3043, %v3039
      %v3045 = vmul.f32 1.0, %v3044
      %v3046 = vrcp.pop %v2142
      %v3047 = vmul.f32 %v2142, %v3046
      %v3048 = vsub.f32 1.0, %v3047
      %v3049 = vmul.f32 %v3046, %v3048
      %v3050 = vadd.f32 %v3046, %v3049
      %vm3051 = vweird.f32 %v2142
      %vm3052 = vweird.f32 %v3046
      %vm3053 = vmor %vm3051, %vm3052
      %v3054 = vsel %vm3053, %v3046, %v3050
      %v3055 = vand.u32 2147483647, %v2142
      %vm3056 = vcmp.eq.f32.partialorder %v3055, 8.507059e+37
      %v3057 = vand.u32 %v2142, 2147483648
      %v3058 = vor.u32 1.1754944e-38, %v3057
      %v3059 = vsel %vm3056, %v3058, %v3054
      %v3060 = vmul.f32 1.0, %v3059
      %v3061 = vrcp.pop %v2143
      %v3062 = vmul.f32 %v2143, %v3061
      %v3063 = vsub.f32 1.0, %v3062
      %v3064 = vmul.f32 %v3061, %v3063
      %v3065 = vadd.f32 %v3061, %v3064
      %vm3066 = vweird.f32 %v2143
      %vm3067 = vweird.f32 %v3061
      %vm3068 = vmor %vm3066, %vm3067
      %v3069 = vsel %vm3068, %v3061, %v3065
      %v3070 = vand.u32 2147483647, %v2143
      %vm3071 = vcmp.eq.f32.partialorder %v3070, 8.507059e+37
      %v3072 = vand.u32 %v2143, 2147483648
      %v3073 = vor.u32 1.1754944e-38, %v3072
      %v3074 = vsel %vm3071, %v3073, %v3069
      %v3075 = vmul.f32 1.0, %v3074
      %v3076 = vrcp.pop %v2144
      %v3077 = vmul.f32 %v2144, %v3076
      %v3078 = vsub.f32 1.0, %v3077
      %v3079 = vmul.f32 %v3076, %v3078
      %v3080 = vadd.f32 %v3076, %v3079
      %vm3081 = vweird.f32 %v2144
      %vm3082 = vweird.f32 %v3076
      %vm3083 = vmor %vm3081, %vm3082
      %v3084 = vsel %vm3083, %v3076, %v3080
      %v3085 = vand.u32 2147483647, %v2144
      %vm3086 = vcmp.eq.f32.partialorder %v3085, 8.507059e+37
      %v3087 = vand.u32 %v2144, 2147483648
      %v3088 = vor.u32 1.1754944e-38, %v3087
      %v3089 = vsel %vm3086, %v3088, %v3084
      %v3090 = vmul.f32 1.0, %v3089
      %v3091 = vrcp.pop %v2145
      %v3092 = vmul.f32 %v2145, %v3091
      %v3093 = vsub.f32 1.0, %v3092
      %v3094 = vmul.f32 %v3091, %v3093
      %v3095 = vadd.f32 %v3091, %v3094
      %vm3096 = vweird.f32 %v2145
      %vm3097 = vweird.f32 %v3091
      %vm3098 = vmor %vm3096, %vm3097
      %v3099 = vsel %vm3098, %v3091, %v3095
      %v3100 = vand.u32 2147483647, %v2145
      %vm3101 = vcmp.eq.f32.partialorder %v3100, 8.507059e+37
      %v3102 = vand.u32 %v2145, 2147483648
      %v3103 = vor.u32 1.1754944e-38, %v3102
      %v3104 = vsel %vm3101, %v3103, %v3099
      %v3105 = vmul.f32 1.0, %v3104
      %v3106 = vmul.f32 %v1826, %v2160
      %v3107 = vmul.f32 %v1827, %v2175
      %v3108 = vmul.f32 %v1828, %v2190
      %v3109 = vmul.f32 %v1829, %v2205
      %v3110 = vmul.f32 %v1830, %v2220
      %v3111 = vmul.f32 %v1831, %v2235
      %v3112 = vmul.f32 %v1832, %v2250
      %v3113 = vmul.f32 %v1833, %v2265
      %v3114 = vmul.f32 %v1834, %v2280
      %v3115 = vmul.f32 %v1835, %v2295
      %v3116 = vmul.f32 %v1836, %v2310
      %v3117 = vmul.f32 %v1837, %v2325
      %v3118 = vmul.f32 %v1838, %v2340
      %v3119 = vmul.f32 %v1839, %v2355
      %v3120 = vmul.f32 %v1840, %v2370
      %v3121 = vmul.f32 %v1841, %v2385
      %v3122 = vmul.f32 %v1842, %v2400
      %v3123 = vmul.f32 %v1843, %v2415
      %v3124 = vmul.f32 %v1844, %v2430
      %v3125 = vmul.f32 %v1845, %v2445
      %v3126 = vmul.f32 %v1846, %v2460
      %v3127 = vmul.f32 %v1847, %v2475
      %v3128 = vmul.f32 %v1848, %v2490
      %v3129 = vmul.f32 %v1849, %v2505
      %v3130 = vmul.f32 %v1850, %v2520
      %v3131 = vmul.f32 %v1851, %v2535
      %v3132 = vmul.f32 %v1852, %v2550
      %v3133 = vmul.f32 %v1853, %v2565
      %v3134 = vmul.f32 %v1854, %v2580
      %v3135 = vmul.f32 %v1855, %v2595
      %v3136 = vmul.f32 %v1856, %v2610
      %v3137 = vmul.f32 %v1857, %v2625
      %v3138 = vmul.f32 %v1858, %v2640
      %v3139 = vmul.f32 %v1859, %v2655
      %v3140 = vmul.f32 %v1860, %v2670
      %v3141 = vmul.f32 %v1861, %v2685
      %v3142 = vmul.f32 %v1862, %v2700
      %v3143 = vmul.f32 %v1863, %v2715
      %v3144 = vmul.f32 %v1864, %v2730
      %v3145 = vmul.f32 %v1865, %v2745
      %v3146 = vmul.f32 %v1866, %v2760
      %v3147 = vmul.f32 %v1867, %v2775
      %v3148 = vmul.f32 %v1868, %v2790
      %v3149 = vmul.f32 %v1869, %v2805
      %v3150 = vmul.f32 %v1870, %v2820
      %v3151 = vmul.f32 %v1871, %v2835
      %v3152 = vmul.f32 %v1872, %v2850
      %v3153 = vmul.f32 %v1873, %v2865
      %v3154 = vmul.f32 %v1874, %v2880
      %v3155 = vmul.f32 %v1875, %v2895
      %v3156 = vmul.f32 %v1876, %v2910
      %v3157 = vmul.f32 %v1877, %v2925
      %v3158 = vmul.f32 %v1878, %v2940
      %v3159 = vmul.f32 %v1879, %v2955
      %v3160 = vmul.f32 %v1880, %v2970
      %v3161 = vmul.f32 %v1881, %v2985
      %v3162 = vmul.f32 %v1882, %v3000
      %v3163 = vmul.f32 %v1883, %v3015
      %v3164 = vmul.f32 %v1884, %v3030
      %v3165 = vmul.f32 %v1885, %v3045
      %v3166 = vmul.f32 %v1886, %v3060
      %v3167 = vmul.f32 %v1887, %v3075
      %v3168 = vmul.f32 %v1888, %v3090
      %v3169 = vmul.f32 %v1889, %v3105
      %v3170 = vld [vmem:[%s10] sm:$0xff]
      %v3171 = vld [vmem:[%s10 + $0x8] sm:$0xff]
      %v3172 = vld [vmem:[%s10 + $0x10] sm:$0xff]
      %v3173 = vld [vmem:[%s10 + $0x18] sm:$0xff]
      %v3174 = vld [vmem:[%s11] sm:$0x1]
      %v3175 = vld [vmem:[%s12] sm:$0x1]
      %vm3176 = vcmask 261120
      %v3178 = vsel %vm3176, %v3106, 0
      %v3181 = vsel %vm3176, %v3107, 0
      %v3184 = vsel %vm3176, %v3108, 0
      %v3187 = vsel %vm3176, %v3109, 0
      %v3190 = vsel %vm3176, %v3110, 0
      %v3193 = vsel %vm3176, %v3111, 0
      %v3196 = vsel %vm3176, %v3112, 0
      %v3199 = vsel %vm3176, %v3113, 0
      %v3202 = vsel %vm3176, %v3114, 0
      %v3205 = vsel %vm3176, %v3115, 0
      %v3208 = vsel %vm3176, %v3116, 0
      %v3211 = vsel %vm3176, %v3117, 0
      %v3214 = vsel %vm3176, %v3118, 0
      %v3217 = vsel %vm3176, %v3119, 0
      %v3220 = vsel %vm3176, %v3120, 0
      %v3223 = vsel %vm3176, %v3121, 0
      %v3226 = vsel %vm3176, %v3122, 0
      %v3229 = vsel %vm3176, %v3123, 0
      %v3232 = vsel %vm3176, %v3124, 0
      %v3235 = vsel %vm3176, %v3125, 0
      %v3238 = vsel %vm3176, %v3126, 0
      %v3241 = vsel %vm3176, %v3127, 0
      %v3244 = vsel %vm3176, %v3128, 0
      %v3247 = vsel %vm3176, %v3129, 0
      %v3250 = vsel %vm3176, %v3130, 0
      %v3253 = vsel %vm3176, %v3131, 0
      %v3256 = vsel %vm3176, %v3132, 0
      %v3259 = vsel %vm3176, %v3133, 0
      %v3262 = vsel %vm3176, %v3134, 0
      %v3265 = vsel %vm3176, %v3135, 0
      %v3268 = vsel %vm3176, %v3136, 0
      %v3271 = vsel %vm3176, %v3137, 0
      %v3274 = vsel %vm3176, %v3138, 0
      %v3277 = vsel %vm3176, %v3139, 0
      %v3280 = vsel %vm3176, %v3140, 0
      %v3283 = vsel %vm3176, %v3141, 0
      %v3286 = vsel %vm3176, %v3142, 0
      %v3289 = vsel %vm3176, %v3143, 0
      %v3292 = vsel %vm3176, %v3144, 0
      %v3295 = vsel %vm3176, %v3145, 0
      %v3298 = vsel %vm3176, %v3146, 0
      %v3301 = vsel %vm3176, %v3147, 0
      %v3304 = vsel %vm3176, %v3148, 0
      %v3307 = vsel %vm3176, %v3149, 0
      %v3310 = vsel %vm3176, %v3150, 0
      %v3313 = vsel %vm3176, %v3151, 0
      %v3316 = vsel %vm3176, %v3152, 0
      %v3319 = vsel %vm3176, %v3153, 0
      %v3322 = vsel %vm3176, %v3154, 0
      %v3325 = vsel %vm3176, %v3155, 0
      %v3328 = vsel %vm3176, %v3156, 0
      %v3331 = vsel %vm3176, %v3157, 0
      %v3334 = vsel %vm3176, %v3158, 0
      %v3337 = vsel %vm3176, %v3159, 0
      %v3340 = vsel %vm3176, %v3160, 0
      %v3343 = vsel %vm3176, %v3161, 0
      %v3346 = vsel %vm3176, %v3162, 0
      %v3349 = vsel %vm3176, %v3163, 0
      %v3352 = vsel %vm3176, %v3164, 0
      %v3355 = vsel %vm3176, %v3165, 0
      %v3358 = vsel %vm3176, %v3166, 0
      %v3361 = vsel %vm3176, %v3167, 0
      %v3364 = vsel %vm3176, %v3168, 0
      %v3367 = vsel %vm3176, %v3169, 0
      %3369 = vmatpush.msra.mxu0 0.0
      %3370 = vmatpush.msra.mxu0 0.0
      %3371 = vmatpush.msra.mxu0 0.0
      %3372 = vmatpush.msra.mxu0 0.0
      %3373 = vmatpush.msra.mxu0 0.0
      %3374 = vmatpush.msra.mxu0 0.0
      %3375 = vmatpush.msra.mxu0 0.0
      %3376 = vmatpush.msra.mxu0 0.0
      %3377 = vmatpush.msra.mxu0 0.0
      %3378 = vmatpush.msra.mxu0 0.0
      %3379 = vmatpush.msra.mxu0 0.0
      %3380 = vmatpush.msra.mxu0 0.0
      %3381 = vmatpush.msra.mxu0 %v3173
      %3382 = vmatpush.msra.mxu0 %v3172
      %3383 = vmatpush.msra.mxu0 %v3171
      %3384 = vmatpush.msra.mxu0 %v3170
      %3385 = vmatmul.f32.gmra.mxu0 %v3178
      %v3386 = vpop.f32.mrf.mxu0
      %v3387 = vadd.f32 0.0, %v3386
      %3388 = vmatmul.f32.gmra.mxu0 %v3181
      %v3389 = vpop.f32.mrf.mxu0
      %v3390 = vadd.f32 0.0, %v3389
      %3391 = vmatmul.f32.gmra.mxu0 %v3184
      %v3392 = vpop.f32.mrf.mxu0
      %v3393 = vadd.f32 0.0, %v3392
      %3394 = vmatmul.f32.gmra.mxu0 %v3187
      %v3395 = vpop.f32.mrf.mxu0
      %v3396 = vadd.f32 0.0, %v3395
      %3397 = vmatmul.f32.gmra.mxu0 %v3190
      %v3398 = vpop.f32.mrf.mxu0
      %v3399 = vadd.f32 0.0, %v3398
      %3400 = vmatmul.f32.gmra.mxu0 %v3193
      %v3401 = vpop.f32.mrf.mxu0
      %v3402 = vadd.f32 0.0, %v3401
      %3403 = vmatmul.f32.gmra.mxu0 %v3196
      %v3404 = vpop.f32.mrf.mxu0
      %v3405 = vadd.f32 0.0, %v3404
      %3406 = vmatmul.f32.gmra.mxu0 %v3199
      %v3407 = vpop.f32.mrf.mxu0
      %v3408 = vadd.f32 0.0, %v3407
      %3409 = vmatmul.f32.gmra.mxu0 %v3202
      %v3410 = vpop.f32.mrf.mxu0
      %v3411 = vadd.f32 0.0, %v3410
      %3412 = vmatmul.f32.gmra.mxu0 %v3205
      %v3413 = vpop.f32.mrf.mxu0
      %v3414 = vadd.f32 0.0, %v3413
      %3415 = vmatmul.f32.gmra.mxu0 %v3208
      %v3416 = vpop.f32.mrf.mxu0
      %v3417 = vadd.f32 0.0, %v3416
      %3418 = vmatmul.f32.gmra.mxu0 %v3211
      %v3419 = vpop.f32.mrf.mxu0
      %v3420 = vadd.f32 0.0, %v3419
      %3421 = vmatmul.f32.gmra.mxu0 %v3214
      %v3422 = vpop.f32.mrf.mxu0
      %v3423 = vadd.f32 0.0, %v3422
      %3424 = vmatmul.f32.gmra.mxu0 %v3217
      %v3425 = vpop.f32.mrf.mxu0
      %v3426 = vadd.f32 0.0, %v3425
      %3427 = vmatmul.f32.gmra.mxu0 %v3220
      %v3428 = vpop.f32.mrf.mxu0
      %v3429 = vadd.f32 0.0, %v3428
      %3430 = vmatmul.f32.gmra.mxu0 %v3223
      %v3431 = vpop.f32.mrf.mxu0
      %v3432 = vadd.f32 0.0, %v3431
      %3433 = vmatmul.f32.gmra.mxu0 %v3226
      %v3434 = vpop.f32.mrf.mxu0
      %v3435 = vadd.f32 0.0, %v3434
      %3436 = vmatmul.f32.gmra.mxu0 %v3229
      %v3437 = vpop.f32.mrf.mxu0
      %v3438 = vadd.f32 0.0, %v3437
      %3439 = vmatmul.f32.gmra.mxu0 %v3232
      %v3440 = vpop.f32.mrf.mxu0
      %v3441 = vadd.f32 0.0, %v3440
      %3442 = vmatmul.f32.gmra.mxu0 %v3235
      %v3443 = vpop.f32.mrf.mxu0
      %v3444 = vadd.f32 0.0, %v3443
      %3445 = vmatmul.f32.gmra.mxu0 %v3238
      %v3446 = vpop.f32.mrf.mxu0
      %v3447 = vadd.f32 0.0, %v3446
      %3448 = vmatmul.f32.gmra.mxu0 %v3241
      %v3449 = vpop.f32.mrf.mxu0
      %v3450 = vadd.f32 0.0, %v3449
      %3451 = vmatmul.f32.gmra.mxu0 %v3244
      %v3452 = vpop.f32.mrf.mxu0
      %v3453 = vadd.f32 0.0, %v3452
      %3454 = vmatmul.f32.gmra.mxu0 %v3247
      %v3455 = vpop.f32.mrf.mxu0
      %v3456 = vadd.f32 0.0, %v3455
      %3457 = vmatmul.f32.gmra.mxu0 %v3250
      %v3458 = vpop.f32.mrf.mxu0
      %v3459 = vadd.f32 0.0, %v3458
      %3460 = vmatmul.f32.gmra.mxu0 %v3253
      %v3461 = vpop.f32.mrf.mxu0
      %v3462 = vadd.f32 0.0, %v3461
      %3463 = vmatmul.f32.gmra.mxu0 %v3256
      %v3464 = vpop.f32.mrf.mxu0
      %v3465 = vadd.f32 0.0, %v3464
      %3466 = vmatmul.f32.gmra.mxu0 %v3259
      %v3467 = vpop.f32.mrf.mxu0
      %v3468 = vadd.f32 0.0, %v3467
      %3469 = vmatmul.f32.gmra.mxu0 %v3262
      %v3470 = vpop.f32.mrf.mxu0
      %v3471 = vadd.f32 0.0, %v3470
      %3472 = vmatmul.f32.gmra.mxu0 %v3265
      %v3473 = vpop.f32.mrf.mxu0
      %v3474 = vadd.f32 0.0, %v3473
      %3475 = vmatmul.f32.gmra.mxu0 %v3268
      %v3476 = vpop.f32.mrf.mxu0
      %v3477 = vadd.f32 0.0, %v3476
      %3478 = vmatmul.f32.gmra.mxu0 %v3271
      %v3479 = vpop.f32.mrf.mxu0
      %v3480 = vadd.f32 0.0, %v3479
      %3481 = vmatmul.f32.gmra.mxu0 %v3274
      %v3482 = vpop.f32.mrf.mxu0
      %v3483 = vadd.f32 0.0, %v3482
      %3484 = vmatmul.f32.gmra.mxu0 %v3277
      %v3485 = vpop.f32.mrf.mxu0
      %v3486 = vadd.f32 0.0, %v3485
      %3487 = vmatmul.f32.gmra.mxu0 %v3280
      %v3488 = vpop.f32.mrf.mxu0
      %v3489 = vadd.f32 0.0, %v3488
      %3490 = vmatmul.f32.gmra.mxu0 %v3283
      %v3491 = vpop.f32.mrf.mxu0
      %v3492 = vadd.f32 0.0, %v3491
      %3493 = vmatmul.f32.gmra.mxu0 %v3286
      %v3494 = vpop.f32.mrf.mxu0
      %v3495 = vadd.f32 0.0, %v3494
      %3496 = vmatmul.f32.gmra.mxu0 %v3289
      %v3497 = vpop.f32.mrf.mxu0
      %v3498 = vadd.f32 0.0, %v3497
      %3499 = vmatmul.f32.gmra.mxu0 %v3292
      %v3500 = vpop.f32.mrf.mxu0
      %v3501 = vadd.f32 0.0, %v3500
      %3502 = vmatmul.f32.gmra.mxu0 %v3295
      %v3503 = vpop.f32.mrf.mxu0
      %v3504 = vadd.f32 0.0, %v3503
      %3505 = vmatmul.f32.gmra.mxu0 %v3298
      %v3506 = vpop.f32.mrf.mxu0
      %v3507 = vadd.f32 0.0, %v3506
      %3508 = vmatmul.f32.gmra.mxu0 %v3301
      %v3509 = vpop.f32.mrf.mxu0
      %v3510 = vadd.f32 0.0, %v3509
      %3511 = vmatmul.f32.gmra.mxu0 %v3304
      %v3512 = vpop.f32.mrf.mxu0
      %v3513 = vadd.f32 0.0, %v3512
      %3514 = vmatmul.f32.gmra.mxu0 %v3307
      %v3515 = vpop.f32.mrf.mxu0
      %v3516 = vadd.f32 0.0, %v3515
      %3517 = vmatmul.f32.gmra.mxu0 %v3310
      %v3518 = vpop.f32.mrf.mxu0
      %v3519 = vadd.f32 0.0, %v3518
      %3520 = vmatmul.f32.gmra.mxu0 %v3313
      %v3521 = vpop.f32.mrf.mxu0
      %v3522 = vadd.f32 0.0, %v3521
      %3523 = vmatmul.f32.gmra.mxu0 %v3316
      %v3524 = vpop.f32.mrf.mxu0
      %v3525 = vadd.f32 0.0, %v3524
      %3526 = vmatmul.f32.gmra.mxu0 %v3319
      %v3527 = vpop.f32.mrf.mxu0
      %v3528 = vadd.f32 0.0, %v3527
      %3529 = vmatmul.f32.gmra.mxu0 %v3322
      %v3530 = vpop.f32.mrf.mxu0
      %v3531 = vadd.f32 0.0, %v3530
      %3532 = vmatmul.f32.gmra.mxu0 %v3325
      %v3533 = vpop.f32.mrf.mxu0
      %v3534 = vadd.f32 0.0, %v3533
      %3535 = vmatmul.f32.gmra.mxu0 %v3328
      %v3536 = vpop.f32.mrf.mxu0
      %v3537 = vadd.f32 0.0, %v3536
      %3538 = vmatmul.f32.gmra.mxu0 %v3331
      %v3539 = vpop.f32.mrf.mxu0
      %v3540 = vadd.f32 0.0, %v3539
      %3541 = vmatmul.f32.gmra.mxu0 %v3334
      %v3542 = vpop.f32.mrf.mxu0
      %v3543 = vadd.f32 0.0, %v3542
      %3544 = vmatmul.f32.gmra.mxu0 %v3337
      %v3545 = vpop.f32.mrf.mxu0
      %v3546 = vadd.f32 0.0, %v3545
      %3547 = vmatmul.f32.gmra.mxu0 %v3340
      %v3548 = vpop.f32.mrf.mxu0
      %v3549 = vadd.f32 0.0, %v3548
      %3550 = vmatmul.f32.gmra.mxu0 %v3343
      %v3551 = vpop.f32.mrf.mxu0
      %v3552 = vadd.f32 0.0, %v3551
      %3553 = vmatmul.f32.gmra.mxu0 %v3346
      %v3554 = vpop.f32.mrf.mxu0
      %v3555 = vadd.f32 0.0, %v3554
      %3556 = vmatmul.f32.gmra.mxu0 %v3349
      %v3557 = vpop.f32.mrf.mxu0
      %v3558 = vadd.f32 0.0, %v3557
      %3559 = vmatmul.f32.gmra.mxu0 %v3352
      %v3560 = vpop.f32.mrf.mxu0
      %v3561 = vadd.f32 0.0, %v3560
      %3562 = vmatmul.f32.gmra.mxu0 %v3355
      %v3563 = vpop.f32.mrf.mxu0
      %v3564 = vadd.f32 0.0, %v3563
      %3565 = vmatmul.f32.gmra.mxu0 %v3358
      %v3566 = vpop.f32.mrf.mxu0
      %v3567 = vadd.f32 0.0, %v3566
      %3568 = vmatmul.f32.gmra.mxu0 %v3361
      %v3569 = vpop.f32.mrf.mxu0
      %v3570 = vadd.f32 0.0, %v3569
      %3571 = vmatmul.f32.gmra.mxu0 %v3364
      %v3572 = vpop.f32.mrf.mxu0
      %v3573 = vadd.f32 0.0, %v3572
      %3574 = vmatmul.f32.gmra.mxu0 %v3367
      %v3575 = vpop.f32.mrf.mxu0
      %v3576 = vadd.f32 0.0, %v3575
      %3577 = vdwg.mxu0
      %v3579 = vperm.slane %v3175, 0
      %v3581 = vmul.f32 %v3579, %v3387
      %v3582 = vmul.f32 %v3579, %v3390
      %v3583 = vmul.f32 %v3579, %v3393
      %v3584 = vmul.f32 %v3579, %v3396
      %v3585 = vmul.f32 %v3579, %v3399
      %v3586 = vmul.f32 %v3579, %v3402
      %v3587 = vmul.f32 %v3579, %v3405
      %v3588 = vmul.f32 %v3579, %v3408
      %v3589 = vmul.f32 %v3579, %v3411
      %v3590 = vmul.f32 %v3579, %v3414
      %v3591 = vmul.f32 %v3579, %v3417
      %v3592 = vmul.f32 %v3579, %v3420
      %v3593 = vmul.f32 %v3579, %v3423
      %v3594 = vmul.f32 %v3579, %v3426
      %v3595 = vmul.f32 %v3579, %v3429
      %v3596 = vmul.f32 %v3579, %v3432
      %v3597 = vmul.f32 %v3579, %v3435
      %v3598 = vmul.f32 %v3579, %v3438
      %v3599 = vmul.f32 %v3579, %v3441
      %v3600 = vmul.f32 %v3579, %v3444
      %v3601 = vmul.f32 %v3579, %v3447
      %v3602 = vmul.f32 %v3579, %v3450
      %v3603 = vmul.f32 %v3579, %v3453
      %v3604 = vmul.f32 %v3579, %v3456
      %v3605 = vmul.f32 %v3579, %v3459
      %v3606 = vmul.f32 %v3579, %v3462
      %v3607 = vmul.f32 %v3579, %v3465
      %v3608 = vmul.f32 %v3579, %v3468
      %v3609 = vmul.f32 %v3579, %v3471
      %v3610 = vmul.f32 %v3579, %v3474
      %v3611 = vmul.f32 %v3579, %v3477
      %v3612 = vmul.f32 %v3579, %v3480
      %v3613 = vmul.f32 %v3579, %v3483
      %v3614 = vmul.f32 %v3579, %v3486
      %v3615 = vmul.f32 %v3579, %v3489
      %v3616 = vmul.f32 %v3579, %v3492
      %v3617 = vmul.f32 %v3579, %v3495
      %v3618 = vmul.f32 %v3579, %v3498
      %v3619 = vmul.f32 %v3579, %v3501
      %v3620 = vmul.f32 %v3579, %v3504
      %v3621 = vmul.f32 %v3579, %v3507
      %v3622 = vmul.f32 %v3579, %v3510
      %v3623 = vmul.f32 %v3579, %v3513
      %v3624 = vmul.f32 %v3579, %v3516
      %v3625 = vmul.f32 %v3579, %v3519
      %v3626 = vmul.f32 %v3579, %v3522
      %v3627 = vmul.f32 %v3579, %v3525
      %v3628 = vmul.f32 %v3579, %v3528
      %v3629 = vmul.f32 %v3579, %v3531
      %v3630 = vmul.f32 %v3579, %v3534
      %v3631 = vmul.f32 %v3579, %v3537
      %v3632 = vmul.f32 %v3579, %v3540
      %v3633 = vmul.f32 %v3579, %v3543
      %v3634 = vmul.f32 %v3579, %v3546
      %v3635 = vmul.f32 %v3579, %v3549
      %v3636 = vmul.f32 %v3579, %v3552
      %v3637 = vmul.f32 %v3579, %v3555
      %v3638 = vmul.f32 %v3579, %v3558
      %v3639 = vmul.f32 %v3579, %v3561
      %v3640 = vmul.f32 %v3579, %v3564
      %v3641 = vmul.f32 %v3579, %v3567
      %v3642 = vmul.f32 %v3579, %v3570
      %v3643 = vmul.f32 %v3579, %v3573
      %v3644 = vmul.f32 %v3579, %v3576
      %v3646 = vperm.slane %v3174, 0
      %v3648 = vadd.f32 %v3581, %v3646
      %v3649 = vadd.f32 %v3582, %v3646
      %v3650 = vadd.f32 %v3583, %v3646
      %v3651 = vadd.f32 %v3584, %v3646
      %v3652 = vadd.f32 %v3585, %v3646
      %v3653 = vadd.f32 %v3586, %v3646
      %v3654 = vadd.f32 %v3587, %v3646
      %v3655 = vadd.f32 %v3588, %v3646
      %v3656 = vadd.f32 %v3589, %v3646
      %v3657 = vadd.f32 %v3590, %v3646
      %v3658 = vadd.f32 %v3591, %v3646
      %v3659 = vadd.f32 %v3592, %v3646
      %v3660 = vadd.f32 %v3593, %v3646
      %v3661 = vadd.f32 %v3594, %v3646
      %v3662 = vadd.f32 %v3595, %v3646
      %v3663 = vadd.f32 %v3596, %v3646
      %v3664 = vadd.f32 %v3597, %v3646
      %v3665 = vadd.f32 %v3598, %v3646
      %v3666 = vadd.f32 %v3599, %v3646
      %v3667 = vadd.f32 %v3600, %v3646
      %v3668 = vadd.f32 %v3601, %v3646
      %v3669 = vadd.f32 %v3602, %v3646
      %v3670 = vadd.f32 %v3603, %v3646
      %v3671 = vadd.f32 %v3604, %v3646
      %v3672 = vadd.f32 %v3605, %v3646
      %v3673 = vadd.f32 %v3606, %v3646
      %v3674 = vadd.f32 %v3607, %v3646
      %v3675 = vadd.f32 %v3608, %v3646
      %v3676 = vadd.f32 %v3609, %v3646
      %v3677 = vadd.f32 %v3610, %v3646
      %v3678 = vadd.f32 %v3611, %v3646
      %v3679 = vadd.f32 %v3612, %v3646
      %v3680 = vadd.f32 %v3613, %v3646
      %v3681 = vadd.f32 %v3614, %v3646
      %v3682 = vadd.f32 %v3615, %v3646
      %v3683 = vadd.f32 %v3616, %v3646
      %v3684 = vadd.f32 %v3617, %v3646
      %v3685 = vadd.f32 %v3618, %v3646
      %v3686 = vadd.f32 %v3619, %v3646
      %v3687 = vadd.f32 %v3620, %v3646
      %v3688 = vadd.f32 %v3621, %v3646
      %v3689 = vadd.f32 %v3622, %v3646
      %v3690 = vadd.f32 %v3623, %v3646
      %v3691 = vadd.f32 %v3624, %v3646
      %v3692 = vadd.f32 %v3625, %v3646
      %v3693 = vadd.f32 %v3626, %v3646
      %v3694 = vadd.f32 %v3627, %v3646
      %v3695 = vadd.f32 %v3628, %v3646
      %v3696 = vadd.f32 %v3629, %v3646
      %v3697 = vadd.f32 %v3630, %v3646
      %v3698 = vadd.f32 %v3631, %v3646
      %v3699 = vadd.f32 %v3632, %v3646
      %v3700 = vadd.f32 %v3633, %v3646
      %v3701 = vadd.f32 %v3634, %v3646
      %v3702 = vadd.f32 %v3635, %v3646
      %v3703 = vadd.f32 %v3636, %v3646
      %v3704 = vadd.f32 %v3637, %v3646
      %v3705 = vadd.f32 %v3638, %v3646
      %v3706 = vadd.f32 %v3639, %v3646
      %v3707 = vadd.f32 %v3640, %v3646
      %v3708 = vadd.f32 %v3641, %v3646
      %v3709 = vadd.f32 %v3642, %v3646
      %v3710 = vadd.f32 %v3643, %v3646
      %v3711 = vadd.f32 %v3644, %v3646
      %v3712 = vxor.u32 %v3648, 2147483648
      %v3713 = vxor.u32 %v3649, 2147483648
      %v3714 = vxor.u32 %v3650, 2147483648
      %v3715 = vxor.u32 %v3651, 2147483648
      %v3716 = vxor.u32 %v3652, 2147483648
      %v3717 = vxor.u32 %v3653, 2147483648
      %v3718 = vxor.u32 %v3654, 2147483648
      %v3719 = vxor.u32 %v3655, 2147483648
      %v3720 = vxor.u32 %v3656, 2147483648
      %v3721 = vxor.u32 %v3657, 2147483648
      %v3722 = vxor.u32 %v3658, 2147483648
      %v3723 = vxor.u32 %v3659, 2147483648
      %v3724 = vxor.u32 %v3660, 2147483648
      %v3725 = vxor.u32 %v3661, 2147483648
      %v3726 = vxor.u32 %v3662, 2147483648
      %v3727 = vxor.u32 %v3663, 2147483648
      %v3728 = vxor.u32 %v3664, 2147483648
      %v3729 = vxor.u32 %v3665, 2147483648
      %v3730 = vxor.u32 %v3666, 2147483648
      %v3731 = vxor.u32 %v3667, 2147483648
      %v3732 = vxor.u32 %v3668, 2147483648
      %v3733 = vxor.u32 %v3669, 2147483648
      %v3734 = vxor.u32 %v3670, 2147483648
      %v3735 = vxor.u32 %v3671, 2147483648
      %v3736 = vxor.u32 %v3672, 2147483648
      %v3737 = vxor.u32 %v3673, 2147483648
      %v3738 = vxor.u32 %v3674, 2147483648
      %v3739 = vxor.u32 %v3675, 2147483648
      %v3740 = vxor.u32 %v3676, 2147483648
      %v3741 = vxor.u32 %v3677, 2147483648
      %v3742 = vxor.u32 %v3678, 2147483648
      %v3743 = vxor.u32 %v3679, 2147483648
      %v3744 = vxor.u32 %v3680, 2147483648
      %v3745 = vxor.u32 %v3681, 2147483648
      %v3746 = vxor.u32 %v3682, 2147483648
      %v3747 = vxor.u32 %v3683, 2147483648
      %v3748 = vxor.u32 %v3684, 2147483648
      %v3749 = vxor.u32 %v3685, 2147483648
      %v3750 = vxor.u32 %v3686, 2147483648
      %v3751 = vxor.u32 %v3687, 2147483648
      %v3752 = vxor.u32 %v3688, 2147483648
      %v3753 = vxor.u32 %v3689, 2147483648
      %v3754 = vxor.u32 %v3690, 2147483648
      %v3755 = vxor.u32 %v3691, 2147483648
      %v3756 = vxor.u32 %v3692, 2147483648
      %v3757 = vxor.u32 %v3693, 2147483648
      %v3758 = vxor.u32 %v3694, 2147483648
      %v3759 = vxor.u32 %v3695, 2147483648
      %v3760 = vxor.u32 %v3696, 2147483648
      %v3761 = vxor.u32 %v3697, 2147483648
      %v3762 = vxor.u32 %v3698, 2147483648
      %v3763 = vxor.u32 %v3699, 2147483648
      %v3764 = vxor.u32 %v3700, 2147483648
      %v3765 = vxor.u32 %v3701, 2147483648
      %v3766 = vxor.u32 %v3702, 2147483648
      %v3767 = vxor.u32 %v3703, 2147483648
      %v3768 = vxor.u32 %v3704, 2147483648
      %v3769 = vxor.u32 %v3705, 2147483648
      %v3770 = vxor.u32 %v3706, 2147483648
      %v3771 = vxor.u32 %v3707, 2147483648
      %v3772 = vxor.u32 %v3708, 2147483648
      %v3773 = vxor.u32 %v3709, 2147483648
      %v3774 = vxor.u32 %v3710, 2147483648
      %v3775 = vxor.u32 %v3711, 2147483648
      %v3776 = vmul.f32 %v3712, 1.442695
      %v3777 = vpow.pop %v3776
      %v3778 = vmul.f32 %v3713, 1.442695
      %v3779 = vpow.pop %v3778
      %v3780 = vmul.f32 %v3714, 1.442695
      %v3781 = vpow.pop %v3780
      %v3782 = vmul.f32 %v3715, 1.442695
      %v3783 = vpow.pop %v3782
      %v3784 = vmul.f32 %v3716, 1.442695
      %v3785 = vpow.pop %v3784
      %v3786 = vmul.f32 %v3717, 1.442695
      %v3787 = vpow.pop %v3786
      %v3788 = vmul.f32 %v3718, 1.442695
      %v3789 = vpow.pop %v3788
      %v3790 = vmul.f32 %v3719, 1.442695
      %v3791 = vpow.pop %v3790
      %v3792 = vmul.f32 %v3720, 1.442695
      %v3793 = vpow.pop %v3792
      %v3794 = vmul.f32 %v3721, 1.442695
      %v3795 = vpow.pop %v3794
      %v3796 = vmul.f32 %v3722, 1.442695
      %v3797 = vpow.pop %v3796
      %v3798 = vmul.f32 %v3723, 1.442695
      %v3799 = vpow.pop %v3798
      %v3800 = vmul.f32 %v3724, 1.442695
      %v3801 = vpow.pop %v3800
      %v3802 = vmul.f32 %v3725, 1.442695
      %v3803 = vpow.pop %v3802
      %v3804 = vmul.f32 %v3726, 1.442695
      %v3805 = vpow.pop %v3804
      %v3806 = vmul.f32 %v3727, 1.442695
      %v3807 = vpow.pop %v3806
      %v3808 = vmul.f32 %v3728, 1.442695
      %v3809 = vpow.pop %v3808
      %v3810 = vmul.f32 %v3729, 1.442695
      %v3811 = vpow.pop %v3810
      %v3812 = vmul.f32 %v3730, 1.442695
      %v3813 = vpow.pop %v3812
      %v3814 = vmul.f32 %v3731, 1.442695
      %v3815 = vpow.pop %v3814
      %v3816 = vmul.f32 %v3732, 1.442695
      %v3817 = vpow.pop %v3816
      %v3818 = vmul.f32 %v3733, 1.442695
      %v3819 = vpow.pop %v3818
      %v3820 = vmul.f32 %v3734, 1.442695
      %v3821 = vpow.pop %v3820
      %v3822 = vmul.f32 %v3735, 1.442695
      %v3823 = vpow.pop %v3822
      %v3824 = vmul.f32 %v3736, 1.442695
      %v3825 = vpow.pop %v3824
      %v3826 = vmul.f32 %v3737, 1.442695
      %v3827 = vpow.pop %v3826
      %v3828 = vmul.f32 %v3738, 1.442695
      %v3829 = vpow.pop %v3828
      %v3830 = vmul.f32 %v3739, 1.442695
      %v3831 = vpow.pop %v3830
      %v3832 = vmul.f32 %v3740, 1.442695
      %v3833 = vpow.pop %v3832
      %v3834 = vmul.f32 %v3741, 1.442695
      %v3835 = vpow.pop %v3834
      %v3836 = vmul.f32 %v3742, 1.442695
      %v3837 = vpow.pop %v3836
      %v3838 = vmul.f32 %v3743, 1.442695
      %v3839 = vpow.pop %v3838
      %v3840 = vmul.f32 %v3744, 1.442695
      %v3841 = vpow.pop %v3840
      %v3842 = vmul.f32 %v3745, 1.442695
      %v3843 = vpow.pop %v3842
      %v3844 = vmul.f32 %v3746, 1.442695
      %v3845 = vpow.pop %v3844
      %v3846 = vmul.f32 %v3747, 1.442695
      %v3847 = vpow.pop %v3846
      %v3848 = vmul.f32 %v3748, 1.442695
      %v3849 = vpow.pop %v3848
      %v3850 = vmul.f32 %v3749, 1.442695
      %v3851 = vpow.pop %v3850
      %v3852 = vmul.f32 %v3750, 1.442695
      %v3853 = vpow.pop %v3852
      %v3854 = vmul.f32 %v3751, 1.442695
      %v3855 = vpow.pop %v3854
      %v3856 = vmul.f32 %v3752, 1.442695
      %v3857 = vpow.pop %v3856
      %v3858 = vmul.f32 %v3753, 1.442695
      %v3859 = vpow.pop %v3858
      %v3860 = vmul.f32 %v3754, 1.442695
      %v3861 = vpow.pop %v3860
      %v3862 = vmul.f32 %v3755, 1.442695
      %v3863 = vpow.pop %v3862
      %v3864 = vmul.f32 %v3756, 1.442695
      %v3865 = vpow.pop %v3864
      %v3866 = vmul.f32 %v3757, 1.442695
      %v3867 = vpow.pop %v3866
      %v3868 = vmul.f32 %v3758, 1.442695
      %v3869 = vpow.pop %v3868
      %v3870 = vmul.f32 %v3759, 1.442695
      %v3871 = vpow.pop %v3870
      %v3872 = vmul.f32 %v3760, 1.442695
      %v3873 = vpow.pop %v3872
      %v3874 = vmul.f32 %v3761, 1.442695
      %v3875 = vpow.pop %v3874
      %v3876 = vmul.f32 %v3762, 1.442695
      %v3877 = vpow.pop %v3876
      %v3878 = vmul.f32 %v3763, 1.442695
      %v3879 = vpow.pop %v3878
      %v3880 = vmul.f32 %v3764, 1.442695
      %v3881 = vpow.pop %v3880
      %v3882 = vmul.f32 %v3765, 1.442695
      %v3883 = vpow.pop %v3882
      %v3884 = vmul.f32 %v3766, 1.442695
      %v3885 = vpow.pop %v3884
      %v3886 = vmul.f32 %v3767, 1.442695
      %v3887 = vpow.pop %v3886
      %v3888 = vmul.f32 %v3768, 1.442695
      %v3889 = vpow.pop %v3888
      %v3890 = vmul.f32 %v3769, 1.442695
      %v3891 = vpow.pop %v3890
      %v3892 = vmul.f32 %v3770, 1.442695
      %v3893 = vpow.pop %v3892
      %v3894 = vmul.f32 %v3771, 1.442695
      %v3895 = vpow.pop %v3894
      %v3896 = vmul.f32 %v3772, 1.442695
      %v3897 = vpow.pop %v3896
      %v3898 = vmul.f32 %v3773, 1.442695
      %v3899 = vpow.pop %v3898
      %v3900 = vmul.f32 %v3774, 1.442695
      %v3901 = vpow.pop %v3900
      %v3902 = vmul.f32 %v3775, 1.442695
      %v3903 = vpow.pop %v3902
      %v3904 = vadd.f32 %v3777, 1.0
      %v3905 = vadd.f32 %v3779, 1.0
      %v3906 = vadd.f32 %v3781, 1.0
      %v3907 = vadd.f32 %v3783, 1.0
      %v3908 = vadd.f32 %v3785, 1.0
      %v3909 = vadd.f32 %v3787, 1.0
      %v3910 = vadd.f32 %v3789, 1.0
      %v3911 = vadd.f32 %v3791, 1.0
      %v3912 = vadd.f32 %v3793, 1.0
      %v3913 = vadd.f32 %v3795, 1.0
      %v3914 = vadd.f32 %v3797, 1.0
      %v3915 = vadd.f32 %v3799, 1.0
      %v3916 = vadd.f32 %v3801, 1.0
      %v3917 = vadd.f32 %v3803, 1.0
      %v3918 = vadd.f32 %v3805, 1.0
      %v3919 = vadd.f32 %v3807, 1.0
      %v3920 = vadd.f32 %v3809, 1.0
      %v3921 = vadd.f32 %v3811, 1.0
      %v3922 = vadd.f32 %v3813, 1.0
      %v3923 = vadd.f32 %v3815, 1.0
      %v3924 = vadd.f32 %v3817, 1.0
      %v3925 = vadd.f32 %v3819, 1.0
      %v3926 = vadd.f32 %v3821, 1.0
      %v3927 = vadd.f32 %v3823, 1.0
      %v3928 = vadd.f32 %v3825, 1.0
      %v3929 = vadd.f32 %v3827, 1.0
      %v3930 = vadd.f32 %v3829, 1.0
      %v3931 = vadd.f32 %v3831, 1.0
      %v3932 = vadd.f32 %v3833, 1.0
      %v3933 = vadd.f32 %v3835, 1.0
      %v3934 = vadd.f32 %v3837, 1.0
      %v3935 = vadd.f32 %v3839, 1.0
      %v3936 = vadd.f32 %v3841, 1.0
      %v3937 = vadd.f32 %v3843, 1.0
      %v3938 = vadd.f32 %v3845, 1.0
      %v3939 = vadd.f32 %v3847, 1.0
      %v3940 = vadd.f32 %v3849, 1.0
      %v3941 = vadd.f32 %v3851, 1.0
      %v3942 = vadd.f32 %v3853, 1.0
      %v3943 = vadd.f32 %v3855, 1.0
      %v3944 = vadd.f32 %v3857, 1.0
      %v3945 = vadd.f32 %v3859, 1.0
      %v3946 = vadd.f32 %v3861, 1.0
      %v3947 = vadd.f32 %v3863, 1.0
      %v3948 = vadd.f32 %v3865, 1.0
      %v3949 = vadd.f32 %v3867, 1.0
      %v3950 = vadd.f32 %v3869, 1.0
      %v3951 = vadd.f32 %v3871, 1.0
      %v3952 = vadd.f32 %v3873, 1.0
      %v3953 = vadd.f32 %v3875, 1.0
      %v3954 = vadd.f32 %v3877, 1.0
      %v3955 = vadd.f32 %v3879, 1.0
      %v3956 = vadd.f32 %v3881, 1.0
      %v3957 = vadd.f32 %v3883, 1.0
      %v3958 = vadd.f32 %v3885, 1.0
      %v3959 = vadd.f32 %v3887, 1.0
      %v3960 = vadd.f32 %v3889, 1.0
      %v3961 = vadd.f32 %v3891, 1.0
      %v3962 = vadd.f32 %v3893, 1.0
      %v3963 = vadd.f32 %v3895, 1.0
      %v3964 = vadd.f32 %v3897, 1.0
      %v3965 = vadd.f32 %v3899, 1.0
      %v3966 = vadd.f32 %v3901, 1.0
      %v3967 = vadd.f32 %v3903, 1.0
      %v3968 = vrcp.pop %v3904
      %v3969 = vmul.f32 %v3904, %v3968
      %v3970 = vsub.f32 1.0, %v3969
      %v3971 = vmul.f32 %v3968, %v3970
      %v3972 = vadd.f32 %v3968, %v3971
      %vm3973 = vweird.f32 %v3904
      %vm3974 = vweird.f32 %v3968
      %vm3975 = vmor %vm3973, %vm3974
      %v3976 = vsel %vm3975, %v3968, %v3972
      %v3977 = vand.u32 2147483647, %v3904
      %vm3978 = vcmp.eq.f32.partialorder %v3977, 8.507059e+37
      %v3979 = vand.u32 %v3904, 2147483648
      %v3980 = vor.u32 1.1754944e-38, %v3979
      %v3981 = vsel %vm3978, %v3980, %v3976
      %v3982 = vmul.f32 1.0, %v3981
      %v3983 = vrcp.pop %v3905
      %v3984 = vmul.f32 %v3905, %v3983
      %v3985 = vsub.f32 1.0, %v3984
      %v3986 = vmul.f32 %v3983, %v3985
      %v3987 = vadd.f32 %v3983, %v3986
      %vm3988 = vweird.f32 %v3905
      %vm3989 = vweird.f32 %v3983
      %vm3990 = vmor %vm3988, %vm3989
      %v3991 = vsel %vm3990, %v3983, %v3987
      %v3992 = vand.u32 2147483647, %v3905
      %vm3993 = vcmp.eq.f32.partialorder %v3992, 8.507059e+37
      %v3994 = vand.u32 %v3905, 2147483648
      %v3995 = vor.u32 1.1754944e-38, %v3994
      %v3996 = vsel %vm3993, %v3995, %v3991
      %v3997 = vmul.f32 1.0, %v3996
      %v3998 = vrcp.pop %v3906
      %v3999 = vmul.f32 %v3906, %v3998
      %v4000 = vsub.f32 1.0, %v3999
      %v4001 = vmul.f32 %v3998, %v4000
      %v4002 = vadd.f32 %v3998, %v4001
      %vm4003 = vweird.f32 %v3906
      %vm4004 = vweird.f32 %v3998
      %vm4005 = vmor %vm4003, %vm4004
      %v4006 = vsel %vm4005, %v3998, %v4002
      %v4007 = vand.u32 2147483647, %v3906
      %vm4008 = vcmp.eq.f32.partialorder %v4007, 8.507059e+37
      %v4009 = vand.u32 %v3906, 2147483648
      %v4010 = vor.u32 1.1754944e-38, %v4009
      %v4011 = vsel %vm4008, %v4010, %v4006
      %v4012 = vmul.f32 1.0, %v4011
      %v4013 = vrcp.pop %v3907
      %v4014 = vmul.f32 %v3907, %v4013
      %v4015 = vsub.f32 1.0, %v4014
      %v4016 = vmul.f32 %v4013, %v4015
      %v4017 = vadd.f32 %v4013, %v4016
      %vm4018 = vweird.f32 %v3907
      %vm4019 = vweird.f32 %v4013
      %vm4020 = vmor %vm4018, %vm4019
      %v4021 = vsel %vm4020, %v4013, %v4017
      %v4022 = vand.u32 2147483647, %v3907
      %vm4023 = vcmp.eq.f32.partialorder %v4022, 8.507059e+37
      %v4024 = vand.u32 %v3907, 2147483648
      %v4025 = vor.u32 1.1754944e-38, %v4024
      %v4026 = vsel %vm4023, %v4025, %v4021
      %v4027 = vmul.f32 1.0, %v4026
      %v4028 = vrcp.pop %v3908
      %v4029 = vmul.f32 %v3908, %v4028
      %v4030 = vsub.f32 1.0, %v4029
      %v4031 = vmul.f32 %v4028, %v4030
      %v4032 = vadd.f32 %v4028, %v4031
      %vm4033 = vweird.f32 %v3908
      %vm4034 = vweird.f32 %v4028
      %vm4035 = vmor %vm4033, %vm4034
      %v4036 = vsel %vm4035, %v4028, %v4032
      %v4037 = vand.u32 2147483647, %v3908
      %vm4038 = vcmp.eq.f32.partialorder %v4037, 8.507059e+37
      %v4039 = vand.u32 %v3908, 2147483648
      %v4040 = vor.u32 1.1754944e-38, %v4039
      %v4041 = vsel %vm4038, %v4040, %v4036
      %v4042 = vmul.f32 1.0, %v4041
      %v4043 = vrcp.pop %v3909
      %v4044 = vmul.f32 %v3909, %v4043
      %v4045 = vsub.f32 1.0, %v4044
      %v4046 = vmul.f32 %v4043, %v4045
      %v4047 = vadd.f32 %v4043, %v4046
      %vm4048 = vweird.f32 %v3909
      %vm4049 = vweird.f32 %v4043
      %vm4050 = vmor %vm4048, %vm4049
      %v4051 = vsel %vm4050, %v4043, %v4047
      %v4052 = vand.u32 2147483647, %v3909
      %vm4053 = vcmp.eq.f32.partialorder %v4052, 8.507059e+37
      %v4054 = vand.u32 %v3909, 2147483648
      %v4055 = vor.u32 1.1754944e-38, %v4054
      %v4056 = vsel %vm4053, %v4055, %v4051
      %v4057 = vmul.f32 1.0, %v4056
      %v4058 = vrcp.pop %v3910
      %v4059 = vmul.f32 %v3910, %v4058
      %v4060 = vsub.f32 1.0, %v4059
      %v4061 = vmul.f32 %v4058, %v4060
      %v4062 = vadd.f32 %v4058, %v4061
      %vm4063 = vweird.f32 %v3910
      %vm4064 = vweird.f32 %v4058
      %vm4065 = vmor %vm4063, %vm4064
      %v4066 = vsel %vm4065, %v4058, %v4062
      %v4067 = vand.u32 2147483647, %v3910
      %vm4068 = vcmp.eq.f32.partialorder %v4067, 8.507059e+37
      %v4069 = vand.u32 %v3910, 2147483648
      %v4070 = vor.u32 1.1754944e-38, %v4069
      %v4071 = vsel %vm4068, %v4070, %v4066
      %v4072 = vmul.f32 1.0, %v4071
      %v4073 = vrcp.pop %v3911
      %v4074 = vmul.f32 %v3911, %v4073
      %v4075 = vsub.f32 1.0, %v4074
      %v4076 = vmul.f32 %v4073, %v4075
      %v4077 = vadd.f32 %v4073, %v4076
      %vm4078 = vweird.f32 %v3911
      %vm4079 = vweird.f32 %v4073
      %vm4080 = vmor %vm4078, %vm4079
      %v4081 = vsel %vm4080, %v4073, %v4077
      %v4082 = vand.u32 2147483647, %v3911
      %vm4083 = vcmp.eq.f32.partialorder %v4082, 8.507059e+37
      %v4084 = vand.u32 %v3911, 2147483648
      %v4085 = vor.u32 1.1754944e-38, %v4084
      %v4086 = vsel %vm4083, %v4085, %v4081
      %v4087 = vmul.f32 1.0, %v4086
      %v4088 = vrcp.pop %v3912
      %v4089 = vmul.f32 %v3912, %v4088
      %v4090 = vsub.f32 1.0, %v4089
      %v4091 = vmul.f32 %v4088, %v4090
      %v4092 = vadd.f32 %v4088, %v4091
      %vm4093 = vweird.f32 %v3912
      %vm4094 = vweird.f32 %v4088
      %vm4095 = vmor %vm4093, %vm4094
      %v4096 = vsel %vm4095, %v4088, %v4092
      %v4097 = vand.u32 2147483647, %v3912
      %vm4098 = vcmp.eq.f32.partialorder %v4097, 8.507059e+37
      %v4099 = vand.u32 %v3912, 2147483648
      %v4100 = vor.u32 1.1754944e-38, %v4099
      %v4101 = vsel %vm4098, %v4100, %v4096
      %v4102 = vmul.f32 1.0, %v4101
      %v4103 = vrcp.pop %v3913
      %v4104 = vmul.f32 %v3913, %v4103
      %v4105 = vsub.f32 1.0, %v4104
      %v4106 = vmul.f32 %v4103, %v4105
      %v4107 = vadd.f32 %v4103, %v4106
      %vm4108 = vweird.f32 %v3913
      %vm4109 = vweird.f32 %v4103
      %vm4110 = vmor %vm4108, %vm4109
      %v4111 = vsel %vm4110, %v4103, %v4107
      %v4112 = vand.u32 2147483647, %v3913
      %vm4113 = vcmp.eq.f32.partialorder %v4112, 8.507059e+37
      %v4114 = vand.u32 %v3913, 2147483648
      %v4115 = vor.u32 1.1754944e-38, %v4114
      %v4116 = vsel %vm4113, %v4115, %v4111
      %v4117 = vmul.f32 1.0, %v4116
      %v4118 = vrcp.pop %v3914
      %v4119 = vmul.f32 %v3914, %v4118
      %v4120 = vsub.f32 1.0, %v4119
      %v4121 = vmul.f32 %v4118, %v4120
      %v4122 = vadd.f32 %v4118, %v4121
      %vm4123 = vweird.f32 %v3914
      %vm4124 = vweird.f32 %v4118
      %vm4125 = vmor %vm4123, %vm4124
      %v4126 = vsel %vm4125, %v4118, %v4122
      %v4127 = vand.u32 2147483647, %v3914
      %vm4128 = vcmp.eq.f32.partialorder %v4127, 8.507059e+37
      %v4129 = vand.u32 %v3914, 2147483648
      %v4130 = vor.u32 1.1754944e-38, %v4129
      %v4131 = vsel %vm4128, %v4130, %v4126
      %v4132 = vmul.f32 1.0, %v4131
      %v4133 = vrcp.pop %v3915
      %v4134 = vmul.f32 %v3915, %v4133
      %v4135 = vsub.f32 1.0, %v4134
      %v4136 = vmul.f32 %v4133, %v4135
      %v4137 = vadd.f32 %v4133, %v4136
      %vm4138 = vweird.f32 %v3915
      %vm4139 = vweird.f32 %v4133
      %vm4140 = vmor %vm4138, %vm4139
      %v4141 = vsel %vm4140, %v4133, %v4137
      %v4142 = vand.u32 2147483647, %v3915
      %vm4143 = vcmp.eq.f32.partialorder %v4142, 8.507059e+37
      %v4144 = vand.u32 %v3915, 2147483648
      %v4145 = vor.u32 1.1754944e-38, %v4144
      %v4146 = vsel %vm4143, %v4145, %v4141
      %v4147 = vmul.f32 1.0, %v4146
      %v4148 = vrcp.pop %v3916
      %v4149 = vmul.f32 %v3916, %v4148
      %v4150 = vsub.f32 1.0, %v4149
      %v4151 = vmul.f32 %v4148, %v4150
      %v4152 = vadd.f32 %v4148, %v4151
      %vm4153 = vweird.f32 %v3916
      %vm4154 = vweird.f32 %v4148
      %vm4155 = vmor %vm4153, %vm4154
      %v4156 = vsel %vm4155, %v4148, %v4152
      %v4157 = vand.u32 2147483647, %v3916
      %vm4158 = vcmp.eq.f32.partialorder %v4157, 8.507059e+37
      %v4159 = vand.u32 %v3916, 2147483648
      %v4160 = vor.u32 1.1754944e-38, %v4159
      %v4161 = vsel %vm4158, %v4160, %v4156
      %v4162 = vmul.f32 1.0, %v4161
      %v4163 = vrcp.pop %v3917
      %v4164 = vmul.f32 %v3917, %v4163
      %v4165 = vsub.f32 1.0, %v4164
      %v4166 = vmul.f32 %v4163, %v4165
      %v4167 = vadd.f32 %v4163, %v4166
      %vm4168 = vweird.f32 %v3917
      %vm4169 = vweird.f32 %v4163
      %vm4170 = vmor %vm4168, %vm4169
      %v4171 = vsel %vm4170, %v4163, %v4167
      %v4172 = vand.u32 2147483647, %v3917
      %vm4173 = vcmp.eq.f32.partialorder %v4172, 8.507059e+37
      %v4174 = vand.u32 %v3917, 2147483648
      %v4175 = vor.u32 1.1754944e-38, %v4174
      %v4176 = vsel %vm4173, %v4175, %v4171
      %v4177 = vmul.f32 1.0, %v4176
      %v4178 = vrcp.pop %v3918
      %v4179 = vmul.f32 %v3918, %v4178
      %v4180 = vsub.f32 1.0, %v4179
      %v4181 = vmul.f32 %v4178, %v4180
      %v4182 = vadd.f32 %v4178, %v4181
      %vm4183 = vweird.f32 %v3918
      %vm4184 = vweird.f32 %v4178
      %vm4185 = vmor %vm4183, %vm4184
      %v4186 = vsel %vm4185, %v4178, %v4182
      %v4187 = vand.u32 2147483647, %v3918
      %vm4188 = vcmp.eq.f32.partialorder %v4187, 8.507059e+37
      %v4189 = vand.u32 %v3918, 2147483648
      %v4190 = vor.u32 1.1754944e-38, %v4189
      %v4191 = vsel %vm4188, %v4190, %v4186
      %v4192 = vmul.f32 1.0, %v4191
      %v4193 = vrcp.pop %v3919
      %v4194 = vmul.f32 %v3919, %v4193
      %v4195 = vsub.f32 1.0, %v4194
      %v4196 = vmul.f32 %v4193, %v4195
      %v4197 = vadd.f32 %v4193, %v4196
      %vm4198 = vweird.f32 %v3919
      %vm4199 = vweird.f32 %v4193
      %vm4200 = vmor %vm4198, %vm4199
      %v4201 = vsel %vm4200, %v4193, %v4197
      %v4202 = vand.u32 2147483647, %v3919
      %vm4203 = vcmp.eq.f32.partialorder %v4202, 8.507059e+37
      %v4204 = vand.u32 %v3919, 2147483648
      %v4205 = vor.u32 1.1754944e-38, %v4204
      %v4206 = vsel %vm4203, %v4205, %v4201
      %v4207 = vmul.f32 1.0, %v4206
      %v4208 = vrcp.pop %v3920
      %v4209 = vmul.f32 %v3920, %v4208
      %v4210 = vsub.f32 1.0, %v4209
      %v4211 = vmul.f32 %v4208, %v4210
      %v4212 = vadd.f32 %v4208, %v4211
      %vm4213 = vweird.f32 %v3920
      %vm4214 = vweird.f32 %v4208
      %vm4215 = vmor %vm4213, %vm4214
      %v4216 = vsel %vm4215, %v4208, %v4212
      %v4217 = vand.u32 2147483647, %v3920
      %vm4218 = vcmp.eq.f32.partialorder %v4217, 8.507059e+37
      %v4219 = vand.u32 %v3920, 2147483648
      %v4220 = vor.u32 1.1754944e-38, %v4219
      %v4221 = vsel %vm4218, %v4220, %v4216
      %v4222 = vmul.f32 1.0, %v4221
      %v4223 = vrcp.pop %v3921
      %v4224 = vmul.f32 %v3921, %v4223
      %v4225 = vsub.f32 1.0, %v4224
      %v4226 = vmul.f32 %v4223, %v4225
      %v4227 = vadd.f32 %v4223, %v4226
      %vm4228 = vweird.f32 %v3921
      %vm4229 = vweird.f32 %v4223
      %vm4230 = vmor %vm4228, %vm4229
      %v4231 = vsel %vm4230, %v4223, %v4227
      %v4232 = vand.u32 2147483647, %v3921
      %vm4233 = vcmp.eq.f32.partialorder %v4232, 8.507059e+37
      %v4234 = vand.u32 %v3921, 2147483648
      %v4235 = vor.u32 1.1754944e-38, %v4234
      %v4236 = vsel %vm4233, %v4235, %v4231
      %v4237 = vmul.f32 1.0, %v4236
      %v4238 = vrcp.pop %v3922
      %v4239 = vmul.f32 %v3922, %v4238
      %v4240 = vsub.f32 1.0, %v4239
      %v4241 = vmul.f32 %v4238, %v4240
      %v4242 = vadd.f32 %v4238, %v4241
      %vm4243 = vweird.f32 %v3922
      %vm4244 = vweird.f32 %v4238
      %vm4245 = vmor %vm4243, %vm4244
      %v4246 = vsel %vm4245, %v4238, %v4242
      %v4247 = vand.u32 2147483647, %v3922
      %vm4248 = vcmp.eq.f32.partialorder %v4247, 8.507059e+37
      %v4249 = vand.u32 %v3922, 2147483648
      %v4250 = vor.u32 1.1754944e-38, %v4249
      %v4251 = vsel %vm4248, %v4250, %v4246
      %v4252 = vmul.f32 1.0, %v4251
      %v4253 = vrcp.pop %v3923
      %v4254 = vmul.f32 %v3923, %v4253
      %v4255 = vsub.f32 1.0, %v4254
      %v4256 = vmul.f32 %v4253, %v4255
      %v4257 = vadd.f32 %v4253, %v4256
      %vm4258 = vweird.f32 %v3923
      %vm4259 = vweird.f32 %v4253
      %vm4260 = vmor %vm4258, %vm4259
      %v4261 = vsel %vm4260, %v4253, %v4257
      %v4262 = vand.u32 2147483647, %v3923
      %vm4263 = vcmp.eq.f32.partialorder %v4262, 8.507059e+37
      %v4264 = vand.u32 %v3923, 2147483648
      %v4265 = vor.u32 1.1754944e-38, %v4264
      %v4266 = vsel %vm4263, %v4265, %v4261
      %v4267 = vmul.f32 1.0, %v4266
      %v4268 = vrcp.pop %v3924
      %v4269 = vmul.f32 %v3924, %v4268
      %v4270 = vsub.f32 1.0, %v4269
      %v4271 = vmul.f32 %v4268, %v4270
      %v4272 = vadd.f32 %v4268, %v4271
      %vm4273 = vweird.f32 %v3924
      %vm4274 = vweird.f32 %v4268
      %vm4275 = vmor %vm4273, %vm4274
      %v4276 = vsel %vm4275, %v4268, %v4272
      %v4277 = vand.u32 2147483647, %v3924
      %vm4278 = vcmp.eq.f32.partialorder %v4277, 8.507059e+37
      %v4279 = vand.u32 %v3924, 2147483648
      %v4280 = vor.u32 1.1754944e-38, %v4279
      %v4281 = vsel %vm4278, %v4280, %v4276
      %v4282 = vmul.f32 1.0, %v4281
      %v4283 = vrcp.pop %v3925
      %v4284 = vmul.f32 %v3925, %v4283
      %v4285 = vsub.f32 1.0, %v4284
      %v4286 = vmul.f32 %v4283, %v4285
      %v4287 = vadd.f32 %v4283, %v4286
      %vm4288 = vweird.f32 %v3925
      %vm4289 = vweird.f32 %v4283
      %vm4290 = vmor %vm4288, %vm4289
      %v4291 = vsel %vm4290, %v4283, %v4287
      %v4292 = vand.u32 2147483647, %v3925
      %vm4293 = vcmp.eq.f32.partialorder %v4292, 8.507059e+37
      %v4294 = vand.u32 %v3925, 2147483648
      %v4295 = vor.u32 1.1754944e-38, %v4294
      %v4296 = vsel %vm4293, %v4295, %v4291
      %v4297 = vmul.f32 1.0, %v4296
      %v4298 = vrcp.pop %v3926
      %v4299 = vmul.f32 %v3926, %v4298
      %v4300 = vsub.f32 1.0, %v4299
      %v4301 = vmul.f32 %v4298, %v4300
      %v4302 = vadd.f32 %v4298, %v4301
      %vm4303 = vweird.f32 %v3926
      %vm4304 = vweird.f32 %v4298
      %vm4305 = vmor %vm4303, %vm4304
      %v4306 = vsel %vm4305, %v4298, %v4302
      %v4307 = vand.u32 2147483647, %v3926
      %vm4308 = vcmp.eq.f32.partialorder %v4307, 8.507059e+37
      %v4309 = vand.u32 %v3926, 2147483648
      %v4310 = vor.u32 1.1754944e-38, %v4309
      %v4311 = vsel %vm4308, %v4310, %v4306
      %v4312 = vmul.f32 1.0, %v4311
      %v4313 = vrcp.pop %v3927
      %v4314 = vmul.f32 %v3927, %v4313
      %v4315 = vsub.f32 1.0, %v4314
      %v4316 = vmul.f32 %v4313, %v4315
      %v4317 = vadd.f32 %v4313, %v4316
      %vm4318 = vweird.f32 %v3927
      %vm4319 = vweird.f32 %v4313
      %vm4320 = vmor %vm4318, %vm4319
      %v4321 = vsel %vm4320, %v4313, %v4317
      %v4322 = vand.u32 2147483647, %v3927
      %vm4323 = vcmp.eq.f32.partialorder %v4322, 8.507059e+37
      %v4324 = vand.u32 %v3927, 2147483648
      %v4325 = vor.u32 1.1754944e-38, %v4324
      %v4326 = vsel %vm4323, %v4325, %v4321
      %v4327 = vmul.f32 1.0, %v4326
      %v4328 = vrcp.pop %v3928
      %v4329 = vmul.f32 %v3928, %v4328
      %v4330 = vsub.f32 1.0, %v4329
      %v4331 = vmul.f32 %v4328, %v4330
      %v4332 = vadd.f32 %v4328, %v4331
      %vm4333 = vweird.f32 %v3928
      %vm4334 = vweird.f32 %v4328
      %vm4335 = vmor %vm4333, %vm4334
      %v4336 = vsel %vm4335, %v4328, %v4332
      %v4337 = vand.u32 2147483647, %v3928
      %vm4338 = vcmp.eq.f32.partialorder %v4337, 8.507059e+37
      %v4339 = vand.u32 %v3928, 2147483648
      %v4340 = vor.u32 1.1754944e-38, %v4339
      %v4341 = vsel %vm4338, %v4340, %v4336
      %v4342 = vmul.f32 1.0, %v4341
      %v4343 = vrcp.pop %v3929
      %v4344 = vmul.f32 %v3929, %v4343
      %v4345 = vsub.f32 1.0, %v4344
      %v4346 = vmul.f32 %v4343, %v4345
      %v4347 = vadd.f32 %v4343, %v4346
      %vm4348 = vweird.f32 %v3929
      %vm4349 = vweird.f32 %v4343
      %vm4350 = vmor %vm4348, %vm4349
      %v4351 = vsel %vm4350, %v4343, %v4347
      %v4352 = vand.u32 2147483647, %v3929
      %vm4353 = vcmp.eq.f32.partialorder %v4352, 8.507059e+37
      %v4354 = vand.u32 %v3929, 2147483648
      %v4355 = vor.u32 1.1754944e-38, %v4354
      %v4356 = vsel %vm4353, %v4355, %v4351
      %v4357 = vmul.f32 1.0, %v4356
      %v4358 = vrcp.pop %v3930
      %v4359 = vmul.f32 %v3930, %v4358
      %v4360 = vsub.f32 1.0, %v4359
      %v4361 = vmul.f32 %v4358, %v4360
      %v4362 = vadd.f32 %v4358, %v4361
      %vm4363 = vweird.f32 %v3930
      %vm4364 = vweird.f32 %v4358
      %vm4365 = vmor %vm4363, %vm4364
      %v4366 = vsel %vm4365, %v4358, %v4362
      %v4367 = vand.u32 2147483647, %v3930
      %vm4368 = vcmp.eq.f32.partialorder %v4367, 8.507059e+37
      %v4369 = vand.u32 %v3930, 2147483648
      %v4370 = vor.u32 1.1754944e-38, %v4369
      %v4371 = vsel %vm4368, %v4370, %v4366
      %v4372 = vmul.f32 1.0, %v4371
      %v4373 = vrcp.pop %v3931
      %v4374 = vmul.f32 %v3931, %v4373
      %v4375 = vsub.f32 1.0, %v4374
      %v4376 = vmul.f32 %v4373, %v4375
      %v4377 = vadd.f32 %v4373, %v4376
      %vm4378 = vweird.f32 %v3931
      %vm4379 = vweird.f32 %v4373
      %vm4380 = vmor %vm4378, %vm4379
      %v4381 = vsel %vm4380, %v4373, %v4377
      %v4382 = vand.u32 2147483647, %v3931
      %vm4383 = vcmp.eq.f32.partialorder %v4382, 8.507059e+37
      %v4384 = vand.u32 %v3931, 2147483648
      %v4385 = vor.u32 1.1754944e-38, %v4384
      %v4386 = vsel %vm4383, %v4385, %v4381
      %v4387 = vmul.f32 1.0, %v4386
      %v4388 = vrcp.pop %v3932
      %v4389 = vmul.f32 %v3932, %v4388
      %v4390 = vsub.f32 1.0, %v4389
      %v4391 = vmul.f32 %v4388, %v4390
      %v4392 = vadd.f32 %v4388, %v4391
      %vm4393 = vweird.f32 %v3932
      %vm4394 = vweird.f32 %v4388
      %vm4395 = vmor %vm4393, %vm4394
      %v4396 = vsel %vm4395, %v4388, %v4392
      %v4397 = vand.u32 2147483647, %v3932
      %vm4398 = vcmp.eq.f32.partialorder %v4397, 8.507059e+37
      %v4399 = vand.u32 %v3932, 2147483648
      %v4400 = vor.u32 1.1754944e-38, %v4399
      %v4401 = vsel %vm4398, %v4400, %v4396
      %v4402 = vmul.f32 1.0, %v4401
      %v4403 = vrcp.pop %v3933
      %v4404 = vmul.f32 %v3933, %v4403
      %v4405 = vsub.f32 1.0, %v4404
      %v4406 = vmul.f32 %v4403, %v4405
      %v4407 = vadd.f32 %v4403, %v4406
      %vm4408 = vweird.f32 %v3933
      %vm4409 = vweird.f32 %v4403
      %vm4410 = vmor %vm4408, %vm4409
      %v4411 = vsel %vm4410, %v4403, %v4407
      %v4412 = vand.u32 2147483647, %v3933
      %vm4413 = vcmp.eq.f32.partialorder %v4412, 8.507059e+37
      %v4414 = vand.u32 %v3933, 2147483648
      %v4415 = vor.u32 1.1754944e-38, %v4414
      %v4416 = vsel %vm4413, %v4415, %v4411
      %v4417 = vmul.f32 1.0, %v4416
      %v4418 = vrcp.pop %v3934
      %v4419 = vmul.f32 %v3934, %v4418
      %v4420 = vsub.f32 1.0, %v4419
      %v4421 = vmul.f32 %v4418, %v4420
      %v4422 = vadd.f32 %v4418, %v4421
      %vm4423 = vweird.f32 %v3934
      %vm4424 = vweird.f32 %v4418
      %vm4425 = vmor %vm4423, %vm4424
      %v4426 = vsel %vm4425, %v4418, %v4422
      %v4427 = vand.u32 2147483647, %v3934
      %vm4428 = vcmp.eq.f32.partialorder %v4427, 8.507059e+37
      %v4429 = vand.u32 %v3934, 2147483648
      %v4430 = vor.u32 1.1754944e-38, %v4429
      %v4431 = vsel %vm4428, %v4430, %v4426
      %v4432 = vmul.f32 1.0, %v4431
      %v4433 = vrcp.pop %v3935
      %v4434 = vmul.f32 %v3935, %v4433
      %v4435 = vsub.f32 1.0, %v4434
      %v4436 = vmul.f32 %v4433, %v4435
      %v4437 = vadd.f32 %v4433, %v4436
      %vm4438 = vweird.f32 %v3935
      %vm4439 = vweird.f32 %v4433
      %vm4440 = vmor %vm4438, %vm4439
      %v4441 = vsel %vm4440, %v4433, %v4437
      %v4442 = vand.u32 2147483647, %v3935
      %vm4443 = vcmp.eq.f32.partialorder %v4442, 8.507059e+37
      %v4444 = vand.u32 %v3935, 2147483648
      %v4445 = vor.u32 1.1754944e-38, %v4444
      %v4446 = vsel %vm4443, %v4445, %v4441
      %v4447 = vmul.f32 1.0, %v4446
      %v4448 = vrcp.pop %v3936
      %v4449 = vmul.f32 %v3936, %v4448
      %v4450 = vsub.f32 1.0, %v4449
      %v4451 = vmul.f32 %v4448, %v4450
      %v4452 = vadd.f32 %v4448, %v4451
      %vm4453 = vweird.f32 %v3936
      %vm4454 = vweird.f32 %v4448
      %vm4455 = vmor %vm4453, %vm4454
      %v4456 = vsel %vm4455, %v4448, %v4452
      %v4457 = vand.u32 2147483647, %v3936
      %vm4458 = vcmp.eq.f32.partialorder %v4457, 8.507059e+37
      %v4459 = vand.u32 %v3936, 2147483648
      %v4460 = vor.u32 1.1754944e-38, %v4459
      %v4461 = vsel %vm4458, %v4460, %v4456
      %v4462 = vmul.f32 1.0, %v4461
      %v4463 = vrcp.pop %v3937
      %v4464 = vmul.f32 %v3937, %v4463
      %v4465 = vsub.f32 1.0, %v4464
      %v4466 = vmul.f32 %v4463, %v4465
      %v4467 = vadd.f32 %v4463, %v4466
      %vm4468 = vweird.f32 %v3937
      %vm4469 = vweird.f32 %v4463
      %vm4470 = vmor %vm4468, %vm4469
      %v4471 = vsel %vm4470, %v4463, %v4467
      %v4472 = vand.u32 2147483647, %v3937
      %vm4473 = vcmp.eq.f32.partialorder %v4472, 8.507059e+37
      %v4474 = vand.u32 %v3937, 2147483648
      %v4475 = vor.u32 1.1754944e-38, %v4474
      %v4476 = vsel %vm4473, %v4475, %v4471
      %v4477 = vmul.f32 1.0, %v4476
      %v4478 = vrcp.pop %v3938
      %v4479 = vmul.f32 %v3938, %v4478
      %v4480 = vsub.f32 1.0, %v4479
      %v4481 = vmul.f32 %v4478, %v4480
      %v4482 = vadd.f32 %v4478, %v4481
      %vm4483 = vweird.f32 %v3938
      %vm4484 = vweird.f32 %v4478
      %vm4485 = vmor %vm4483, %vm4484
      %v4486 = vsel %vm4485, %v4478, %v4482
      %v4487 = vand.u32 2147483647, %v3938
      %vm4488 = vcmp.eq.f32.partialorder %v4487, 8.507059e+37
      %v4489 = vand.u32 %v3938, 2147483648
      %v4490 = vor.u32 1.1754944e-38, %v4489
      %v4491 = vsel %vm4488, %v4490, %v4486
      %v4492 = vmul.f32 1.0, %v4491
      %v4493 = vrcp.pop %v3939
      %v4494 = vmul.f32 %v3939, %v4493
      %v4495 = vsub.f32 1.0, %v4494
      %v4496 = vmul.f32 %v4493, %v4495
      %v4497 = vadd.f32 %v4493, %v4496
      %vm4498 = vweird.f32 %v3939
      %vm4499 = vweird.f32 %v4493
      %vm4500 = vmor %vm4498, %vm4499
      %v4501 = vsel %vm4500, %v4493, %v4497
      %v4502 = vand.u32 2147483647, %v3939
      %vm4503 = vcmp.eq.f32.partialorder %v4502, 8.507059e+37
      %v4504 = vand.u32 %v3939, 2147483648
      %v4505 = vor.u32 1.1754944e-38, %v4504
      %v4506 = vsel %vm4503, %v4505, %v4501
      %v4507 = vmul.f32 1.0, %v4506
      %v4508 = vrcp.pop %v3940
      %v4509 = vmul.f32 %v3940, %v4508
      %v4510 = vsub.f32 1.0, %v4509
      %v4511 = vmul.f32 %v4508, %v4510
      %v4512 = vadd.f32 %v4508, %v4511
      %vm4513 = vweird.f32 %v3940
      %vm4514 = vweird.f32 %v4508
      %vm4515 = vmor %vm4513, %vm4514
      %v4516 = vsel %vm4515, %v4508, %v4512
      %v4517 = vand.u32 2147483647, %v3940
      %vm4518 = vcmp.eq.f32.partialorder %v4517, 8.507059e+37
      %v4519 = vand.u32 %v3940, 2147483648
      %v4520 = vor.u32 1.1754944e-38, %v4519
      %v4521 = vsel %vm4518, %v4520, %v4516
      %v4522 = vmul.f32 1.0, %v4521
      %v4523 = vrcp.pop %v3941
      %v4524 = vmul.f32 %v3941, %v4523
      %v4525 = vsub.f32 1.0, %v4524
      %v4526 = vmul.f32 %v4523, %v4525
      %v4527 = vadd.f32 %v4523, %v4526
      %vm4528 = vweird.f32 %v3941
      %vm4529 = vweird.f32 %v4523
      %vm4530 = vmor %vm4528, %vm4529
      %v4531 = vsel %vm4530, %v4523, %v4527
      %v4532 = vand.u32 2147483647, %v3941
      %vm4533 = vcmp.eq.f32.partialorder %v4532, 8.507059e+37
      %v4534 = vand.u32 %v3941, 2147483648
      %v4535 = vor.u32 1.1754944e-38, %v4534
      %v4536 = vsel %vm4533, %v4535, %v4531
      %v4537 = vmul.f32 1.0, %v4536
      %v4538 = vrcp.pop %v3942
      %v4539 = vmul.f32 %v3942, %v4538
      %v4540 = vsub.f32 1.0, %v4539
      %v4541 = vmul.f32 %v4538, %v4540
      %v4542 = vadd.f32 %v4538, %v4541
      %vm4543 = vweird.f32 %v3942
      %vm4544 = vweird.f32 %v4538
      %vm4545 = vmor %vm4543, %vm4544
      %v4546 = vsel %vm4545, %v4538, %v4542
      %v4547 = vand.u32 2147483647, %v3942
      %vm4548 = vcmp.eq.f32.partialorder %v4547, 8.507059e+37
      %v4549 = vand.u32 %v3942, 2147483648
      %v4550 = vor.u32 1.1754944e-38, %v4549
      %v4551 = vsel %vm4548, %v4550, %v4546
      %v4552 = vmul.f32 1.0, %v4551
      %v4553 = vrcp.pop %v3943
      %v4554 = vmul.f32 %v3943, %v4553
      %v4555 = vsub.f32 1.0, %v4554
      %v4556 = vmul.f32 %v4553, %v4555
      %v4557 = vadd.f32 %v4553, %v4556
      %vm4558 = vweird.f32 %v3943
      %vm4559 = vweird.f32 %v4553
      %vm4560 = vmor %vm4558, %vm4559
      %v4561 = vsel %vm4560, %v4553, %v4557
      %v4562 = vand.u32 2147483647, %v3943
      %vm4563 = vcmp.eq.f32.partialorder %v4562, 8.507059e+37
      %v4564 = vand.u32 %v3943, 2147483648
      %v4565 = vor.u32 1.1754944e-38, %v4564
      %v4566 = vsel %vm4563, %v4565, %v4561
      %v4567 = vmul.f32 1.0, %v4566
      %v4568 = vrcp.pop %v3944
      %v4569 = vmul.f32 %v3944, %v4568
      %v4570 = vsub.f32 1.0, %v4569
      %v4571 = vmul.f32 %v4568, %v4570
      %v4572 = vadd.f32 %v4568, %v4571
      %vm4573 = vweird.f32 %v3944
      %vm4574 = vweird.f32 %v4568
      %vm4575 = vmor %vm4573, %vm4574
      %v4576 = vsel %vm4575, %v4568, %v4572
      %v4577 = vand.u32 2147483647, %v3944
      %vm4578 = vcmp.eq.f32.partialorder %v4577, 8.507059e+37
      %v4579 = vand.u32 %v3944, 2147483648
      %v4580 = vor.u32 1.1754944e-38, %v4579
      %v4581 = vsel %vm4578, %v4580, %v4576
      %v4582 = vmul.f32 1.0, %v4581
      %v4583 = vrcp.pop %v3945
      %v4584 = vmul.f32 %v3945, %v4583
      %v4585 = vsub.f32 1.0, %v4584
      %v4586 = vmul.f32 %v4583, %v4585
      %v4587 = vadd.f32 %v4583, %v4586
      %vm4588 = vweird.f32 %v3945
      %vm4589 = vweird.f32 %v4583
      %vm4590 = vmor %vm4588, %vm4589
      %v4591 = vsel %vm4590, %v4583, %v4587
      %v4592 = vand.u32 2147483647, %v3945
      %vm4593 = vcmp.eq.f32.partialorder %v4592, 8.507059e+37
      %v4594 = vand.u32 %v3945, 2147483648
      %v4595 = vor.u32 1.1754944e-38, %v4594
      %v4596 = vsel %vm4593, %v4595, %v4591
      %v4597 = vmul.f32 1.0, %v4596
      %v4598 = vrcp.pop %v3946
      %v4599 = vmul.f32 %v3946, %v4598
      %v4600 = vsub.f32 1.0, %v4599
      %v4601 = vmul.f32 %v4598, %v4600
      %v4602 = vadd.f32 %v4598, %v4601
      %vm4603 = vweird.f32 %v3946
      %vm4604 = vweird.f32 %v4598
      %vm4605 = vmor %vm4603, %vm4604
      %v4606 = vsel %vm4605, %v4598, %v4602
      %v4607 = vand.u32 2147483647, %v3946
      %vm4608 = vcmp.eq.f32.partialorder %v4607, 8.507059e+37
      %v4609 = vand.u32 %v3946, 2147483648
      %v4610 = vor.u32 1.1754944e-38, %v4609
      %v4611 = vsel %vm4608, %v4610, %v4606
      %v4612 = vmul.f32 1.0, %v4611
      %v4613 = vrcp.pop %v3947
      %v4614 = vmul.f32 %v3947, %v4613
      %v4615 = vsub.f32 1.0, %v4614
      %v4616 = vmul.f32 %v4613, %v4615
      %v4617 = vadd.f32 %v4613, %v4616
      %vm4618 = vweird.f32 %v3947
      %vm4619 = vweird.f32 %v4613
      %vm4620 = vmor %vm4618, %vm4619
      %v4621 = vsel %vm4620, %v4613, %v4617
      %v4622 = vand.u32 2147483647, %v3947
      %vm4623 = vcmp.eq.f32.partialorder %v4622, 8.507059e+37
      %v4624 = vand.u32 %v3947, 2147483648
      %v4625 = vor.u32 1.1754944e-38, %v4624
      %v4626 = vsel %vm4623, %v4625, %v4621
      %v4627 = vmul.f32 1.0, %v4626
      %v4628 = vrcp.pop %v3948
      %v4629 = vmul.f32 %v3948, %v4628
      %v4630 = vsub.f32 1.0, %v4629
      %v4631 = vmul.f32 %v4628, %v4630
      %v4632 = vadd.f32 %v4628, %v4631
      %vm4633 = vweird.f32 %v3948
      %vm4634 = vweird.f32 %v4628
      %vm4635 = vmor %vm4633, %vm4634
      %v4636 = vsel %vm4635, %v4628, %v4632
      %v4637 = vand.u32 2147483647, %v3948
      %vm4638 = vcmp.eq.f32.partialorder %v4637, 8.507059e+37
      %v4639 = vand.u32 %v3948, 2147483648
      %v4640 = vor.u32 1.1754944e-38, %v4639
      %v4641 = vsel %vm4638, %v4640, %v4636
      %v4642 = vmul.f32 1.0, %v4641
      %v4643 = vrcp.pop %v3949
      %v4644 = vmul.f32 %v3949, %v4643
      %v4645 = vsub.f32 1.0, %v4644
      %v4646 = vmul.f32 %v4643, %v4645
      %v4647 = vadd.f32 %v4643, %v4646
      %vm4648 = vweird.f32 %v3949
      %vm4649 = vweird.f32 %v4643
      %vm4650 = vmor %vm4648, %vm4649
      %v4651 = vsel %vm4650, %v4643, %v4647
      %v4652 = vand.u32 2147483647, %v3949
      %vm4653 = vcmp.eq.f32.partialorder %v4652, 8.507059e+37
      %v4654 = vand.u32 %v3949, 2147483648
      %v4655 = vor.u32 1.1754944e-38, %v4654
      %v4656 = vsel %vm4653, %v4655, %v4651
      %v4657 = vmul.f32 1.0, %v4656
      %v4658 = vrcp.pop %v3950
      %v4659 = vmul.f32 %v3950, %v4658
      %v4660 = vsub.f32 1.0, %v4659
      %v4661 = vmul.f32 %v4658, %v4660
      %v4662 = vadd.f32 %v4658, %v4661
      %vm4663 = vweird.f32 %v3950
      %vm4664 = vweird.f32 %v4658
      %vm4665 = vmor %vm4663, %vm4664
      %v4666 = vsel %vm4665, %v4658, %v4662
      %v4667 = vand.u32 2147483647, %v3950
      %vm4668 = vcmp.eq.f32.partialorder %v4667, 8.507059e+37
      %v4669 = vand.u32 %v3950, 2147483648
      %v4670 = vor.u32 1.1754944e-38, %v4669
      %v4671 = vsel %vm4668, %v4670, %v4666
      %v4672 = vmul.f32 1.0, %v4671
      %v4673 = vrcp.pop %v3951
      %v4674 = vmul.f32 %v3951, %v4673
      %v4675 = vsub.f32 1.0, %v4674
      %v4676 = vmul.f32 %v4673, %v4675
      %v4677 = vadd.f32 %v4673, %v4676
      %vm4678 = vweird.f32 %v3951
      %vm4679 = vweird.f32 %v4673
      %vm4680 = vmor %vm4678, %vm4679
      %v4681 = vsel %vm4680, %v4673, %v4677
      %v4682 = vand.u32 2147483647, %v3951
      %vm4683 = vcmp.eq.f32.partialorder %v4682, 8.507059e+37
      %v4684 = vand.u32 %v3951, 2147483648
      %v4685 = vor.u32 1.1754944e-38, %v4684
      %v4686 = vsel %vm4683, %v4685, %v4681
      %v4687 = vmul.f32 1.0, %v4686
      %v4688 = vrcp.pop %v3952
      %v4689 = vmul.f32 %v3952, %v4688
      %v4690 = vsub.f32 1.0, %v4689
      %v4691 = vmul.f32 %v4688, %v4690
      %v4692 = vadd.f32 %v4688, %v4691
      %vm4693 = vweird.f32 %v3952
      %vm4694 = vweird.f32 %v4688
      %vm4695 = vmor %vm4693, %vm4694
      %v4696 = vsel %vm4695, %v4688, %v4692
      %v4697 = vand.u32 2147483647, %v3952
      %vm4698 = vcmp.eq.f32.partialorder %v4697, 8.507059e+37
      %v4699 = vand.u32 %v3952, 2147483648
      %v4700 = vor.u32 1.1754944e-38, %v4699
      %v4701 = vsel %vm4698, %v4700, %v4696
      %v4702 = vmul.f32 1.0, %v4701
      %v4703 = vrcp.pop %v3953
      %v4704 = vmul.f32 %v3953, %v4703
      %v4705 = vsub.f32 1.0, %v4704
      %v4706 = vmul.f32 %v4703, %v4705
      %v4707 = vadd.f32 %v4703, %v4706
      %vm4708 = vweird.f32 %v3953
      %vm4709 = vweird.f32 %v4703
      %vm4710 = vmor %vm4708, %vm4709
      %v4711 = vsel %vm4710, %v4703, %v4707
      %v4712 = vand.u32 2147483647, %v3953
      %vm4713 = vcmp.eq.f32.partialorder %v4712, 8.507059e+37
      %v4714 = vand.u32 %v3953, 2147483648
      %v4715 = vor.u32 1.1754944e-38, %v4714
      %v4716 = vsel %vm4713, %v4715, %v4711
      %v4717 = vmul.f32 1.0, %v4716
      %v4718 = vrcp.pop %v3954
      %v4719 = vmul.f32 %v3954, %v4718
      %v4720 = vsub.f32 1.0, %v4719
      %v4721 = vmul.f32 %v4718, %v4720
      %v4722 = vadd.f32 %v4718, %v4721
      %vm4723 = vweird.f32 %v3954
      %vm4724 = vweird.f32 %v4718
      %vm4725 = vmor %vm4723, %vm4724
      %v4726 = vsel %vm4725, %v4718, %v4722
      %v4727 = vand.u32 2147483647, %v3954
      %vm4728 = vcmp.eq.f32.partialorder %v4727, 8.507059e+37
      %v4729 = vand.u32 %v3954, 2147483648
      %v4730 = vor.u32 1.1754944e-38, %v4729
      %v4731 = vsel %vm4728, %v4730, %v4726
      %v4732 = vmul.f32 1.0, %v4731
      %v4733 = vrcp.pop %v3955
      %v4734 = vmul.f32 %v3955, %v4733
      %v4735 = vsub.f32 1.0, %v4734
      %v4736 = vmul.f32 %v4733, %v4735
      %v4737 = vadd.f32 %v4733, %v4736
      %vm4738 = vweird.f32 %v3955
      %vm4739 = vweird.f32 %v4733
      %vm4740 = vmor %vm4738, %vm4739
      %v4741 = vsel %vm4740, %v4733, %v4737
      %v4742 = vand.u32 2147483647, %v3955
      %vm4743 = vcmp.eq.f32.partialorder %v4742, 8.507059e+37
      %v4744 = vand.u32 %v3955, 2147483648
      %v4745 = vor.u32 1.1754944e-38, %v4744
      %v4746 = vsel %vm4743, %v4745, %v4741
      %v4747 = vmul.f32 1.0, %v4746
      %v4748 = vrcp.pop %v3956
      %v4749 = vmul.f32 %v3956, %v4748
      %v4750 = vsub.f32 1.0, %v4749
      %v4751 = vmul.f32 %v4748, %v4750
      %v4752 = vadd.f32 %v4748, %v4751
      %vm4753 = vweird.f32 %v3956
      %vm4754 = vweird.f32 %v4748
      %vm4755 = vmor %vm4753, %vm4754
      %v4756 = vsel %vm4755, %v4748, %v4752
      %v4757 = vand.u32 2147483647, %v3956
      %vm4758 = vcmp.eq.f32.partialorder %v4757, 8.507059e+37
      %v4759 = vand.u32 %v3956, 2147483648
      %v4760 = vor.u32 1.1754944e-38, %v4759
      %v4761 = vsel %vm4758, %v4760, %v4756
      %v4762 = vmul.f32 1.0, %v4761
      %v4763 = vrcp.pop %v3957
      %v4764 = vmul.f32 %v3957, %v4763
      %v4765 = vsub.f32 1.0, %v4764
      %v4766 = vmul.f32 %v4763, %v4765
      %v4767 = vadd.f32 %v4763, %v4766
      %vm4768 = vweird.f32 %v3957
      %vm4769 = vweird.f32 %v4763
      %vm4770 = vmor %vm4768, %vm4769
      %v4771 = vsel %vm4770, %v4763, %v4767
      %v4772 = vand.u32 2147483647, %v3957
      %vm4773 = vcmp.eq.f32.partialorder %v4772, 8.507059e+37
      %v4774 = vand.u32 %v3957, 2147483648
      %v4775 = vor.u32 1.1754944e-38, %v4774
      %v4776 = vsel %vm4773, %v4775, %v4771
      %v4777 = vmul.f32 1.0, %v4776
      %v4778 = vrcp.pop %v3958
      %v4779 = vmul.f32 %v3958, %v4778
      %v4780 = vsub.f32 1.0, %v4779
      %v4781 = vmul.f32 %v4778, %v4780
      %v4782 = vadd.f32 %v4778, %v4781
      %vm4783 = vweird.f32 %v3958
      %vm4784 = vweird.f32 %v4778
      %vm4785 = vmor %vm4783, %vm4784
      %v4786 = vsel %vm4785, %v4778, %v4782
      %v4787 = vand.u32 2147483647, %v3958
      %vm4788 = vcmp.eq.f32.partialorder %v4787, 8.507059e+37
      %v4789 = vand.u32 %v3958, 2147483648
      %v4790 = vor.u32 1.1754944e-38, %v4789
      %v4791 = vsel %vm4788, %v4790, %v4786
      %v4792 = vmul.f32 1.0, %v4791
      %v4793 = vrcp.pop %v3959
      %v4794 = vmul.f32 %v3959, %v4793
      %v4795 = vsub.f32 1.0, %v4794
      %v4796 = vmul.f32 %v4793, %v4795
      %v4797 = vadd.f32 %v4793, %v4796
      %vm4798 = vweird.f32 %v3959
      %vm4799 = vweird.f32 %v4793
      %vm4800 = vmor %vm4798, %vm4799
      %v4801 = vsel %vm4800, %v4793, %v4797
      %v4802 = vand.u32 2147483647, %v3959
      %vm4803 = vcmp.eq.f32.partialorder %v4802, 8.507059e+37
      %v4804 = vand.u32 %v3959, 2147483648
      %v4805 = vor.u32 1.1754944e-38, %v4804
      %v4806 = vsel %vm4803, %v4805, %v4801
      %v4807 = vmul.f32 1.0, %v4806
      %v4808 = vrcp.pop %v3960
      %v4809 = vmul.f32 %v3960, %v4808
      %v4810 = vsub.f32 1.0, %v4809
      %v4811 = vmul.f32 %v4808, %v4810
      %v4812 = vadd.f32 %v4808, %v4811
      %vm4813 = vweird.f32 %v3960
      %vm4814 = vweird.f32 %v4808
      %vm4815 = vmor %vm4813, %vm4814
      %v4816 = vsel %vm4815, %v4808, %v4812
      %v4817 = vand.u32 2147483647, %v3960
      %vm4818 = vcmp.eq.f32.partialorder %v4817, 8.507059e+37
      %v4819 = vand.u32 %v3960, 2147483648
      %v4820 = vor.u32 1.1754944e-38, %v4819
      %v4821 = vsel %vm4818, %v4820, %v4816
      %v4822 = vmul.f32 1.0, %v4821
      %v4823 = vrcp.pop %v3961
      %v4824 = vmul.f32 %v3961, %v4823
      %v4825 = vsub.f32 1.0, %v4824
      %v4826 = vmul.f32 %v4823, %v4825
      %v4827 = vadd.f32 %v4823, %v4826
      %vm4828 = vweird.f32 %v3961
      %vm4829 = vweird.f32 %v4823
      %vm4830 = vmor %vm4828, %vm4829
      %v4831 = vsel %vm4830, %v4823, %v4827
      %v4832 = vand.u32 2147483647, %v3961
      %vm4833 = vcmp.eq.f32.partialorder %v4832, 8.507059e+37
      %v4834 = vand.u32 %v3961, 2147483648
      %v4835 = vor.u32 1.1754944e-38, %v4834
      %v4836 = vsel %vm4833, %v4835, %v4831
      %v4837 = vmul.f32 1.0, %v4836
      %v4838 = vrcp.pop %v3962
      %v4839 = vmul.f32 %v3962, %v4838
      %v4840 = vsub.f32 1.0, %v4839
      %v4841 = vmul.f32 %v4838, %v4840
      %v4842 = vadd.f32 %v4838, %v4841
      %vm4843 = vweird.f32 %v3962
      %vm4844 = vweird.f32 %v4838
      %vm4845 = vmor %vm4843, %vm4844
      %v4846 = vsel %vm4845, %v4838, %v4842
      %v4847 = vand.u32 2147483647, %v3962
      %vm4848 = vcmp.eq.f32.partialorder %v4847, 8.507059e+37
      %v4849 = vand.u32 %v3962, 2147483648
      %v4850 = vor.u32 1.1754944e-38, %v4849
      %v4851 = vsel %vm4848, %v4850, %v4846
      %v4852 = vmul.f32 1.0, %v4851
      %v4853 = vrcp.pop %v3963
      %v4854 = vmul.f32 %v3963, %v4853
      %v4855 = vsub.f32 1.0, %v4854
      %v4856 = vmul.f32 %v4853, %v4855
      %v4857 = vadd.f32 %v4853, %v4856
      %vm4858 = vweird.f32 %v3963
      %vm4859 = vweird.f32 %v4853
      %vm4860 = vmor %vm4858, %vm4859
      %v4861 = vsel %vm4860, %v4853, %v4857
      %v4862 = vand.u32 2147483647, %v3963
      %vm4863 = vcmp.eq.f32.partialorder %v4862, 8.507059e+37
      %v4864 = vand.u32 %v3963, 2147483648
      %v4865 = vor.u32 1.1754944e-38, %v4864
      %v4866 = vsel %vm4863, %v4865, %v4861
      %v4867 = vmul.f32 1.0, %v4866
      %v4868 = vrcp.pop %v3964
      %v4869 = vmul.f32 %v3964, %v4868
      %v4870 = vsub.f32 1.0, %v4869
      %v4871 = vmul.f32 %v4868, %v4870
      %v4872 = vadd.f32 %v4868, %v4871
      %vm4873 = vweird.f32 %v3964
      %vm4874 = vweird.f32 %v4868
      %vm4875 = vmor %vm4873, %vm4874
      %v4876 = vsel %vm4875, %v4868, %v4872
      %v4877 = vand.u32 2147483647, %v3964
      %vm4878 = vcmp.eq.f32.partialorder %v4877, 8.507059e+37
      %v4879 = vand.u32 %v3964, 2147483648
      %v4880 = vor.u32 1.1754944e-38, %v4879
      %v4881 = vsel %vm4878, %v4880, %v4876
      %v4882 = vmul.f32 1.0, %v4881
      %v4883 = vrcp.pop %v3965
      %v4884 = vmul.f32 %v3965, %v4883
      %v4885 = vsub.f32 1.0, %v4884
      %v4886 = vmul.f32 %v4883, %v4885
      %v4887 = vadd.f32 %v4883, %v4886
      %vm4888 = vweird.f32 %v3965
      %vm4889 = vweird.f32 %v4883
      %vm4890 = vmor %vm4888, %vm4889
      %v4891 = vsel %vm4890, %v4883, %v4887
      %v4892 = vand.u32 2147483647, %v3965
      %vm4893 = vcmp.eq.f32.partialorder %v4892, 8.507059e+37
      %v4894 = vand.u32 %v3965, 2147483648
      %v4895 = vor.u32 1.1754944e-38, %v4894
      %v4896 = vsel %vm4893, %v4895, %v4891
      %v4897 = vmul.f32 1.0, %v4896
      %v4898 = vrcp.pop %v3966
      %v4899 = vmul.f32 %v3966, %v4898
      %v4900 = vsub.f32 1.0, %v4899
      %v4901 = vmul.f32 %v4898, %v4900
      %v4902 = vadd.f32 %v4898, %v4901
      %vm4903 = vweird.f32 %v3966
      %vm4904 = vweird.f32 %v4898
      %vm4905 = vmor %vm4903, %vm4904
      %v4906 = vsel %vm4905, %v4898, %v4902
      %v4907 = vand.u32 2147483647, %v3966
      %vm4908 = vcmp.eq.f32.partialorder %v4907, 8.507059e+37
      %v4909 = vand.u32 %v3966, 2147483648
      %v4910 = vor.u32 1.1754944e-38, %v4909
      %v4911 = vsel %vm4908, %v4910, %v4906
      %v4912 = vmul.f32 1.0, %v4911
      %v4913 = vrcp.pop %v3967
      %v4914 = vmul.f32 %v3967, %v4913
      %v4915 = vsub.f32 1.0, %v4914
      %v4916 = vmul.f32 %v4913, %v4915
      %v4917 = vadd.f32 %v4913, %v4916
      %vm4918 = vweird.f32 %v3967
      %vm4919 = vweird.f32 %v4913
      %vm4920 = vmor %vm4918, %vm4919
      %v4921 = vsel %vm4920, %v4913, %v4917
      %v4922 = vand.u32 2147483647, %v3967
      %vm4923 = vcmp.eq.f32.partialorder %v4922, 8.507059e+37
      %v4924 = vand.u32 %v3967, 2147483648
      %v4925 = vor.u32 1.1754944e-38, %v4924
      %v4926 = vsel %vm4923, %v4925, %v4921
      %v4927 = vmul.f32 1.0, %v4926
      %v4928 = vmul.f32 %v3648, %v3982
      %v4929 = vmul.f32 %v3649, %v3997
      %v4930 = vmul.f32 %v3650, %v4012
      %v4931 = vmul.f32 %v3651, %v4027
      %v4932 = vmul.f32 %v3652, %v4042
      %v4933 = vmul.f32 %v3653, %v4057
      %v4934 = vmul.f32 %v3654, %v4072
      %v4935 = vmul.f32 %v3655, %v4087
      %v4936 = vmul.f32 %v3656, %v4102
      %v4937 = vmul.f32 %v3657, %v4117
      %v4938 = vmul.f32 %v3658, %v4132
      %v4939 = vmul.f32 %v3659, %v4147
      %v4940 = vmul.f32 %v3660, %v4162
      %v4941 = vmul.f32 %v3661, %v4177
      %v4942 = vmul.f32 %v3662, %v4192
      %v4943 = vmul.f32 %v3663, %v4207
      %v4944 = vmul.f32 %v3664, %v4222
      %v4945 = vmul.f32 %v3665, %v4237
      %v4946 = vmul.f32 %v3666, %v4252
      %v4947 = vmul.f32 %v3667, %v4267
      %v4948 = vmul.f32 %v3668, %v4282
      %v4949 = vmul.f32 %v3669, %v4297
      %v4950 = vmul.f32 %v3670, %v4312
      %v4951 = vmul.f32 %v3671, %v4327
      %v4952 = vmul.f32 %v3672, %v4342
      %v4953 = vmul.f32 %v3673, %v4357
      %v4954 = vmul.f32 %v3674, %v4372
      %v4955 = vmul.f32 %v3675, %v4387
      %v4956 = vmul.f32 %v3676, %v4402
      %v4957 = vmul.f32 %v3677, %v4417
      %v4958 = vmul.f32 %v3678, %v4432
      %v4959 = vmul.f32 %v3679, %v4447
      %v4960 = vmul.f32 %v3680, %v4462
      %v4961 = vmul.f32 %v3681, %v4477
      %v4962 = vmul.f32 %v3682, %v4492
      %v4963 = vmul.f32 %v3683, %v4507
      %v4964 = vmul.f32 %v3684, %v4522
      %v4965 = vmul.f32 %v3685, %v4537
      %v4966 = vmul.f32 %v3686, %v4552
      %v4967 = vmul.f32 %v3687, %v4567
      %v4968 = vmul.f32 %v3688, %v4582
      %v4969 = vmul.f32 %v3689, %v4597
      %v4970 = vmul.f32 %v3690, %v4612
      %v4971 = vmul.f32 %v3691, %v4627
      %v4972 = vmul.f32 %v3692, %v4642
      %v4973 = vmul.f32 %v3693, %v4657
      %v4974 = vmul.f32 %v3694, %v4672
      %v4975 = vmul.f32 %v3695, %v4687
      %v4976 = vmul.f32 %v3696, %v4702
      %v4977 = vmul.f32 %v3697, %v4717
      %v4978 = vmul.f32 %v3698, %v4732
      %v4979 = vmul.f32 %v3699, %v4747
      %v4980 = vmul.f32 %v3700, %v4762
      %v4981 = vmul.f32 %v3701, %v4777
      %v4982 = vmul.f32 %v3702, %v4792
      %v4983 = vmul.f32 %v3703, %v4807
      %v4984 = vmul.f32 %v3704, %v4822
      %v4985 = vmul.f32 %v3705, %v4837
      %v4986 = vmul.f32 %v3706, %v4852
      %v4987 = vmul.f32 %v3707, %v4867
      %v4988 = vmul.f32 %v3708, %v4882
      %v4989 = vmul.f32 %v3709, %v4897
      %v4990 = vmul.f32 %v3710, %v4912
      %v4991 = vmul.f32 %v3711, %v4927
      %v4992 = vld [vmem:[%s13] sm:$0xff]
      %v4993 = vld [vmem:[%s13 + $0x8] sm:$0xff]
      %v4994 = vld [vmem:[%s13 + $0x10] sm:$0xff]
      %v4995 = vld [vmem:[%s13 + $0x18] sm:$0xff]
      %v4996 = vld [vmem:[%s14] sm:$0x1]
      %v4997 = vld [vmem:[%s15] sm:$0x1]
      %v4999 = vsel %vm3176, %v4928, 0
      %v5002 = vsel %vm3176, %v4929, 0
      %v5005 = vsel %vm3176, %v4930, 0
      %v5008 = vsel %vm3176, %v4931, 0
      %v5011 = vsel %vm3176, %v4932, 0
      %v5014 = vsel %vm3176, %v4933, 0
      %v5017 = vsel %vm3176, %v4934, 0
      %v5020 = vsel %vm3176, %v4935, 0
      %v5023 = vsel %vm3176, %v4936, 0
      %v5026 = vsel %vm3176, %v4937, 0
      %v5029 = vsel %vm3176, %v4938, 0
      %v5032 = vsel %vm3176, %v4939, 0
      %v5035 = vsel %vm3176, %v4940, 0
      %v5038 = vsel %vm3176, %v4941, 0
      %v5041 = vsel %vm3176, %v4942, 0
      %v5044 = vsel %vm3176, %v4943, 0
      %v5047 = vsel %vm3176, %v4944, 0
      %v5050 = vsel %vm3176, %v4945, 0
      %v5053 = vsel %vm3176, %v4946, 0
      %v5056 = vsel %vm3176, %v4947, 0
      %v5059 = vsel %vm3176, %v4948, 0
      %v5062 = vsel %vm3176, %v4949, 0
      %v5065 = vsel %vm3176, %v4950, 0
      %v5068 = vsel %vm3176, %v4951, 0
      %v5071 = vsel %vm3176, %v4952, 0
      %v5074 = vsel %vm3176, %v4953, 0
      %v5077 = vsel %vm3176, %v4954, 0
      %v5080 = vsel %vm3176, %v4955, 0
      %v5083 = vsel %vm3176, %v4956, 0
      %v5086 = vsel %vm3176, %v4957, 0
      %v5089 = vsel %vm3176, %v4958, 0
      %v5092 = vsel %vm3176, %v4959, 0
      %v5095 = vsel %vm3176, %v4960, 0
      %v5098 = vsel %vm3176, %v4961, 0
      %v5101 = vsel %vm3176, %v4962, 0
      %v5104 = vsel %vm3176, %v4963, 0
      %v5107 = vsel %vm3176, %v4964, 0
      %v5110 = vsel %vm3176, %v4965, 0
      %v5113 = vsel %vm3176, %v4966, 0
      %v5116 = vsel %vm3176, %v4967, 0
      %v5119 = vsel %vm3176, %v4968, 0
      %v5122 = vsel %vm3176, %v4969, 0
      %v5125 = vsel %vm3176, %v4970, 0
      %v5128 = vsel %vm3176, %v4971, 0
      %v5131 = vsel %vm3176, %v4972, 0
      %v5134 = vsel %vm3176, %v4973, 0
      %v5137 = vsel %vm3176, %v4974, 0
      %v5140 = vsel %vm3176, %v4975, 0
      %v5143 = vsel %vm3176, %v4976, 0
      %v5146 = vsel %vm3176, %v4977, 0
      %v5149 = vsel %vm3176, %v4978, 0
      %v5152 = vsel %vm3176, %v4979, 0
      %v5155 = vsel %vm3176, %v4980, 0
      %v5158 = vsel %vm3176, %v4981, 0
      %v5161 = vsel %vm3176, %v4982, 0
      %v5164 = vsel %vm3176, %v4983, 0
      %v5167 = vsel %vm3176, %v4984, 0
      %v5170 = vsel %vm3176, %v4985, 0
      %v5173 = vsel %vm3176, %v4986, 0
      %v5176 = vsel %vm3176, %v4987, 0
      %v5179 = vsel %vm3176, %v4988, 0
      %v5182 = vsel %vm3176, %v4989, 0
      %v5185 = vsel %vm3176, %v4990, 0
      %v5188 = vsel %vm3176, %v4991, 0
      %5190 = vmatpush.msra.mxu0 0.0
      %5191 = vmatpush.msra.mxu0 0.0
      %5192 = vmatpush.msra.mxu0 0.0
      %5193 = vmatpush.msra.mxu0 0.0
      %5194 = vmatpush.msra.mxu0 0.0
      %5195 = vmatpush.msra.mxu0 0.0
      %5196 = vmatpush.msra.mxu0 0.0
      %5197 = vmatpush.msra.mxu0 0.0
      %5198 = vmatpush.msra.mxu0 0.0
      %5199 = vmatpush.msra.mxu0 0.0
      %5200 = vmatpush.msra.mxu0 0.0
      %5201 = vmatpush.msra.mxu0 0.0
      %5202 = vmatpush.msra.mxu0 %v4995
      %5203 = vmatpush.msra.mxu0 %v4994
      %5204 = vmatpush.msra.mxu0 %v4993
      %5205 = vmatpush.msra.mxu0 %v4992
      %5206 = vmatmul.f32.gmra.mxu0 %v4999
      %v5207 = vpop.f32.mrf.mxu0
      %v5208 = vadd.f32 0.0, %v5207
      %5209 = vmatmul.f32.gmra.mxu0 %v5002
      %v5210 = vpop.f32.mrf.mxu0
      %v5211 = vadd.f32 0.0, %v5210
      %5212 = vmatmul.f32.gmra.mxu0 %v5005
      %v5213 = vpop.f32.mrf.mxu0
      %v5214 = vadd.f32 0.0, %v5213
      %5215 = vmatmul.f32.gmra.mxu0 %v5008
      %v5216 = vpop.f32.mrf.mxu0
      %v5217 = vadd.f32 0.0, %v5216
      %5218 = vmatmul.f32.gmra.mxu0 %v5011
      %v5219 = vpop.f32.mrf.mxu0
      %v5220 = vadd.f32 0.0, %v5219
      %5221 = vmatmul.f32.gmra.mxu0 %v5014
      %v5222 = vpop.f32.mrf.mxu0
      %v5223 = vadd.f32 0.0, %v5222
      %5224 = vmatmul.f32.gmra.mxu0 %v5017
      %v5225 = vpop.f32.mrf.mxu0
      %v5226 = vadd.f32 0.0, %v5225
      %5227 = vmatmul.f32.gmra.mxu0 %v5020
      %v5228 = vpop.f32.mrf.mxu0
      %v5229 = vadd.f32 0.0, %v5228
      %5230 = vmatmul.f32.gmra.mxu0 %v5023
      %v5231 = vpop.f32.mrf.mxu0
      %v5232 = vadd.f32 0.0, %v5231
      %5233 = vmatmul.f32.gmra.mxu0 %v5026
      %v5234 = vpop.f32.mrf.mxu0
      %v5235 = vadd.f32 0.0, %v5234
      %5236 = vmatmul.f32.gmra.mxu0 %v5029
      %v5237 = vpop.f32.mrf.mxu0
      %v5238 = vadd.f32 0.0, %v5237
      %5239 = vmatmul.f32.gmra.mxu0 %v5032
      %v5240 = vpop.f32.mrf.mxu0
      %v5241 = vadd.f32 0.0, %v5240
      %5242 = vmatmul.f32.gmra.mxu0 %v5035
      %v5243 = vpop.f32.mrf.mxu0
      %v5244 = vadd.f32 0.0, %v5243
      %5245 = vmatmul.f32.gmra.mxu0 %v5038
      %v5246 = vpop.f32.mrf.mxu0
      %v5247 = vadd.f32 0.0, %v5246
      %5248 = vmatmul.f32.gmra.mxu0 %v5041
      %v5249 = vpop.f32.mrf.mxu0
      %v5250 = vadd.f32 0.0, %v5249
      %5251 = vmatmul.f32.gmra.mxu0 %v5044
      %v5252 = vpop.f32.mrf.mxu0
      %v5253 = vadd.f32 0.0, %v5252
      %5254 = vmatmul.f32.gmra.mxu0 %v5047
      %v5255 = vpop.f32.mrf.mxu0
      %v5256 = vadd.f32 0.0, %v5255
      %5257 = vmatmul.f32.gmra.mxu0 %v5050
      %v5258 = vpop.f32.mrf.mxu0
      %v5259 = vadd.f32 0.0, %v5258
      %5260 = vmatmul.f32.gmra.mxu0 %v5053
      %v5261 = vpop.f32.mrf.mxu0
      %v5262 = vadd.f32 0.0, %v5261
      %5263 = vmatmul.f32.gmra.mxu0 %v5056
      %v5264 = vpop.f32.mrf.mxu0
      %v5265 = vadd.f32 0.0, %v5264
      %5266 = vmatmul.f32.gmra.mxu0 %v5059
      %v5267 = vpop.f32.mrf.mxu0
      %v5268 = vadd.f32 0.0, %v5267
      %5269 = vmatmul.f32.gmra.mxu0 %v5062
      %v5270 = vpop.f32.mrf.mxu0
      %v5271 = vadd.f32 0.0, %v5270
      %5272 = vmatmul.f32.gmra.mxu0 %v5065
      %v5273 = vpop.f32.mrf.mxu0
      %v5274 = vadd.f32 0.0, %v5273
      %5275 = vmatmul.f32.gmra.mxu0 %v5068
      %v5276 = vpop.f32.mrf.mxu0
      %v5277 = vadd.f32 0.0, %v5276
      %5278 = vmatmul.f32.gmra.mxu0 %v5071
      %v5279 = vpop.f32.mrf.mxu0
      %v5280 = vadd.f32 0.0, %v5279
      %5281 = vmatmul.f32.gmra.mxu0 %v5074
      %v5282 = vpop.f32.mrf.mxu0
      %v5283 = vadd.f32 0.0, %v5282
      %5284 = vmatmul.f32.gmra.mxu0 %v5077
      %v5285 = vpop.f32.mrf.mxu0
      %v5286 = vadd.f32 0.0, %v5285
      %5287 = vmatmul.f32.gmra.mxu0 %v5080
      %v5288 = vpop.f32.mrf.mxu0
      %v5289 = vadd.f32 0.0, %v5288
      %5290 = vmatmul.f32.gmra.mxu0 %v5083
      %v5291 = vpop.f32.mrf.mxu0
      %v5292 = vadd.f32 0.0, %v5291
      %5293 = vmatmul.f32.gmra.mxu0 %v5086
      %v5294 = vpop.f32.mrf.mxu0
      %v5295 = vadd.f32 0.0, %v5294
      %5296 = vmatmul.f32.gmra.mxu0 %v5089
      %v5297 = vpop.f32.mrf.mxu0
      %v5298 = vadd.f32 0.0, %v5297
      %5299 = vmatmul.f32.gmra.mxu0 %v5092
      %v5300 = vpop.f32.mrf.mxu0
      %v5301 = vadd.f32 0.0, %v5300
      %5302 = vmatmul.f32.gmra.mxu0 %v5095
      %v5303 = vpop.f32.mrf.mxu0
      %v5304 = vadd.f32 0.0, %v5303
      %5305 = vmatmul.f32.gmra.mxu0 %v5098
      %v5306 = vpop.f32.mrf.mxu0
      %v5307 = vadd.f32 0.0, %v5306
      %5308 = vmatmul.f32.gmra.mxu0 %v5101
      %v5309 = vpop.f32.mrf.mxu0
      %v5310 = vadd.f32 0.0, %v5309
      %5311 = vmatmul.f32.gmra.mxu0 %v5104
      %v5312 = vpop.f32.mrf.mxu0
      %v5313 = vadd.f32 0.0, %v5312
      %5314 = vmatmul.f32.gmra.mxu0 %v5107
      %v5315 = vpop.f32.mrf.mxu0
      %v5316 = vadd.f32 0.0, %v5315
      %5317 = vmatmul.f32.gmra.mxu0 %v5110
      %v5318 = vpop.f32.mrf.mxu0
      %v5319 = vadd.f32 0.0, %v5318
      %5320 = vmatmul.f32.gmra.mxu0 %v5113
      %v5321 = vpop.f32.mrf.mxu0
      %v5322 = vadd.f32 0.0, %v5321
      %5323 = vmatmul.f32.gmra.mxu0 %v5116
      %v5324 = vpop.f32.mrf.mxu0
      %v5325 = vadd.f32 0.0, %v5324
      %5326 = vmatmul.f32.gmra.mxu0 %v5119
      %v5327 = vpop.f32.mrf.mxu0
      %v5328 = vadd.f32 0.0, %v5327
      %5329 = vmatmul.f32.gmra.mxu0 %v5122
      %v5330 = vpop.f32.mrf.mxu0
      %v5331 = vadd.f32 0.0, %v5330
      %5332 = vmatmul.f32.gmra.mxu0 %v5125
      %v5333 = vpop.f32.mrf.mxu0
      %v5334 = vadd.f32 0.0, %v5333
      %5335 = vmatmul.f32.gmra.mxu0 %v5128
      %v5336 = vpop.f32.mrf.mxu0
      %v5337 = vadd.f32 0.0, %v5336
      %5338 = vmatmul.f32.gmra.mxu0 %v5131
      %v5339 = vpop.f32.mrf.mxu0
      %v5340 = vadd.f32 0.0, %v5339
      %5341 = vmatmul.f32.gmra.mxu0 %v5134
      %v5342 = vpop.f32.mrf.mxu0
      %v5343 = vadd.f32 0.0, %v5342
      %5344 = vmatmul.f32.gmra.mxu0 %v5137
      %v5345 = vpop.f32.mrf.mxu0
      %v5346 = vadd.f32 0.0, %v5345
      %5347 = vmatmul.f32.gmra.mxu0 %v5140
      %v5348 = vpop.f32.mrf.mxu0
      %v5349 = vadd.f32 0.0, %v5348
      %5350 = vmatmul.f32.gmra.mxu0 %v5143
      %v5351 = vpop.f32.mrf.mxu0
      %v5352 = vadd.f32 0.0, %v5351
      %5353 = vmatmul.f32.gmra.mxu0 %v5146
      %v5354 = vpop.f32.mrf.mxu0
      %v5355 = vadd.f32 0.0, %v5354
      %5356 = vmatmul.f32.gmra.mxu0 %v5149
      %v5357 = vpop.f32.mrf.mxu0
      %v5358 = vadd.f32 0.0, %v5357
      %5359 = vmatmul.f32.gmra.mxu0 %v5152
      %v5360 = vpop.f32.mrf.mxu0
      %v5361 = vadd.f32 0.0, %v5360
      %5362 = vmatmul.f32.gmra.mxu0 %v5155
      %v5363 = vpop.f32.mrf.mxu0
      %v5364 = vadd.f32 0.0, %v5363
      %5365 = vmatmul.f32.gmra.mxu0 %v5158
      %v5366 = vpop.f32.mrf.mxu0
      %v5367 = vadd.f32 0.0, %v5366
      %5368 = vmatmul.f32.gmra.mxu0 %v5161
      %v5369 = vpop.f32.mrf.mxu0
      %v5370 = vadd.f32 0.0, %v5369
      %5371 = vmatmul.f32.gmra.mxu0 %v5164
      %v5372 = vpop.f32.mrf.mxu0
      %v5373 = vadd.f32 0.0, %v5372
      %5374 = vmatmul.f32.gmra.mxu0 %v5167
      %v5375 = vpop.f32.mrf.mxu0
      %v5376 = vadd.f32 0.0, %v5375
      %5377 = vmatmul.f32.gmra.mxu0 %v5170
      %v5378 = vpop.f32.mrf.mxu0
      %v5379 = vadd.f32 0.0, %v5378
      %5380 = vmatmul.f32.gmra.mxu0 %v5173
      %v5381 = vpop.f32.mrf.mxu0
      %v5382 = vadd.f32 0.0, %v5381
      %5383 = vmatmul.f32.gmra.mxu0 %v5176
      %v5384 = vpop.f32.mrf.mxu0
      %v5385 = vadd.f32 0.0, %v5384
      %5386 = vmatmul.f32.gmra.mxu0 %v5179
      %v5387 = vpop.f32.mrf.mxu0
      %v5388 = vadd.f32 0.0, %v5387
      %5389 = vmatmul.f32.gmra.mxu0 %v5182
      %v5390 = vpop.f32.mrf.mxu0
      %v5391 = vadd.f32 0.0, %v5390
      %5392 = vmatmul.f32.gmra.mxu0 %v5185
      %v5393 = vpop.f32.mrf.mxu0
      %v5394 = vadd.f32 0.0, %v5393
      %5395 = vmatmul.f32.gmra.mxu0 %v5188
      %v5396 = vpop.f32.mrf.mxu0
      %v5397 = vadd.f32 0.0, %v5396
      %5398 = vdwg.mxu0
      %v5400 = vperm.slane %v4997, 0
      %v5402 = vmul.f32 %v5400, %v5208
      %v5403 = vmul.f32 %v5400, %v5211
      %v5404 = vmul.f32 %v5400, %v5214
      %v5405 = vmul.f32 %v5400, %v5217
      %v5406 = vmul.f32 %v5400, %v5220
      %v5407 = vmul.f32 %v5400, %v5223
      %v5408 = vmul.f32 %v5400, %v5226
      %v5409 = vmul.f32 %v5400, %v5229
      %v5410 = vmul.f32 %v5400, %v5232
      %v5411 = vmul.f32 %v5400, %v5235
      %v5412 = vmul.f32 %v5400, %v5238
      %v5413 = vmul.f32 %v5400, %v5241
      %v5414 = vmul.f32 %v5400, %v5244
      %v5415 = vmul.f32 %v5400, %v5247
      %v5416 = vmul.f32 %v5400, %v5250
      %v5417 = vmul.f32 %v5400, %v5253
      %v5418 = vmul.f32 %v5400, %v5256
      %v5419 = vmul.f32 %v5400, %v5259
      %v5420 = vmul.f32 %v5400, %v5262
      %v5421 = vmul.f32 %v5400, %v5265
      %v5422 = vmul.f32 %v5400, %v5268
      %v5423 = vmul.f32 %v5400, %v5271
      %v5424 = vmul.f32 %v5400, %v5274
      %v5425 = vmul.f32 %v5400, %v5277
      %v5426 = vmul.f32 %v5400, %v5280
      %v5427 = vmul.f32 %v5400, %v5283
      %v5428 = vmul.f32 %v5400, %v5286
      %v5429 = vmul.f32 %v5400, %v5289
      %v5430 = vmul.f32 %v5400, %v5292
      %v5431 = vmul.f32 %v5400, %v5295
      %v5432 = vmul.f32 %v5400, %v5298
      %v5433 = vmul.f32 %v5400, %v5301
      %v5434 = vmul.f32 %v5400, %v5304
      %v5435 = vmul.f32 %v5400, %v5307
      %v5436 = vmul.f32 %v5400, %v5310
      %v5437 = vmul.f32 %v5400, %v5313
      %v5438 = vmul.f32 %v5400, %v5316
      %v5439 = vmul.f32 %v5400, %v5319
      %v5440 = vmul.f32 %v5400, %v5322
      %v5441 = vmul.f32 %v5400, %v5325
      %v5442 = vmul.f32 %v5400, %v5328
      %v5443 = vmul.f32 %v5400, %v5331
      %v5444 = vmul.f32 %v5400, %v5334
      %v5445 = vmul.f32 %v5400, %v5337
      %v5446 = vmul.f32 %v5400, %v5340
      %v5447 = vmul.f32 %v5400, %v5343
      %v5448 = vmul.f32 %v5400, %v5346
      %v5449 = vmul.f32 %v5400, %v5349
      %v5450 = vmul.f32 %v5400, %v5352
      %v5451 = vmul.f32 %v5400, %v5355
      %v5452 = vmul.f32 %v5400, %v5358
      %v5453 = vmul.f32 %v5400, %v5361
      %v5454 = vmul.f32 %v5400, %v5364
      %v5455 = vmul.f32 %v5400, %v5367
      %v5456 = vmul.f32 %v5400, %v5370
      %v5457 = vmul.f32 %v5400, %v5373
      %v5458 = vmul.f32 %v5400, %v5376
      %v5459 = vmul.f32 %v5400, %v5379
      %v5460 = vmul.f32 %v5400, %v5382
      %v5461 = vmul.f32 %v5400, %v5385
      %v5462 = vmul.f32 %v5400, %v5388
      %v5463 = vmul.f32 %v5400, %v5391
      %v5464 = vmul.f32 %v5400, %v5394
      %v5465 = vmul.f32 %v5400, %v5397
      %v5467 = vperm.slane %v4996, 0
      %v5469 = vadd.f32 %v5402, %v5467
      %v5470 = vadd.f32 %v5403, %v5467
      %v5471 = vadd.f32 %v5404, %v5467
      %v5472 = vadd.f32 %v5405, %v5467
      %v5473 = vadd.f32 %v5406, %v5467
      %v5474 = vadd.f32 %v5407, %v5467
      %v5475 = vadd.f32 %v5408, %v5467
      %v5476 = vadd.f32 %v5409, %v5467
      %v5477 = vadd.f32 %v5410, %v5467
      %v5478 = vadd.f32 %v5411, %v5467
      %v5479 = vadd.f32 %v5412, %v5467
      %v5480 = vadd.f32 %v5413, %v5467
      %v5481 = vadd.f32 %v5414, %v5467
      %v5482 = vadd.f32 %v5415, %v5467
      %v5483 = vadd.f32 %v5416, %v5467
      %v5484 = vadd.f32 %v5417, %v5467
      %v5485 = vadd.f32 %v5418, %v5467
      %v5486 = vadd.f32 %v5419, %v5467
      %v5487 = vadd.f32 %v5420, %v5467
      %v5488 = vadd.f32 %v5421, %v5467
      %v5489 = vadd.f32 %v5422, %v5467
      %v5490 = vadd.f32 %v5423, %v5467
      %v5491 = vadd.f32 %v5424, %v5467
      %v5492 = vadd.f32 %v5425, %v5467
      %v5493 = vadd.f32 %v5426, %v5467
      %v5494 = vadd.f32 %v5427, %v5467
      %v5495 = vadd.f32 %v5428, %v5467
      %v5496 = vadd.f32 %v5429, %v5467
      %v5497 = vadd.f32 %v5430, %v5467
      %v5498 = vadd.f32 %v5431, %v5467
      %v5499 = vadd.f32 %v5432, %v5467
      %v5500 = vadd.f32 %v5433, %v5467
      %v5501 = vadd.f32 %v5434, %v5467
      %v5502 = vadd.f32 %v5435, %v5467
      %v5503 = vadd.f32 %v5436, %v5467
      %v5504 = vadd.f32 %v5437, %v5467
      %v5505 = vadd.f32 %v5438, %v5467
      %v5506 = vadd.f32 %v5439, %v5467
      %v5507 = vadd.f32 %v5440, %v5467
      %v5508 = vadd.f32 %v5441, %v5467
      %v5509 = vadd.f32 %v5442, %v5467
      %v5510 = vadd.f32 %v5443, %v5467
      %v5511 = vadd.f32 %v5444, %v5467
      %v5512 = vadd.f32 %v5445, %v5467
      %v5513 = vadd.f32 %v5446, %v5467
      %v5514 = vadd.f32 %v5447, %v5467
      %v5515 = vadd.f32 %v5448, %v5467
      %v5516 = vadd.f32 %v5449, %v5467
      %v5517 = vadd.f32 %v5450, %v5467
      %v5518 = vadd.f32 %v5451, %v5467
      %v5519 = vadd.f32 %v5452, %v5467
      %v5520 = vadd.f32 %v5453, %v5467
      %v5521 = vadd.f32 %v5454, %v5467
      %v5522 = vadd.f32 %v5455, %v5467
      %v5523 = vadd.f32 %v5456, %v5467
      %v5524 = vadd.f32 %v5457, %v5467
      %v5525 = vadd.f32 %v5458, %v5467
      %v5526 = vadd.f32 %v5459, %v5467
      %v5527 = vadd.f32 %v5460, %v5467
      %v5528 = vadd.f32 %v5461, %v5467
      %v5529 = vadd.f32 %v5462, %v5467
      %v5530 = vadd.f32 %v5463, %v5467
      %v5531 = vadd.f32 %v5464, %v5467
      %v5532 = vadd.f32 %v5465, %v5467
      %vm5533 = vcmask 31744
      %5534 = vst.msk [vmem:[%s545] sm:$0xff] %vm5533, %v5469
      %5535 = vst.msk [vmem:[%s545 + $0x8] sm:$0xff] %vm5533, %v5470
      %5536 = vst.msk [vmem:[%s545 + $0x10] sm:$0xff] %vm5533, %v5471
      %5537 = vst.msk [vmem:[%s545 + $0x18] sm:$0xff] %vm5533, %v5472
      %5538 = vst.msk [vmem:[%s545 + $0x20] sm:$0xff] %vm5533, %v5473
      %5539 = vst.msk [vmem:[%s545 + $0x28] sm:$0xff] %vm5533, %v5474
      %5540 = vst.msk [vmem:[%s545 + $0x30] sm:$0xff] %vm5533, %v5475
      %5541 = vst.msk [vmem:[%s545 + $0x38] sm:$0xff] %vm5533, %v5476
      %5542 = vst.msk [vmem:[%s545 + $0x40] sm:$0xff] %vm5533, %v5477
      %5543 = vst.msk [vmem:[%s545 + $0x48] sm:$0xff] %vm5533, %v5478
      %5544 = vst.msk [vmem:[%s545 + $0x50] sm:$0xff] %vm5533, %v5479
      %5545 = vst.msk [vmem:[%s545 + $0x58] sm:$0xff] %vm5533, %v5480
      %5546 = vst.msk [vmem:[%s545 + $0x60] sm:$0xff] %vm5533, %v5481
      %5547 = vst.msk [vmem:[%s545 + $0x68] sm:$0xff] %vm5533, %v5482
      %5548 = vst.msk [vmem:[%s545 + $0x70] sm:$0xff] %vm5533, %v5483
      %5549 = vst.msk [vmem:[%s545 + $0x78] sm:$0xff] %vm5533, %v5484
      %5550 = vst.msk [vmem:[%s545 + $0x80] sm:$0xff] %vm5533, %v5485
      %5551 = vst.msk [vmem:[%s545 + $0x88] sm:$0xff] %vm5533, %v5486
      %5552 = vst.msk [vmem:[%s545 + $0x90] sm:$0xff] %vm5533, %v5487
      %5553 = vst.msk [vmem:[%s545 + $0x98] sm:$0xff] %vm5533, %v5488
      %5554 = vst.msk [vmem:[%s545 + $0xa0] sm:$0xff] %vm5533, %v5489
      %5555 = vst.msk [vmem:[%s545 + $0xa8] sm:$0xff] %vm5533, %v5490
      %5556 = vst.msk [vmem:[%s545 + $0xb0] sm:$0xff] %vm5533, %v5491
      %5557 = vst.msk [vmem:[%s545 + $0xb8] sm:$0xff] %vm5533, %v5492
      %5558 = vst.msk [vmem:[%s545 + $0xc0] sm:$0xff] %vm5533, %v5493
      %5559 = vst.msk [vmem:[%s545 + $0xc8] sm:$0xff] %vm5533, %v5494
      %5560 = vst.msk [vmem:[%s545 + $0xd0] sm:$0xff] %vm5533, %v5495
      %5561 = vst.msk [vmem:[%s545 + $0xd8] sm:$0xff] %vm5533, %v5496
      %5562 = vst.msk [vmem:[%s545 + $0xe0] sm:$0xff] %vm5533, %v5497
      %5563 = vst.msk [vmem:[%s545 + $0xe8] sm:$0xff] %vm5533, %v5498
      %5564 = vst.msk [vmem:[%s545 + $0xf0] sm:$0xff] %vm5533, %v5499
      %5565 = vst.msk [vmem:[%s545 + $0xf8] sm:$0xff] %vm5533, %v5500
      %5566 = vst.msk [vmem:[%s545 + $0x100] sm:$0xff] %vm5533, %v5501
      %5567 = vst.msk [vmem:[%s545 + $0x108] sm:$0xff] %vm5533, %v5502
      %5568 = vst.msk [vmem:[%s545 + $0x110] sm:$0xff] %vm5533, %v5503
      %5569 = vst.msk [vmem:[%s545 + $0x118] sm:$0xff] %vm5533, %v5504
      %5570 = vst.msk [vmem:[%s545 + $0x120] sm:$0xff] %vm5533, %v5505
      %5571 = vst.msk [vmem:[%s545 + $0x128] sm:$0xff] %vm5533, %v5506
      %5572 = vst.msk [vmem:[%s545 + $0x130] sm:$0xff] %vm5533, %v5507
      %5573 = vst.msk [vmem:[%s545 + $0x138] sm:$0xff] %vm5533, %v5508
      %5574 = vst.msk [vmem:[%s545 + $0x140] sm:$0xff] %vm5533, %v5509
      %5575 = vst.msk [vmem:[%s545 + $0x148] sm:$0xff] %vm5533, %v5510
      %5576 = vst.msk [vmem:[%s545 + $0x150] sm:$0xff] %vm5533, %v5511
      %5577 = vst.msk [vmem:[%s545 + $0x158] sm:$0xff] %vm5533, %v5512
      %5578 = vst.msk [vmem:[%s545 + $0x160] sm:$0xff] %vm5533, %v5513
      %5579 = vst.msk [vmem:[%s545 + $0x168] sm:$0xff] %vm5533, %v5514
      %5580 = vst.msk [vmem:[%s545 + $0x170] sm:$0xff] %vm5533, %v5515
      %5581 = vst.msk [vmem:[%s545 + $0x178] sm:$0xff] %vm5533, %v5516
      %5582 = vst.msk [vmem:[%s545 + $0x180] sm:$0xff] %vm5533, %v5517
      %5583 = vst.msk [vmem:[%s545 + $0x188] sm:$0xff] %vm5533, %v5518
      %5584 = vst.msk [vmem:[%s545 + $0x190] sm:$0xff] %vm5533, %v5519
      %5585 = vst.msk [vmem:[%s545 + $0x198] sm:$0xff] %vm5533, %v5520
      %5586 = vst.msk [vmem:[%s545 + $0x1a0] sm:$0xff] %vm5533, %v5521
      %5587 = vst.msk [vmem:[%s545 + $0x1a8] sm:$0xff] %vm5533, %v5522
      %5588 = vst.msk [vmem:[%s545 + $0x1b0] sm:$0xff] %vm5533, %v5523
      %5589 = vst.msk [vmem:[%s545 + $0x1b8] sm:$0xff] %vm5533, %v5524
      %5590 = vst.msk [vmem:[%s545 + $0x1c0] sm:$0xff] %vm5533, %v5525
      %5591 = vst.msk [vmem:[%s545 + $0x1c8] sm:$0xff] %vm5533, %v5526
      %5592 = vst.msk [vmem:[%s545 + $0x1d0] sm:$0xff] %vm5533, %v5527
      %5593 = vst.msk [vmem:[%s545 + $0x1d8] sm:$0xff] %vm5533, %v5528
      %5594 = vst.msk [vmem:[%s545 + $0x1e0] sm:$0xff] %vm5533, %v5529
      %5595 = vst.msk [vmem:[%s545 + $0x1e8] sm:$0xff] %vm5533, %v5530
      %5596 = vst.msk [vmem:[%s545 + $0x1f0] sm:$0xff] %vm5533, %v5531
      %5597 = vst.msk [vmem:[%s545 + $0x1f8] sm:$0xff] %vm5533, %v5532
      %s5598 = smul.u32 64, %s27
      %p5599 = scmp.lt.s32.totalorder %s5598, 127
      %s5600 = scalar_select %p5599, %s5598, 127
      %s5601 = smul.addr %s5600, 8
      %s5602 = scalar_lea.vmem %s16, %s5601
      // Predicated region
      $region85: #{tpu_custom_call.1} parent=83 // pred_check
        %p5603 = pneg %p391
      $region86: #{tpu_custom_call.1} parent=83 // pred_check_branch
        %5605 = sbr.rel (%p5603) target = $region88
      $region87: #{tpu_custom_call.1} parent=83 // pred_region
        %s5606 = smul.u32 64, %s27
      $region88: #{tpu_custom_call.1} parent=83 // pred_fallthru
        _
    $region84: #{tpu_custom_call.1} parent=5 // pred_fallthru
      _
    %p5607 = scmp.le.s32.totalorder 2, %s22
    // Predicated region
    $region89: #{tpu_custom_call.1} parent=5 // pred_check
      %p5608 = pneg %p5607
    $region90: #{tpu_custom_call.1} parent=5 // pred_check_branch
      %5610 = sbr.rel (%p5608) target = $region92
    $region91: #{tpu_custom_call.1} parent=5 // pred_region
      %s5611 = ssub.s32 %s22, 2
      // Predicated region
      $region93: #{tpu_custom_call.1} parent=91 // pred_check
        %p5612 = pneg %p397
      $region94: #{tpu_custom_call.1} parent=91 // pred_check_branch
        %5614 = sbr.rel (%p5612) target = $region96
      $region95: #{tpu_custom_call.1} parent=91 // pred_region
        %s5615 = smul.u32 64, %s28
        %p5616 = scmp.lt.s32.totalorder %s5615, 127
        %s5617 = scalar_select %p5616, %s5615, 127
        %s5618 = smul.addr %s5617, 8
        %s5619 = scalar_lea.vmem %s16, %s5618
      $region96: #{tpu_custom_call.1} parent=91 // pred_fallthru
        _
    $region92: #{tpu_custom_call.1} parent=5 // pred_fallthru
      _
  $region6: #{tpu_custom_call.1} parent=0 // loop_footer
    %s26 = sadd.s32 1, %s22
  $region7: #{tpu_custom_call.1} parent=0 // loop_footer_branch
    %21 = sbr.rel target = $region3
  $region8: #{tpu_custom_call.1} parent=0 // loop_exit
    _

</llo_original>
